<compile_context>
chip_gen: v6e
topology: v6e:2x2x1
jax: 0.10.0
libtpu: 0.0.40
codegen_flags: <defaults>
</compile_context>

<pallas_src>
import math

import jax
import jax.numpy as jnp
from jax.experimental import pallas as pl
from jax.experimental.pallas import tpu as pltpu

VMEM_LIMIT = 32 * 1024 * 1024     # explicit scoped-VMEM cap, safe on v5e/v6e/v7x


def _pick_tm(m):
    """M-tile: multiple of 8 (sublane), <= m, >=2 grid steps when m allows
    (v7x megacore), and MXU-friendly sizes (256/512) when m is large."""
    if m <= 8:
        return m                                    # full-dim block (legal)
    if m <= 256:
        return max(8, ((m + 1) // 2) // 8 * 8)      # ~m/2 -> two parallel steps
    if m <= 1024:
        return 256
    return 512


# ---------------------------------------------------------------------------
# Pallas kernels
# ---------------------------------------------------------------------------
def _matmul_bias_relu_kernel(x_ref, w_ref, b_ref, o_ref):
    # x: (tm, K) bf16, w: (K, N) bf16 resident, b: (1, N) f32 resident.
    y = jnp.dot(x_ref[...], w_ref[...], preferred_element_type=jnp.float32)
    o_ref[...] = jnp.maximum(y + b_ref[...], 0.0).astype(o_ref.dtype)


def _head_kernel(x_ref, w1_ref, b1_ref, wc_ref, bc_ref, feat_ref, val_ref):
    # Fused linear1 (+ReLU) and critic head; feat never leaves VMEM before the
    # critic product.
    f = jnp.dot(x_ref[...], w1_ref[...], preferred_element_type=jnp.float32)
    f = jnp.maximum(f + b1_ref[...], 0.0)
    feat_ref[...] = f.astype(feat_ref.dtype)
    # Critic (512 -> 1): VPU multiply + XLU lane reduction instead of an N=1
    # MXU matmul.
    val_ref[...] = jnp.sum(f * wc_ref[...], axis=-1, keepdims=True) + bc_ref[...]


# ---------------------------------------------------------------------------
# Pallas wrappers (no pads, no output slices; partial M blocks are masked)
# ---------------------------------------------------------------------------
def pallas_matmul_bias_relu(x, w, b, out_dtype=jnp.bfloat16):
    """y = relu(x @ w + b). x:(M,K) bf16, w:(K,N) bf16, b:(1,N) f32."""
    M, K = x.shape
    Kw, N = w.shape
    assert K == Kw
    tm = _pick_tm(M)
    cost = pl.CostEstimate(
        flops=2 * M * K * N, transcendentals=0,
        bytes_accessed=M * K * 2 + K * N * 2 + N * 4
        + M * N * jnp.dtype(out_dtype).itemsize)
    return pl.pallas_call(
        _matmul_bias_relu_kernel,
        out_shape=jax.ShapeDtypeStruct((M, N), out_dtype),
        grid=(pl.cdiv(M, tm),),
        in_specs=[
            pl.BlockSpec((tm, K), lambda i: (i, 0)),   # x: tiled over M
            pl.BlockSpec((K, N), lambda i: (0, 0)),    # weight: resident
            pl.BlockSpec((1, N), lambda i: (0, 0)),    # bias: resident
        ],
        out_specs=pl.BlockSpec((tm, N), lambda i: (i, 0)),
        compiler_params=pltpu.CompilerParams(
            dimension_semantics=("parallel",),
            vmem_limit_bytes=VMEM_LIMIT),
        cost_estimate=cost,
    )(x, w, b)


def pallas_head(x, lin1, critic):
    """Fused linear1(+ReLU) -> critic. x:(B,1568) bf16. Returns (value, feat)."""
    M, K = x.shape
    w1, b1 = lin1["w"], lin1["b"]        # (1568, 512) bf16, (1, 512) f32
    wc, bc = critic["w"], critic["b"]    # (1, 512) f32,    (1, 1)  f32
    N1 = w1.shape[1]
    tm = _pick_tm(M)
    cost = pl.CostEstimate(
        flops=2 * M * K * N1 + 3 * M * N1, transcendentals=0,
        bytes_accessed=M * K * 2 + K * N1 * 2 + 2 * N1 * 4 + 4
        + M * N1 * 2 + M * 4)
    feat, value = pl.pallas_call(
        _head_kernel,
        out_shape=(jax.ShapeDtypeStruct((M, N1), jnp.bfloat16),
                   jax.ShapeDtypeStruct((M, 1), jnp.float32)),
        grid=(pl.cdiv(M, tm),),
        in_specs=[
            pl.BlockSpec((tm, K), lambda i: (i, 0)),
            pl.BlockSpec((K, N1), lambda i: (0, 0)),
            pl.BlockSpec((1, N1), lambda i: (0, 0)),
            pl.BlockSpec((1, N1), lambda i: (0, 0)),
            pl.BlockSpec((1, 1), lambda i: (0, 0)),
        ],
        out_specs=(pl.BlockSpec((tm, N1), lambda i: (i, 0)),
                   pl.BlockSpec((tm, 1), lambda i: (i, 0))),
        compiler_params=pltpu.CompilerParams(
            dimension_semantics=("parallel",),
            vmem_limit_bytes=VMEM_LIMIT),
        cost_estimate=cost,
    )(x, w1, b1, wc, bc)
    return value, feat


# ---------------------------------------------------------------------------
# im2col via one fused XLA op (interim until in-kernel implicit GEMM).
# ---------------------------------------------------------------------------
def _patch_feature_perm(kh, kw, c, stride):
    """perm[f] = flattened (ki, kj, c) index of the input element selected by
    feature f of conv_general_dilated_patches (probed numerically once)."""
    probe = jnp.arange(kh * kw * c, dtype=jnp.float32).reshape(1, kh, kw, c)
    pat = jax.lax.conv_general_dilated_patches(
        probe, (kh, kw), (stride, stride), "VALID",
        dimension_numbers=("NHWC", "HWIO", "NHWC"))
    return jnp.round(pat[0, 0, 0, :]).astype(jnp.int32)


def conv_layer(h_nhwc, layer, k, stride):
    """One conv block: NHWC bf16 -> patches (fused XLA op) -> Pallas matmul."""
    B, H, W, C = h_nhwc.shape
    oh = (H - k) // stride + 1
    ow = (W - k) // stride + 1
    patches = jax.lax.conv_general_dilated_patches(
        h_nhwc, (k, k), (stride, stride), "VALID",
        dimension_numbers=("NHWC", "HWIO", "NHWC"))       # (B, oh, ow, k*k*C)
    n_out = layer["w"].shape[1]
    y = pallas_matmul_bias_relu(patches.reshape(B * oh * ow, k * k * C),
                                layer["w"], layer["b"])
    return y.reshape(B, oh, ow, n_out)                    # stays NHWC bf16


# ---------------------------------------------------------------------------
# Parameter init (orthogonal * relu gain, zero bias) — PyTorch layout.
# ---------------------------------------------------------------------------
def orthogonal(key, shape2d, gain=1.0):
    rows, cols = shape2d
    a = jax.random.normal(key, (max(rows, cols), min(rows, cols)), jnp.float32)
    q, r = jnp.linalg.qr(a)
    q = q * jnp.sign(jnp.diagonal(r))
    if rows < cols:
        q = q.T
    return (gain * q).astype(jnp.float32)


def init_params(key, num_inputs):
    relu_gain = math.sqrt(2.0)
    ks = jax.random.split(key, 5)
    conv1_w = orthogonal(ks[0], (32, num_inputs * 8 * 8), relu_gain).reshape(
        32, num_inputs, 8, 8)
    conv2_w = orthogonal(ks[1], (64, 32 * 4 * 4), relu_gain).reshape(64, 32, 4, 4)
    conv3_w = orthogonal(ks[2], (32, 64 * 3 * 3), relu_gain).reshape(32, 64, 3, 3)
    linear1_w = orthogonal(ks[3], (512, 32 * 7 * 7), relu_gain)
    critic_w = orthogonal(ks[4], (1, 512), 1.0)
    return dict(
        conv1_w=conv1_w, conv1_b=jnp.zeros((32,), jnp.float32),
        conv2_w=conv2_w, conv2_b=jnp.zeros((64,), jnp.float32),
        conv3_w=conv3_w, conv3_b=jnp.zeros((32,), jnp.float32),
        linear1_w=linear1_w, linear1_b=jnp.zeros((512,), jnp.float32),
        critic_w=critic_w, critic_b=jnp.zeros((1,), jnp.float32),
    )


# ---------------------------------------------------------------------------
# One-time parameter preparation (transpose / permute / scale / bf16 cast).
# ---------------------------------------------------------------------------
def prepare_params(params, obs_max=255.0):
    def conv_entry(w, b, kh, kw, stride, scale=1.0):
        O, C, KH, KW = w.shape
        # rows in (ki, kj, c) order ...
        wk = (w * scale).transpose(2, 3, 1, 0).reshape(KH * KW * C, O)
        # ... then re-ordered to match conv_general_dilated_patches' feature
        # order exactly (probed, so it can never drift).
        perm = _patch_feature_perm(KH, KW, C, stride)
        wk = wk[perm, :]
        return dict(w=wk.astype(jnp.bfloat16),
                    b=b.reshape(1, -1).astype(jnp.float32))

    # x / obs_max folded into conv1's weights (bias added after => unaffected).
    conv1 = conv_entry(params["conv1_w"], params["conv1_b"], 8, 8, 4, 1.0 / obs_max)
    conv2 = conv_entry(params["conv2_w"], params["conv2_b"], 4, 4, 2)
    conv3 = conv_entry(params["conv3_w"], params["conv3_b"], 3, 3, 1)

    # linear1 columns are laid out for an NCHW flatten (c, h, w); permute once
    # to the NHWC flatten order (h, w, c) used between our layers.
    W1 = params["linear1_w"].reshape(512, 32, 7, 7).transpose(0, 2, 3, 1)
    W1 = W1.reshape(512, 32 * 7 * 7)
    linear1 = dict(w=W1.T.astype(jnp.bfloat16),
                   b=params["linear1_b"].reshape(1, -1).astype(jnp.float32))
    critic = dict(w=params["critic_w"].reshape(1, -1).astype(jnp.float32),
                  b=params["critic_b"].reshape(1, 1).astype(jnp.float32))
    return dict(conv1=conv1, conv2=conv2, conv3=conv3,
                linear1=linear1, critic=critic)


# ---------------------------------------------------------------------------
# Forward pass: returns (critic_value, 512-d features) like the PyTorch module.
# ---------------------------------------------------------------------------
def cnn_policy_forward(x_nchw, prep):
    B = x_nchw.shape[0]
    # Single NCHW -> NHWC layout change at the input; bf16 activations after.
    h = jnp.transpose(x_nchw, (0, 2, 3, 1)).astype(jnp.bfloat16)
    h = conv_layer(h, prep["conv1"], 8, 4)           # (B, 20, 20, 32)
    h = conv_layer(h, prep["conv2"], 4, 2)           # (B,  9,  9, 64)
    h = conv_layer(h, prep["conv3"], 3, 1)           # (B,  7,  7, 32)
    feat_in = h.reshape(B, -1)                       # NHWC flatten (h, w, c)
    value, feat = pallas_head(feat_in, prep["linear1"], prep["critic"])
    return value, feat


# Pure-JAX f32 reference for correctness checking (PyTorch semantics).
def reference_forward(x, params, obs_max=255.0):
    h = x / obs_max

    def conv(h, w, b, stride):
        y = jax.lax.conv_general_dilated(
            h, w, (stride, stride), "VALID",
            dimension_numbers=("NCHW", "OIHW", "NCHW"))
        return jax.nn.relu(y + b.reshape(1, -1, 1, 1))

    h = conv(h, params["conv1_w"], params["conv1_b"], 4)
    h = conv(h, params["conv2_w"], params["conv2_b"], 2)
    h = conv(h, params["conv3_w"], params["conv3_b"], 1)
    feat = jax.nn.relu(h.reshape(h.shape[0], -1) @ params["linear1_w"].T
                       + params["linear1_b"])
    value = feat @ params["critic_w"].T + params["critic_b"]
    return value, feat


if __name__ == "__main__":
    # linear1 is hard-wired to 32*7*7 in the module, which forces 84x84 input.
    B, num_inputs, H, W = 2, 4, 84, 84
    key = jax.random.PRNGKey(0)
    k_in, k_p = jax.random.split(key)
    x = jax.random.uniform(k_in, (B, num_inputs, H, W),
                           minval=0.0, maxval=255.0, dtype=jnp.float32)
    params = init_params(k_p, num_inputs)
    prep = prepare_params(params, obs_max=255.0)     # one-time, outside the step

    value, feat = jax.jit(cnn_policy_forward)(x, prep)
    jax.block_until_ready((value, feat))

    with jax.default_matmul_precision("highest"):
        v_ref, f_ref = jax.jit(reference_forward)(x, params)
    jax.block_until_ready((v_ref, f_ref))

    assert value.shape == (B, 1) and feat.shape == (B, 512)

    # bf16 matmul operands with f32 accumulation vs pure-f32 reference:
    # check max abs error normalized by the feature scale.
    feat32 = feat.astype(jnp.float32)
    scale = max(1.0, float(jnp.max(jnp.abs(f_ref))))
    feat_err = float(jnp.max(jnp.abs(feat32 - f_ref)))
    val_err = float(jnp.max(jnp.abs(value - v_ref)))
    assert feat_err <= 5e-2 * scale, (feat_err, scale)
    assert val_err <= 5e-2 * scale, (val_err, scale)
    print("KERNEL_OK")
</pallas_src>

<mosaic_0001>
module attributes {stable_mosaic.version = 11 : i64} {
  func.func @_matmul_bias_relu_kernel(%arg0: i32, %arg1: memref<256x256xbf16, #tpu.memory_space<vmem>>, %arg2: memref<256x32xbf16, #tpu.memory_space<vmem>>, %arg3: memref<1x32xf32, #tpu.memory_space<vmem>>, %arg4: memref<256x32xbf16, #tpu.memory_space<vmem>>) attributes {dimension_semantics = [#tpu.dimension_semantics<parallel>], iteration_bounds = array<i64: 4>, scalar_prefetch = 0 : i64, scratch_operands = 0 : i64, tpu.core_type = #tpu.core_type<tc>, window_params = [{transform_indices = @transform_0, window_bounds = array<i64: 256, 256>}, {pipeline_mode = #tpu.pipeline_mode<synchronous>, transform_indices = @transform_1, window_bounds = array<i64: 256, 32>}, {pipeline_mode = #tpu.pipeline_mode<synchronous>, transform_indices = @transform_2, window_bounds = array<i64: 1, 32>}, {transform_indices = @transform_3, window_bounds = array<i64: 256, 32>}]} {
    %c0 = arith.constant 0 : index
    %c0_0 = arith.constant 0 : index
    %0 = vector.load %arg1[%c0, %c0_0] : memref<256x256xbf16, #tpu.memory_space<vmem>>, vector<256x256xbf16>
    %c0_1 = arith.constant 0 : index
    %c0_2 = arith.constant 0 : index
    %1 = vector.load %arg2[%c0_1, %c0_2] : memref<256x32xbf16, #tpu.memory_space<vmem>>, vector<256x32xbf16>
    %cst = arith.constant dense<0.000000e+00> : vector<256x32xf32>
    %2 = tpu.matmul %0, %1, %cst {dimension_numbers = #tpu.dot_dimension_numbers<[1], [0], [0], [1], [0, 0, 1, 1], [], []>} : vector<256x256xbf16>, vector<256x32xbf16>, vector<256x32xf32> -> vector<256x32xf32>
    %c0_3 = arith.constant 0 : index
    %c0_4 = arith.constant 0 : index
    %3 = vector.load %arg3[%c0_3, %c0_4] : memref<1x32xf32, #tpu.memory_space<vmem>>, vector<1x32xf32>
    %4 = vector.broadcast %3 : vector<1x32xf32> to vector<256x32xf32>
    %5 = arith.addf %2, %4 : vector<256x32xf32>
    %cst_5 = arith.constant 0.000000e+00 : f32
    %6 = vector.broadcast %cst_5 : f32 to vector<256x32xf32>
    %7 = arith.maximumf %5, %6 : vector<256x32xf32>
    %8 = arith.truncf %7 : vector<256x32xf32> to vector<256x32xbf16>
    %c0_6 = arith.constant 0 : index
    %c0_7 = arith.constant 0 : index
    %9 = vector.load %arg4[%c0_6, %c0_7] : memref<256x32xbf16, #tpu.memory_space<vmem>>, vector<256x32xbf16>
    tpu.vector_store %arg4[%c0_6, %c0_7], %8 {strides = array<i32>} : memref<256x32xbf16, #tpu.memory_space<vmem>>, vector<256x32xbf16>,
    return
  }
  func.func @transform_0(%arg0: i32) -> (i32, i32) {
    %c0_i32 = arith.constant 0 : i32
    %c0_i32_0 = arith.constant 0 : i32
    return %arg0, %c0_i32 : i32, i32
  }
  func.func @transform_1(%arg0: i32) -> (i32, i32) {
    %c0_i32 = arith.constant 0 : i32
    %c0_i32_0 = arith.constant 0 : i32
    %c0_i32_1 = arith.constant 0 : i32
    return %c0_i32, %c0_i32_0 : i32, i32
  }
  func.func @transform_2(%arg0: i32) -> (i32, i32) {
    %c0_i32 = arith.constant 0 : i32
    %c0_i32_0 = arith.constant 0 : i32
    %c0_i32_1 = arith.constant 0 : i32
    return %c0_i32, %c0_i32_0 : i32, i32
  }
  func.func @transform_3(%arg0: i32) -> (i32, i32) {
    %c0_i32 = arith.constant 0 : i32
    %c0_i32_0 = arith.constant 0 : i32
    return %arg0, %c0_i32 : i32, i32
  }
}

module attributes {stable_mosaic.version = 11 : i64} {
  func.func @_matmul_bias_relu_kernel(%arg0: i32, %arg1: memref<80x512xbf16, #tpu.memory_space<vmem>>, %arg2: memref<512x64xbf16, #tpu.memory_space<vmem>>, %arg3: memref<1x64xf32, #tpu.memory_space<vmem>>, %arg4: memref<80x64xbf16, #tpu.memory_space<vmem>>) attributes {dimension_semantics = [#tpu.dimension_semantics<parallel>], iteration_bounds = array<i64: 3>, scalar_prefetch = 0 : i64, scratch_operands = 0 : i64, tpu.core_type = #tpu.core_type<tc>, window_params = [{transform_indices = @transform_0, window_bounds = array<i64: 80, 512>}, {pipeline_mode = #tpu.pipeline_mode<synchronous>, transform_indices = @transform_1, window_bounds = array<i64: 512, 64>}, {pipeline_mode = #tpu.pipeline_mode<synchronous>, transform_indices = @transform_2, window_bounds = array<i64: 1, 64>}, {transform_indices = @transform_3, window_bounds = array<i64: 80, 64>}]} {
    %c0 = arith.constant 0 : index
    %c0_0 = arith.constant 0 : index
    %0 = vector.load %arg1[%c0, %c0_0] : memref<80x512xbf16, #tpu.memory_space<vmem>>, vector<80x512xbf16>
    %c0_1 = arith.constant 0 : index
    %c0_2 = arith.constant 0 : index
    %1 = vector.load %arg2[%c0_1, %c0_2] : memref<512x64xbf16, #tpu.memory_space<vmem>>, vector<512x64xbf16>
    %cst = arith.constant dense<0.000000e+00> : vector<80x64xf32>
    %2 = tpu.matmul %0, %1, %cst {dimension_numbers = #tpu.dot_dimension_numbers<[1], [0], [0], [1], [0, 0, 1, 1], [], []>} : vector<80x512xbf16>, vector<512x64xbf16>, vector<80x64xf32> -> vector<80x64xf32>
    %c0_3 = arith.constant 0 : index
    %c0_4 = arith.constant 0 : index
    %3 = vector.load %arg3[%c0_3, %c0_4] : memref<1x64xf32, #tpu.memory_space<vmem>>, vector<1x64xf32>
    %4 = vector.broadcast %3 : vector<1x64xf32> to vector<80x64xf32>
    %5 = arith.addf %2, %4 : vector<80x64xf32>
    %cst_5 = arith.constant 0.000000e+00 : f32
    %6 = vector.broadcast %cst_5 : f32 to vector<80x64xf32>
    %7 = arith.maximumf %5, %6 : vector<80x64xf32>
    %8 = arith.truncf %7 : vector<80x64xf32> to vector<80x64xbf16>
    %c0_6 = arith.constant 0 : index
    %c0_7 = arith.constant 0 : index
    %9 = vector.load %arg4[%c0_6, %c0_7] : memref<80x64xbf16, #tpu.memory_space<vmem>>, vector<80x64xbf16>
    tpu.vector_store %arg4[%c0_6, %c0_7], %8 {strides = array<i32>} : memref<80x64xbf16, #tpu.memory_space<vmem>>, vector<80x64xbf16>,
    return
  }
  func.func @transform_0(%arg0: i32) -> (i32, i32) {
    %c0_i32 = arith.constant 0 : i32
    %c0_i32_0 = arith.constant 0 : i32
    return %arg0, %c0_i32 : i32, i32
  }
  func.func @transform_1(%arg0: i32) -> (i32, i32) {
    %c0_i32 = arith.constant 0 : i32
    %c0_i32_0 = arith.constant 0 : i32
    %c0_i32_1 = arith.constant 0 : i32
    return %c0_i32, %c0_i32_0 : i32, i32
  }
  func.func @transform_2(%arg0: i32) -> (i32, i32) {
    %c0_i32 = arith.constant 0 : i32
    %c0_i32_0 = arith.constant 0 : i32
    %c0_i32_1 = arith.constant 0 : i32
    return %c0_i32, %c0_i32_0 : i32, i32
  }
  func.func @transform_3(%arg0: i32) -> (i32, i32) {
    %c0_i32 = arith.constant 0 : i32
    %c0_i32_0 = arith.constant 0 : i32
    return %arg0, %c0_i32 : i32, i32
  }
}

module attributes {stable_mosaic.version = 11 : i64} {
  func.func @_matmul_bias_relu_kernel(%arg0: i32, %arg1: memref<48x576xbf16, #tpu.memory_space<vmem>>, %arg2: memref<576x32xbf16, #tpu.memory_space<vmem>>, %arg3: memref<1x32xf32, #tpu.memory_space<vmem>>, %arg4: memref<48x32xbf16, #tpu.memory_space<vmem>>) attributes {dimension_semantics = [#tpu.dimension_semantics<parallel>], iteration_bounds = array<i64: 3>, scalar_prefetch = 0 : i64, scratch_operands = 0 : i64, tpu.core_type = #tpu.core_type<tc>, window_params = [{transform_indices = @transform_0, window_bounds = array<i64: 48, 576>}, {pipeline_mode = #tpu.pipeline_mode<synchronous>, transform_indices = @transform_1, window_bounds = array<i64: 576, 32>}, {pipeline_mode = #tpu.pipeline_mode<synchronous>, transform_indices = @transform_2, window_bounds = array<i64: 1, 32>}, {transform_indices = @transform_3, window_bounds = array<i64: 48, 32>}]} {
    %c0 = arith.constant 0 : index
    %c0_0 = arith.constant 0 : index
    %0 = vector.load %arg1[%c0, %c0_0] : memref<48x576xbf16, #tpu.memory_space<vmem>>, vector<48x576xbf16>
    %c0_1 = arith.constant 0 : index
    %c0_2 = arith.constant 0 : index
    %1 = vector.load %arg2[%c0_1, %c0_2] : memref<576x32xbf16, #tpu.memory_space<vmem>>, vector<576x32xbf16>
    %cst = arith.constant dense<0.000000e+00> : vector<48x32xf32>
    %2 = tpu.matmul %0, %1, %cst {dimension_numbers = #tpu.dot_dimension_numbers<[1], [0], [0], [1], [0, 0, 1, 1], [], []>} : vector<48x576xbf16>, vector<576x32xbf16>, vector<48x32xf32> -> vector<48x32xf32>
    %c0_3 = arith.constant 0 : index
    %c0_4 = arith.constant 0 : index
    %3 = vector.load %arg3[%c0_3, %c0_4] : memref<1x32xf32, #tpu.memory_space<vmem>>, vector<1x32xf32>
    %4 = vector.broadcast %3 : vector<1x32xf32> to vector<48x32xf32>
    %5 = arith.addf %2, %4 : vector<48x32xf32>
    %cst_5 = arith.constant 0.000000e+00 : f32
    %6 = vector.broadcast %cst_5 : f32 to vector<48x32xf32>
    %7 = arith.maximumf %5, %6 : vector<48x32xf32>
    %8 = arith.truncf %7 : vector<48x32xf32> to vector<48x32xbf16>
    %c0_6 = arith.constant 0 : index
    %c0_7 = arith.constant 0 : index
    %9 = vector.load %arg4[%c0_6, %c0_7] : memref<48x32xbf16, #tpu.memory_space<vmem>>, vector<48x32xbf16>
    tpu.vector_store %arg4[%c0_6, %c0_7], %8 {strides = array<i32>} : memref<48x32xbf16, #tpu.memory_space<vmem>>, vector<48x32xbf16>,
    return
  }
  func.func @transform_0(%arg0: i32) -> (i32, i32) {
    %c0_i32 = arith.constant 0 : i32
    %c0_i32_0 = arith.constant 0 : i32
    return %arg0, %c0_i32 : i32, i32
  }
  func.func @transform_1(%arg0: i32) -> (i32, i32) {
    %c0_i32 = arith.constant 0 : i32
    %c0_i32_0 = arith.constant 0 : i32
    %c0_i32_1 = arith.constant 0 : i32
    return %c0_i32, %c0_i32_0 : i32, i32
  }
  func.func @transform_2(%arg0: i32) -> (i32, i32) {
    %c0_i32 = arith.constant 0 : i32
    %c0_i32_0 = arith.constant 0 : i32
    %c0_i32_1 = arith.constant 0 : i32
    return %c0_i32, %c0_i32_0 : i32, i32
  }
  func.func @transform_3(%arg0: i32) -> (i32, i32) {
    %c0_i32 = arith.constant 0 : i32
    %c0_i32_0 = arith.constant 0 : i32
    return %arg0, %c0_i32 : i32, i32
  }
}

module attributes {stable_mosaic.version = 11 : i64} {
  func.func @_head_kernel(%arg0: i32, %arg1: memref<2x1568xbf16, #tpu.memory_space<vmem>>, %arg2: memref<1568x512xbf16, #tpu.memory_space<vmem>>, %arg3: memref<1x512xf32, #tpu.memory_space<vmem>>, %arg4: memref<1x512xf32, #tpu.memory_space<vmem>>, %arg5: memref<1x1xf32, #tpu.memory_space<vmem>>, %arg6: memref<2x512xbf16, #tpu.memory_space<vmem>>, %arg7: memref<2x1xf32, #tpu.memory_space<vmem>>) attributes {dimension_semantics = [#tpu.dimension_semantics<parallel>], iteration_bounds = array<i64: 1>, scalar_prefetch = 0 : i64, scratch_operands = 0 : i64, tpu.core_type = #tpu.core_type<tc>, window_params = [{transform_indices = @transform_0, window_bounds = array<i64: 2, 1568>}, {pipeline_mode = #tpu.pipeline_mode<synchronous>, transform_indices = @transform_1, window_bounds = array<i64: 1568, 512>}, {pipeline_mode = #tpu.pipeline_mode<synchronous>, transform_indices = @transform_2, window_bounds = array<i64: 1, 512>}, {pipeline_mode = #tpu.pipeline_mode<synchronous>, transform_indices = @transform_3, window_bounds = array<i64: 1, 512>}, {pipeline_mode = #tpu.pipeline_mode<synchronous>, transform_indices = @transform_4, window_bounds = array<i64: 1, 1>}, {transform_indices = @transform_5, window_bounds = array<i64: 2, 512>}, {transform_indices = @transform_6, window_bounds = array<i64: 2, 1>}]} {
    %c0 = arith.constant 0 : index
    %c0_0 = arith.constant 0 : index
    %0 = vector.load %arg1[%c0, %c0_0] : memref<2x1568xbf16, #tpu.memory_space<vmem>>, vector<2x1568xbf16>
    %c0_1 = arith.constant 0 : index
    %c0_2 = arith.constant 0 : index
    %1 = vector.load %arg2[%c0_1, %c0_2] : memref<1568x512xbf16, #tpu.memory_space<vmem>>, vector<1568x512xbf16>
    %cst = arith.constant dense<0.000000e+00> : vector<2x512xf32>
    %2 = tpu.matmul %0, %1, %cst {dimension_numbers = #tpu.dot_dimension_numbers<[1], [0], [0], [1], [0, 0, 1, 1], [], []>} : vector<2x1568xbf16>, vector<1568x512xbf16>, vector<2x512xf32> -> vector<2x512xf32>
    %c0_3 = arith.constant 0 : index
    %c0_4 = arith.constant 0 : index
    %3 = vector.load %arg3[%c0_3, %c0_4] : memref<1x512xf32, #tpu.memory_space<vmem>>, vector<1x512xf32>
    %4 = vector.broadcast %3 : vector<1x512xf32> to vector<2x512xf32>
    %5 = arith.addf %2, %4 : vector<2x512xf32>
    %cst_5 = arith.constant 0.000000e+00 : f32
    %6 = vector.broadcast %cst_5 : f32 to vector<2x512xf32>
    %7 = arith.maximumf %5, %6 : vector<2x512xf32>
    %8 = arith.truncf %7 : vector<2x512xf32> to vector<2x512xbf16>
    %c0_6 = arith.constant 0 : index
    %c0_7 = arith.constant 0 : index
    %9 = vector.load %arg6[%c0_6, %c0_7] : memref<2x512xbf16, #tpu.memory_space<vmem>>, vector<2x512xbf16>
    tpu.vector_store %arg6[%c0_6, %c0_7], %8 {strides = array<i32>} : memref<2x512xbf16, #tpu.memory_space<vmem>>, vector<2x512xbf16>,
    %c0_8 = arith.constant 0 : index
    %c0_9 = arith.constant 0 : index
    %10 = vector.load %arg4[%c0_8, %c0_9] : memref<1x512xf32, #tpu.memory_space<vmem>>, vector<1x512xf32>
    %11 = vector.broadcast %10 : vector<1x512xf32> to vector<2x512xf32>
    %12 = arith.mulf %7, %11 : vector<2x512xf32>
    %cst_10 = arith.constant dense<0.000000e+00> : vector<2xf32>
    %13 = vector.multi_reduction <add>, %12, %cst_10 [1] : vector<2x512xf32> to vector<2xf32>
    %14 = vector.shape_cast %13 : vector<2xf32> to vector<2x1xf32>
    %c0_11 = arith.constant 0 : index
    %c0_12 = arith.constant 0 : index
    %15 = vector.load %arg5[%c0_11, %c0_12] : memref<1x1xf32, #tpu.memory_space<vmem>>, vector<1x1xf32>
    %16 = vector.broadcast %15 : vector<1x1xf32> to vector<2x1xf32>
    %17 = arith.addf %14, %16 : vector<2x1xf32>
    %c0_13 = arith.constant 0 : index
    %c0_14 = arith.constant 0 : index
    %18 = vector.load %arg7[%c0_13, %c0_14] : memref<2x1xf32, #tpu.memory_space<vmem>>, vector<2x1xf32>
    tpu.vector_store %arg7[%c0_13, %c0_14], %17 {strides = array<i32>} : memref<2x1xf32, #tpu.memory_space<vmem>>, vector<2x1xf32>,
    return
  }
  func.func @transform_0(%arg0: i32) -> (i32, i32) {
    %c0_i32 = arith.constant 0 : i32
    %c0_i32_0 = arith.constant 0 : i32
    return %arg0, %c0_i32 : i32, i32
  }
  func.func @transform_1(%arg0: i32) -> (i32, i32) {
    %c0_i32 = arith.constant 0 : i32
    %c0_i32_0 = arith.constant 0 : i32
    %c0_i32_1 = arith.constant 0 : i32
    return %c0_i32, %c0_i32_0 : i32, i32
  }
  func.func @transform_2(%arg0: i32) -> (i32, i32) {
    %c0_i32 = arith.constant 0 : i32
    %c0_i32_0 = arith.constant 0 : i32
    %c0_i32_1 = arith.constant 0 : i32
    return %c0_i32, %c0_i32_0 : i32, i32
  }
  func.func @transform_3(%arg0: i32) -> (i32, i32) {
    %c0_i32 = arith.constant 0 : i32
    %c0_i32_0 = arith.constant 0 : i32
    %c0_i32_1 = arith.constant 0 : i32
    return %c0_i32, %c0_i32_0 : i32, i32
  }
  func.func @transform_4(%arg0: i32) -> (i32, i32) {
    %c0_i32 = arith.constant 0 : i32
    %c0_i32_0 = arith.constant 0 : i32
    %c0_i32_1 = arith.constant 0 : i32
    return %c0_i32, %c0_i32_0 : i32, i32
  }
  func.func @transform_5(%arg0: i32) -> (i32, i32) {
    %c0_i32 = arith.constant 0 : i32
    %c0_i32_0 = arith.constant 0 : i32
    return %arg0, %c0_i32 : i32, i32
  }
  func.func @transform_6(%arg0: i32) -> (i32, i32) {
    %c0_i32 = arith.constant 0 : i32
    %c0_i32_0 = arith.constant 0 : i32
    return %arg0, %c0_i32 : i32, i32
  }
}

</mosaic_0001>

<llo_original>
// kernel: cnn_policy_forward.4
$region0: #{cnn_policy_forward.4}
  #allocation0 [shape = 'u32[]', space=smem, size = 0x4, offset = 0x4, fixed_abs, tag = 'smem constant byte address 0x4 - core index']
  #allocation1 [shape = 'u32[144,128]{1,0:T(1,128)}', space=vmem, size = 0x12000, scoped, tag = 'internal scratch']
  %s0 = inlined_call_operand.vmem [shape: bf16[800,256], index: 0, kind: input, shape index: {}]
  %s1 = inlined_call_operand.vmem [shape: bf16[256,32], index: 1, kind: input, shape index: {}]
  %s2 = inlined_call_operand.vmem [shape: f32[1,32], index: 2, kind: input, shape index: {}]
  %s3 = inlined_call_operand.vmem [shape: bf16[800,32], index: 3, kind: output, shape index: {}]
  %s4 = sld [smem:[#allocation0]]
  $region89: #{cnn_policy_forward.4} parent=0
    _
  %s6 = ssub.s32 1, %s4
  %s7 = scalar_select 0, %s6, %s4
  $region1: #{cnn_policy_forward.4} parent=0
    #allocation2 [shape = 'u8[131072]{0}', space=vmem, size = 0x20000, scoped, tag = 'output window, operand 0']
    loop: start=0, step=1, limit=6
    $region2: #{cnn_policy_forward.4} parent=1 // loop_pre_header
      _
    $region3: #{cnn_policy_forward.4} parent=1 // loop_header
      %s9 = sphi 0, %s13
      %p10 = scmp.ge.s32.totalorder %s9, 6
      %s19 = sphi 0, %s21
      %s22 = sphi 0, %s19
      %s23 = sphi 0, %s22
      %s39 = sphi 0, %s23
      %s43 = sphi 0, %s43
      %s45 = sphi 0, %s43
      %s46 = sphi 0, %s45
      %s60 = sphi 0, %s46
      %s64 = sphi 0, %s64
      %s66 = sphi 0, %s64
      %s67 = sphi 0, %s66
      %s81 = sphi 0, %s67
      %s87 = sphi 0, %s89
      %s90 = sphi 0, %s87
      %s91 = sphi 0, %s90
      %s107 = sphi 0, %s91
    $region4: #{cnn_policy_forward.4} parent=1 // loop_header_branch
      %12 = sbr.rel (%p10) target = $region8
    $region5: #{cnn_policy_forward.4} parent=1 // loop_body
      %s14 = ssub.s32 %s9, 1
      %s15 = ssub.s32 %s9, 2
      %s16 = sadd.s32 %s9, 1
      %s17 = ssub.s32 %s9, %s16
      %p18 = scmp.eq.s32.totalorder %s17, 0
      %s20 = sadd.s32 %s19, 1
      %s21 = scalar_select %p18, %s19, %s20
      %p24 = pneg %p18
      %p25 = scmp.eq.s32.totalorder %s9, 3
      %p26 = por %p24, %p25
      %p27 = scmp.ne.s32.totalorder %s19, %s22
      %p28 = scmp.eq.s32.totalorder %s9, 0
      %p29 = por %p27, %p28
      %p30 = scmp.ne.s32.totalorder %s19, %s22
      %p31 = scmp.eq.s32.totalorder %s14, 3
      %p32 = por %p30, %p31
      %p33 = scmp.ne.s32.totalorder %s22, %s23
      %p34 = scmp.eq.s32.totalorder %s14, 0
      %p35 = por %p33, %p34
      %p36 = scmp.ne.s32.totalorder %s22, %s23
      %p37 = scmp.eq.s32.totalorder %s15, 3
      %p38 = por %p36, %p37
      %p40 = scmp.ne.s32.totalorder %s23, %s39
      %p41 = scmp.eq.s32.totalorder %s15, 0
      %p42 = por %p40, %p41
      %s44 = sadd.s32 %s43, 1
      %p47 = scmp.eq.s32.totalorder %s9, 3
      %p48 = scmp.ne.s32.totalorder %s43, %s45
      %p49 = scmp.eq.s32.totalorder %s9, 0
      %p50 = por %p48, %p49
      %p51 = scmp.ne.s32.totalorder %s43, %s45
      %p52 = scmp.eq.s32.totalorder %s14, 3
      %p53 = por %p51, %p52
      %p54 = scmp.ne.s32.totalorder %s45, %s46
      %p55 = scmp.eq.s32.totalorder %s14, 0
      %p56 = por %p54, %p55
      %p57 = scmp.ne.s32.totalorder %s45, %s46
      %p58 = scmp.eq.s32.totalorder %s15, 3
      %p59 = por %p57, %p58
      %p61 = scmp.ne.s32.totalorder %s46, %s60
      %p62 = scmp.eq.s32.totalorder %s15, 0
      %p63 = por %p61, %p62
      %s65 = sadd.s32 %s64, 1
      %p68 = scmp.eq.s32.totalorder %s9, 3
      %p69 = scmp.ne.s32.totalorder %s64, %s66
      %p70 = scmp.eq.s32.totalorder %s9, 0
      %p71 = por %p69, %p70
      %p72 = scmp.ne.s32.totalorder %s64, %s66
      %p73 = scmp.eq.s32.totalorder %s14, 3
      %p74 = por %p72, %p73
      %p75 = scmp.ne.s32.totalorder %s66, %s67
      %p76 = scmp.eq.s32.totalorder %s14, 0
      %p77 = por %p75, %p76
      %p78 = scmp.ne.s32.totalorder %s66, %s67
      %p79 = scmp.eq.s32.totalorder %s15, 3
      %p80 = por %p78, %p79
      %p82 = scmp.ne.s32.totalorder %s67, %s81
      %p83 = scmp.eq.s32.totalorder %s15, 0
      %p84 = por %p82, %p83
      %s85 = ssub.s32 %s9, %s16
      %p86 = scmp.eq.s32.totalorder %s85, 0
      %s88 = sadd.s32 %s87, 1
      %s89 = scalar_select %p86, %s87, %s88
      %p92 = pneg %p86
      %p93 = scmp.eq.s32.totalorder %s9, 3
      %p94 = por %p92, %p93
      %p95 = scmp.ne.s32.totalorder %s87, %s90
      %p96 = scmp.eq.s32.totalorder %s9, 0
      %p97 = por %p95, %p96
      %p98 = scmp.ne.s32.totalorder %s87, %s90
      %p99 = scmp.eq.s32.totalorder %s14, 3
      %p100 = por %p98, %p99
      %p101 = scmp.ne.s32.totalorder %s90, %s91
      %p102 = scmp.eq.s32.totalorder %s14, 0
      %p103 = por %p101, %p102
      %p104 = scmp.ne.s32.totalorder %s90, %s91
      %p105 = scmp.eq.s32.totalorder %s15, 3
      %p106 = por %p104, %p105
      %p108 = scmp.ne.s32.totalorder %s91, %s107
      %p109 = scmp.eq.s32.totalorder %s15, 0
      %p110 = por %p108, %p109
      %p111 = scmp.le.s32.totalorder 1, %s9
      %p112 = scmp.lt.s32.totalorder %s9, 5
      %p113 = pnand %p111, %p112
      %p114 = pneg %p113
      // Predicated region
      $region9: #{cnn_policy_forward.4} parent=5 // pred_check
        _
      $region10: #{cnn_policy_forward.4} parent=5 // pred_check_branch
        %116 = sbr.rel (%p113) target = $region12
      $region11: #{cnn_policy_forward.4} parent=5 // pred_region
        %s117 = ssub.s32 %s9, 1
        // Predicated region
        $region13: #{cnn_policy_forward.4} parent=11 // pred_check
          %p118 = pneg %p56
        $region14: #{cnn_policy_forward.4} parent=11 // pred_check_branch
          %120 = sbr.rel (%p118) target = $region16
        $region15: #{cnn_policy_forward.4} parent=11 // pred_region
          _
        $region16: #{cnn_policy_forward.4} parent=11 // pred_fallthru
          _
        // Predicated region
        $region17: #{cnn_policy_forward.4} parent=11 // pred_check
          %p121 = pneg %p77
        $region18: #{cnn_policy_forward.4} parent=11 // pred_check_branch
          %123 = sbr.rel (%p121) target = $region20
        $region19: #{cnn_policy_forward.4} parent=11 // pred_region
          _
        $region20: #{cnn_policy_forward.4} parent=11 // pred_fallthru
          _
      $region12: #{cnn_policy_forward.4} parent=5 // pred_fallthru
        _
      %p124 = scmp.lt.s32.totalorder %s9, 4
      // Predicated region
      $region21: #{cnn_policy_forward.4} parent=5 // pred_check
        %p125 = pneg %p124
      $region22: #{cnn_policy_forward.4} parent=5 // pred_check_branch
        %127 = sbr.rel (%p125) target = $region24
      $region23: #{cnn_policy_forward.4} parent=5 // pred_region
        // Predicated region
        $region25: #{cnn_policy_forward.4} parent=23 // pred_check
          %p128 = pneg %p29
        $region26: #{cnn_policy_forward.4} parent=23 // pred_check_branch
          %130 = sbr.rel (%p128) target = $region28
        $region27: #{cnn_policy_forward.4} parent=23 // pred_region
          %s131 = smul.u32 32, %s9
          %s132 = ssub.s32 100, %s131
          %p133 = scmp.lt.s32.totalorder %s132, 32
          %s134 = scalar_select %p133, %s132, 32
          %s135 = smul.u32 64, %s134
          %s136 = smul.u32 %s135, 2
          %p137 = scmp.lt.s32.totalorder %s131, 99
          %s138 = scalar_select %p137, %s131, 99
          %s139 = smul.addr %s138, 2
          %s140 = smul.addr %s139, 4
          %s141 = scalar_lea.vmem %s0, %s140
          %s142 = smul.u32 32, %s9
          %s143 = ssub.s32 100, %s142
          %p144 = scmp.lt.s32.totalorder %s143, 32
          %s145 = scalar_select %p144, %s143, 32
          %s146 = smul.u32 64, %s145
          %s147 = smul.u32 %s146, 2
        $region28: #{cnn_policy_forward.4} parent=23 // pred_fallthru
          _
      $region24: #{cnn_policy_forward.4} parent=5 // pred_fallthru
        _
      %p148 = scmp.le.s32.totalorder 1, %s9
      %p149 = scmp.lt.s32.totalorder %s9, 5
      %p150 = pnand %p148, %p149
      %p151 = pneg %p150
      // Predicated region
      $region29: #{cnn_policy_forward.4} parent=5 // pred_check
        _
      $region30: #{cnn_policy_forward.4} parent=5 // pred_check_branch
        %153 = sbr.rel (%p150) target = $region32
      $region31: #{cnn_policy_forward.4} parent=5 // pred_region
        %s154 = ssub.s32 %s9, 1
        %s155 = smul.u32 32, %s14
        %s156 = ssub.s32 100, %s155
        %p157 = scmp.lt.s32.totalorder %s156, 32
        %s158 = scalar_select %p157, %s156, 32
        %s159 = smul.u32 64, %s158
        %s160 = smul.u32 %s159, 2
        %p161 = scmp.lt.s32.totalorder %s155, 99
        %s162 = scalar_select %p161, %s155, 99
        %s163 = smul.addr %s162, 2
        %s164 = smul.addr %s163, 4
        %s165 = scalar_lea.vmem %s0, %s164
        %p166 = pneg %p35
        %p167 = pneg %p32
        %p168 = pneg %p56
        %p169 = pneg %p53
        %p170 = pneg %p77
        %p171 = pneg %p74
        %p172 = pneg %p103
        %p173 = pneg %p100
        %s174 = sand.u32 %s90, 1
        %s175 = sand.u32 %s90, 1
        %s176 = smul.addr %s175, 128
        %s177 = scalar_lea.vmem [#allocation2], %s176
        %s178 = smul.u32 32, %s14
        %s179 = ssub.s32 100, %s178
        %p180 = scmp.lt.s32.totalorder %s179, 32
        %s181 = scalar_select %p180, %s179, 32
        %s182 = smul.u32 64, %s181
        %s183 = smul.u32 %s182, 2
        %p184 = scmp.lt.s32.totalorder %s178, 99
        %s185 = scalar_select %p184, %s178, 99
        %s186 = smul.addr %s185, 2
        %s187 = smul.addr %s186, 4
        %s188 = scalar_lea.vmem %s0, %s187
        %s189 = smul.u32 32, %s14
        %s190 = ssub.s32 100, %s189
        %p191 = scmp.lt.s32.totalorder %s190, 32
        %s192 = scalar_select %p191, %s190, 32
        %s193 = smul.u32 64, %s192
        %s194 = smul.u32 %s193, 2
        %s195 = smul.u32 32, %s14
        %s196 = ssub.s32 100, %s195
        %p197 = scmp.lt.s32.totalorder %s196, 32
        %s198 = scalar_select %p197, %s196, 32
        %s199 = smul.u32 64, %s198
        %v201 = vld [vmem:[%s188] sm:$0xff]
        %v202 = vld [vmem:[%s188 + $0x8] sm:$0xff]
        %v203 = vld [vmem:[%s188 + $0x10] sm:$0xff]
        %v204 = vld [vmem:[%s188 + $0x18] sm:$0xff]
        %v205 = vld [vmem:[%s188 + $0x20] sm:$0xff]
        %v206 = vld [vmem:[%s188 + $0x28] sm:$0xff]
        %v207 = vld [vmem:[%s188 + $0x30] sm:$0xff]
        %v208 = vld [vmem:[%s188 + $0x38] sm:$0xff]
        %v209 = vld [vmem:[%s188 + $0x40] sm:$0xff]
        %v210 = vld [vmem:[%s188 + $0x48] sm:$0xff]
        %v211 = vld [vmem:[%s188 + $0x50] sm:$0xff]
        %v212 = vld [vmem:[%s188 + $0x58] sm:$0xff]
        %v213 = vld [vmem:[%s188 + $0x60] sm:$0xff]
        %v214 = vld [vmem:[%s188 + $0x68] sm:$0xff]
        %v215 = vld [vmem:[%s188 + $0x70] sm:$0xff]
        %v216 = vld [vmem:[%s188 + $0x78] sm:$0xff]
        %v217 = vld [vmem:[%s188 + $0x80] sm:$0xff]
        %v218 = vld [vmem:[%s188 + $0x88] sm:$0xff]
        %v219 = vld [vmem:[%s188 + $0x90] sm:$0xff]
        %v220 = vld [vmem:[%s188 + $0x98] sm:$0xff]
        %v221 = vld [vmem:[%s188 + $0xa0] sm:$0xff]
        %v222 = vld [vmem:[%s188 + $0xa8] sm:$0xff]
        %v223 = vld [vmem:[%s188 + $0xb0] sm:$0xff]
        %v224 = vld [vmem:[%s188 + $0xb8] sm:$0xff]
        %v225 = vld [vmem:[%s188 + $0xc0] sm:$0xff]
        %v226 = vld [vmem:[%s188 + $0xc8] sm:$0xff]
        %v227 = vld [vmem:[%s188 + $0xd0] sm:$0xff]
        %v228 = vld [vmem:[%s188 + $0xd8] sm:$0xff]
        %v229 = vld [vmem:[%s188 + $0xe0] sm:$0xff]
        %v230 = vld [vmem:[%s188 + $0xe8] sm:$0xff]
        %v231 = vld [vmem:[%s188 + $0xf0] sm:$0xff]
        %v232 = vld [vmem:[%s188 + $0xf8] sm:$0xff]
        %v233 = vld [vmem:[%s1] sm:$0xf]
        %v234 = vld [vmem:[%s1 + $0x4] sm:$0xf]
        %v235 = vld [vmem:[%s1 + $0x8] sm:$0xf]
        %v236 = vld [vmem:[%s1 + $0xc] sm:$0xf]
        %v237 = vld [vmem:[%s1 + $0x10] sm:$0xf]
        %v238 = vld [vmem:[%s1 + $0x14] sm:$0xf]
        %v239 = vld [vmem:[%s1 + $0x18] sm:$0xf]
        %v240 = vld [vmem:[%s1 + $0x1c] sm:$0xf]
        %v241 = vld [vmem:[%s1 + $0x20] sm:$0xf]
        %v242 = vld [vmem:[%s1 + $0x24] sm:$0xf]
        %v243 = vld [vmem:[%s1 + $0x28] sm:$0xf]
        %v244 = vld [vmem:[%s1 + $0x2c] sm:$0xf]
        %v245 = vld [vmem:[%s1 + $0x30] sm:$0xf]
        %v246 = vld [vmem:[%s1 + $0x34] sm:$0xf]
        %v247 = vld [vmem:[%s1 + $0x38] sm:$0xf]
        %v248 = vld [vmem:[%s1 + $0x3c] sm:$0xf]
        %v249 = vld [vmem:[%s1 + $0x40] sm:$0xf]
        %v250 = vld [vmem:[%s1 + $0x44] sm:$0xf]
        %v251 = vld [vmem:[%s1 + $0x48] sm:$0xf]
        %v252 = vld [vmem:[%s1 + $0x4c] sm:$0xf]
        %v253 = vld [vmem:[%s1 + $0x50] sm:$0xf]
        %v254 = vld [vmem:[%s1 + $0x54] sm:$0xf]
        %v255 = vld [vmem:[%s1 + $0x58] sm:$0xf]
        %v256 = vld [vmem:[%s1 + $0x5c] sm:$0xf]
        %v257 = vld [vmem:[%s1 + $0x60] sm:$0xf]
        %v258 = vld [vmem:[%s1 + $0x64] sm:$0xf]
        %v259 = vld [vmem:[%s1 + $0x68] sm:$0xf]
        %v260 = vld [vmem:[%s1 + $0x6c] sm:$0xf]
        %v261 = vld [vmem:[%s1 + $0x70] sm:$0xf]
        %v262 = vld [vmem:[%s1 + $0x74] sm:$0xf]
        %v263 = vld [vmem:[%s1 + $0x78] sm:$0xf]
        %v264 = vld [vmem:[%s1 + $0x7c] sm:$0xf]
        %v265 = vld [vmem:[%s2] sm:$0x1]
        %v267 = vlaneseq
        %v268 = vshrl.u32 %v267, 7
        %v269 = vsub.s32 0, %v268
        %v270 = vrot.slane %v265, %v269
        %v304 = vunpack.c.l.b16 %v201
        %v305 = vunpack.c.h.b16 %v201
        %v306 = vunpack.c.l.b16 %v202
        %v307 = vunpack.c.h.b16 %v202
        %v308 = vunpack.c.l.b16 %v203
        %v309 = vunpack.c.h.b16 %v203
        %v310 = vunpack.c.l.b16 %v204
        %v311 = vunpack.c.h.b16 %v204
        %v312 = vunpack.c.l.b16 %v205
        %v313 = vunpack.c.h.b16 %v205
        %v314 = vunpack.c.l.b16 %v206
        %v315 = vunpack.c.h.b16 %v206
        %v316 = vunpack.c.l.b16 %v207
        %v317 = vunpack.c.h.b16 %v207
        %v318 = vunpack.c.l.b16 %v208
        %v319 = vunpack.c.h.b16 %v208
        %v320 = vunpack.c.l.b16 %v209
        %v321 = vunpack.c.h.b16 %v209
        %v322 = vunpack.c.l.b16 %v210
        %v323 = vunpack.c.h.b16 %v210
        %v324 = vunpack.c.l.b16 %v211
        %v325 = vunpack.c.h.b16 %v211
        %v326 = vunpack.c.l.b16 %v212
        %v327 = vunpack.c.h.b16 %v212
        %v328 = vunpack.c.l.b16 %v213
        %v329 = vunpack.c.h.b16 %v213
        %v330 = vunpack.c.l.b16 %v214
        %v331 = vunpack.c.h.b16 %v214
        %v332 = vunpack.c.l.b16 %v215
        %v333 = vunpack.c.h.b16 %v215
        %v334 = vunpack.c.l.b16 %v216
        %v335 = vunpack.c.h.b16 %v216
        %v336 = vunpack.c.l.b16 %v217
        %v337 = vunpack.c.h.b16 %v217
        %v338 = vunpack.c.l.b16 %v218
        %v339 = vunpack.c.h.b16 %v218
        %v340 = vunpack.c.l.b16 %v219
        %v341 = vunpack.c.h.b16 %v219
        %v342 = vunpack.c.l.b16 %v220
        %v343 = vunpack.c.h.b16 %v220
        %v344 = vunpack.c.l.b16 %v221
        %v345 = vunpack.c.h.b16 %v221
        %v346 = vunpack.c.l.b16 %v222
        %v347 = vunpack.c.h.b16 %v222
        %v348 = vunpack.c.l.b16 %v223
        %v349 = vunpack.c.h.b16 %v223
        %v350 = vunpack.c.l.b16 %v224
        %v351 = vunpack.c.h.b16 %v224
        %v352 = vunpack.c.l.b16 %v225
        %v353 = vunpack.c.h.b16 %v225
        %v354 = vunpack.c.l.b16 %v226
        %v355 = vunpack.c.h.b16 %v226
        %v356 = vunpack.c.l.b16 %v227
        %v357 = vunpack.c.h.b16 %v227
        %v358 = vunpack.c.l.b16 %v228
        %v359 = vunpack.c.h.b16 %v228
        %v360 = vunpack.c.l.b16 %v229
        %v361 = vunpack.c.h.b16 %v229
        %v362 = vunpack.c.l.b16 %v230
        %v363 = vunpack.c.h.b16 %v230
        %v364 = vunpack.c.l.b16 %v231
        %v365 = vunpack.c.h.b16 %v231
        %v366 = vunpack.c.l.b16 %v232
        %v367 = vunpack.c.h.b16 %v232
        %v368 = vpack.c.b16 %v306, %v304
        %v369 = vpack.c.b16 %v307, %v305
        %v370 = vpack.c.b16 %v310, %v308
        %v371 = vpack.c.b16 %v311, %v309
        %v372 = vpack.c.b16 %v314, %v312
        %v373 = vpack.c.b16 %v315, %v313
        %v374 = vpack.c.b16 %v318, %v316
        %v375 = vpack.c.b16 %v319, %v317
        %v376 = vpack.c.b16 %v322, %v320
        %v377 = vpack.c.b16 %v323, %v321
        %v378 = vpack.c.b16 %v326, %v324
        %v379 = vpack.c.b16 %v327, %v325
        %v380 = vpack.c.b16 %v330, %v328
        %v381 = vpack.c.b16 %v331, %v329
        %v382 = vpack.c.b16 %v334, %v332
        %v383 = vpack.c.b16 %v335, %v333
        %v384 = vpack.c.b16 %v338, %v336
        %v385 = vpack.c.b16 %v339, %v337
        %v386 = vpack.c.b16 %v342, %v340
        %v387 = vpack.c.b16 %v343, %v341
        %v388 = vpack.c.b16 %v346, %v344
        %v389 = vpack.c.b16 %v347, %v345
        %v390 = vpack.c.b16 %v350, %v348
        %v391 = vpack.c.b16 %v351, %v349
        %v392 = vpack.c.b16 %v354, %v352
        %v393 = vpack.c.b16 %v355, %v353
        %v394 = vpack.c.b16 %v358, %v356
        %v395 = vpack.c.b16 %v359, %v357
        %v396 = vpack.c.b16 %v362, %v360
        %v397 = vpack.c.b16 %v363, %v361
        %v398 = vpack.c.b16 %v366, %v364
        %v399 = vpack.c.b16 %v367, %v365
        %v464 = vunpack.c.l.b16 %v233
        %v465 = vunpack.c.l.b16 %v234
        %v466 = vunpack.c.l.b16 %v235
        %v467 = vunpack.c.l.b16 %v236
        %v468 = vunpack.c.l.b16 %v237
        %v469 = vunpack.c.l.b16 %v238
        %v470 = vunpack.c.l.b16 %v239
        %v471 = vunpack.c.l.b16 %v240
        %v472 = vunpack.c.l.b16 %v241
        %v473 = vunpack.c.l.b16 %v242
        %v474 = vunpack.c.l.b16 %v243
        %v475 = vunpack.c.l.b16 %v244
        %v476 = vunpack.c.l.b16 %v245
        %v477 = vunpack.c.l.b16 %v246
        %v478 = vunpack.c.l.b16 %v247
        %v479 = vunpack.c.l.b16 %v248
        %v480 = vunpack.c.l.b16 %v249
        %v481 = vunpack.c.l.b16 %v250
        %v482 = vunpack.c.l.b16 %v251
        %v483 = vunpack.c.l.b16 %v252
        %v484 = vunpack.c.l.b16 %v253
        %v485 = vunpack.c.l.b16 %v254
        %v486 = vunpack.c.l.b16 %v255
        %v487 = vunpack.c.l.b16 %v256
        %v488 = vunpack.c.l.b16 %v257
        %v489 = vunpack.c.l.b16 %v258
        %v490 = vunpack.c.l.b16 %v259
        %v491 = vunpack.c.l.b16 %v260
        %v492 = vunpack.c.l.b16 %v261
        %v493 = vunpack.c.l.b16 %v262
        %v494 = vunpack.c.l.b16 %v263
        %v495 = vunpack.c.l.b16 %v264
        %v496 = vpack.c.b16 %v465, %v464
        %v497 = vpack.c.b16 %v467, %v466
        %v498 = vpack.c.b16 %v469, %v468
        %v499 = vpack.c.b16 %v471, %v470
        %v500 = vpack.c.b16 %v473, %v472
        %v501 = vpack.c.b16 %v475, %v474
        %v502 = vpack.c.b16 %v477, %v476
        %v503 = vpack.c.b16 %v479, %v478
        %v504 = vpack.c.b16 %v481, %v480
        %v505 = vpack.c.b16 %v483, %v482
        %v506 = vpack.c.b16 %v485, %v484
        %v507 = vpack.c.b16 %v487, %v486
        %v508 = vpack.c.b16 %v489, %v488
        %v509 = vpack.c.b16 %v491, %v490
        %v510 = vpack.c.b16 %v493, %v492
        %v511 = vpack.c.b16 %v495, %v494
        %528 = vmatprep.subr.bf16.mxu0 0
        %529 = vmatpush1.bf16.msra.mxu0 %v503
        %530 = vmatprep.subr.bf16.mxu0 0
        %531 = vmatpush1.bf16.msra.mxu0 %v502
        %532 = vmatprep.subr.bf16.mxu0 0
        %533 = vmatpush1.bf16.msra.mxu0 %v501
        %534 = vmatprep.subr.bf16.mxu0 0
        %535 = vmatpush1.bf16.msra.mxu0 %v500
        %536 = vmatprep.subr.bf16.mxu0 0
        %537 = vmatpush1.bf16.msra.mxu0 %v499
        %538 = vmatprep.subr.bf16.mxu0 0
        %539 = vmatpush1.bf16.msra.mxu0 %v498
        %540 = vmatprep.subr.bf16.mxu0 0
        %541 = vmatpush1.bf16.msra.mxu0 %v497
        %542 = vmatprep.subr.bf16.mxu0 0
        %543 = vmatpush1.bf16.msra.mxu0 %v496
        %544 = vmatprep.subr.bf16.mxu0 0
        %545 = vmatpush2.bf16.msra.mxu0 %v511
        %546 = vmatprep.subr.bf16.mxu0 0
        %547 = vmatpush2.bf16.msra.mxu0 %v510
        %548 = vmatprep.subr.bf16.mxu0 0
        %549 = vmatpush2.bf16.msra.mxu0 %v509
        %550 = vmatprep.subr.bf16.mxu0 0
        %551 = vmatpush2.bf16.msra.mxu0 %v508
        %552 = vmatprep.subr.bf16.mxu0 0
        %553 = vmatpush2.bf16.msra.mxu0 %v507
        %554 = vmatprep.subr.bf16.mxu0 0
        %555 = vmatpush2.bf16.msra.mxu0 %v506
        %556 = vmatprep.subr.bf16.mxu0 0
        %557 = vmatpush2.bf16.msra.mxu0 %v505
        %558 = vmatprep.subr.bf16.mxu0 0
        %559 = vmatpush2.bf16.msra.mxu0 %v504
        %560 = vmatprep.mubr.bf16.mxu0 %v369
        %561 = vmatmul.mubr.bf16.gmra.mxu0 %v368
        %v562 = vpop.f32.mrf.mxu0
        %v563 = vadd.f32 %v270, %v562
        %v564 = vpop.f32.mrf.mxu0
        %v565 = vpop.f32.mrf.mxu0
        %v566 = vadd.f32 %v270, %v565
        %v567 = vpop.f32.mrf.mxu0
        %568 = vmatprep.mubr.bf16.mxu0 %v371
        %569 = vmatmul.mubr.bf16.gmra.mxu0 %v370
        %v570 = vpop.f32.mrf.mxu0
        %v571 = vadd.f32 %v270, %v570
        %v572 = vpop.f32.mrf.mxu0
        %v573 = vpop.f32.mrf.mxu0
        %v574 = vadd.f32 %v270, %v573
        %v575 = vpop.f32.mrf.mxu0
        %576 = vmatprep.mubr.bf16.mxu0 %v373
        %577 = vmatmul.mubr.bf16.gmra.mxu0 %v372
        %v578 = vpop.f32.mrf.mxu0
        %v579 = vadd.f32 %v270, %v578
        %v580 = vpop.f32.mrf.mxu0
        %v581 = vpop.f32.mrf.mxu0
        %v582 = vadd.f32 %v270, %v581
        %v583 = vpop.f32.mrf.mxu0
        %584 = vmatprep.mubr.bf16.mxu0 %v375
        %585 = vmatmul.mubr.bf16.gmra.mxu0 %v374
        %v586 = vpop.f32.mrf.mxu0
        %v587 = vadd.f32 %v270, %v586
        %v588 = vpop.f32.mrf.mxu0
        %v589 = vpop.f32.mrf.mxu0
        %v590 = vadd.f32 %v270, %v589
        %v591 = vpop.f32.mrf.mxu0
        %592 = vmatprep.mubr.bf16.mxu0 %v377
        %593 = vmatmul.mubr.bf16.gmra.mxu0 %v376
        %v594 = vpop.f32.mrf.mxu0
        %v595 = vadd.f32 %v270, %v594
        %v596 = vpop.f32.mrf.mxu0
        %v597 = vpop.f32.mrf.mxu0
        %v598 = vadd.f32 %v270, %v597
        %v599 = vpop.f32.mrf.mxu0
        %600 = vmatprep.mubr.bf16.mxu0 %v379
        %601 = vmatmul.mubr.bf16.gmra.mxu0 %v378
        %v602 = vpop.f32.mrf.mxu0
        %v603 = vadd.f32 %v270, %v602
        %v604 = vpop.f32.mrf.mxu0
        %v605 = vpop.f32.mrf.mxu0
        %v606 = vadd.f32 %v270, %v605
        %v607 = vpop.f32.mrf.mxu0
        %608 = vmatprep.mubr.bf16.mxu0 %v381
        %609 = vmatmul.mubr.bf16.gmra.mxu0 %v380
        %v610 = vpop.f32.mrf.mxu0
        %v611 = vadd.f32 %v270, %v610
        %v612 = vpop.f32.mrf.mxu0
        %v613 = vpop.f32.mrf.mxu0
        %v614 = vadd.f32 %v270, %v613
        %v615 = vpop.f32.mrf.mxu0
        %616 = vmatprep.mubr.bf16.mxu0 %v383
        %617 = vmatmul.mubr.bf16.gmra.mxu0 %v382
        %v618 = vpop.f32.mrf.mxu0
        %v619 = vadd.f32 %v270, %v618
        %v620 = vpop.f32.mrf.mxu0
        %v621 = vpop.f32.mrf.mxu0
        %v622 = vadd.f32 %v270, %v621
        %v623 = vpop.f32.mrf.mxu0
        %624 = vmatprep.mubr.bf16.mxu0 %v385
        %625 = vmatmul.mubr.bf16.gmra.mxu0 %v384
        %v626 = vpop.f32.mrf.mxu0
        %v627 = vadd.f32 %v270, %v626
        %v628 = vpop.f32.mrf.mxu0
        %v629 = vpop.f32.mrf.mxu0
        %v630 = vadd.f32 %v270, %v629
        %v631 = vpop.f32.mrf.mxu0
        %632 = vmatprep.mubr.bf16.mxu0 %v387
        %633 = vmatmul.mubr.bf16.gmra.mxu0 %v386
        %v634 = vpop.f32.mrf.mxu0
        %v635 = vadd.f32 %v270, %v634
        %v636 = vpop.f32.mrf.mxu0
        %v637 = vpop.f32.mrf.mxu0
        %v638 = vadd.f32 %v270, %v637
        %v639 = vpop.f32.mrf.mxu0
        %640 = vmatprep.mubr.bf16.mxu0 %v389
        %641 = vmatmul.mubr.bf16.gmra.mxu0 %v388
        %v642 = vpop.f32.mrf.mxu0
        %v643 = vadd.f32 %v270, %v642
        %v644 = vpop.f32.mrf.mxu0
        %v645 = vpop.f32.mrf.mxu0
        %v646 = vadd.f32 %v270, %v645
        %v647 = vpop.f32.mrf.mxu0
        %648 = vmatprep.mubr.bf16.mxu0 %v391
        %649 = vmatmul.mubr.bf16.gmra.mxu0 %v390
        %v650 = vpop.f32.mrf.mxu0
        %v651 = vadd.f32 %v270, %v650
        %v652 = vpop.f32.mrf.mxu0
        %v653 = vpop.f32.mrf.mxu0
        %v654 = vadd.f32 %v270, %v653
        %v655 = vpop.f32.mrf.mxu0
        %656 = vmatprep.mubr.bf16.mxu0 %v393
        %657 = vmatmul.mubr.bf16.gmra.mxu0 %v392
        %v658 = vpop.f32.mrf.mxu0
        %v659 = vadd.f32 %v270, %v658
        %v660 = vpop.f32.mrf.mxu0
        %v661 = vpop.f32.mrf.mxu0
        %v662 = vadd.f32 %v270, %v661
        %v663 = vpop.f32.mrf.mxu0
        %664 = vmatprep.mubr.bf16.mxu0 %v395
        %665 = vmatmul.mubr.bf16.gmra.mxu0 %v394
        %v666 = vpop.f32.mrf.mxu0
        %v667 = vadd.f32 %v270, %v666
        %v668 = vpop.f32.mrf.mxu0
        %v669 = vpop.f32.mrf.mxu0
        %v670 = vadd.f32 %v270, %v669
        %v671 = vpop.f32.mrf.mxu0
        %672 = vmatprep.mubr.bf16.mxu0 %v397
        %673 = vmatmul.mubr.bf16.gmra.mxu0 %v396
        %v674 = vpop.f32.mrf.mxu0
        %v675 = vadd.f32 %v270, %v674
        %v676 = vpop.f32.mrf.mxu0
        %v677 = vpop.f32.mrf.mxu0
        %v678 = vadd.f32 %v270, %v677
        %v679 = vpop.f32.mrf.mxu0
        %680 = vmatprep.mubr.bf16.mxu0 %v399
        %681 = vmatmul.mubr.bf16.gmra.mxu0 %v398
        %v682 = vpop.f32.mrf.mxu0
        %v683 = vadd.f32 %v270, %v682
        %v684 = vpop.f32.mrf.mxu0
        %v685 = vpop.f32.mrf.mxu0
        %v686 = vadd.f32 %v270, %v685
        %v687 = vpop.f32.mrf.mxu0
        %688 = vdwg.mxu0
        %v689 = vmax.f32 %v563, 0.0
        %v690 = vmax.f32 %v566, 0.0
        %v691 = vmax.f32 %v571, 0.0
        %v692 = vmax.f32 %v574, 0.0
        %v693 = vmax.f32 %v579, 0.0
        %v694 = vmax.f32 %v582, 0.0
        %v695 = vmax.f32 %v587, 0.0
        %v696 = vmax.f32 %v590, 0.0
        %v697 = vmax.f32 %v595, 0.0
        %v698 = vmax.f32 %v598, 0.0
        %v699 = vmax.f32 %v603, 0.0
        %v700 = vmax.f32 %v606, 0.0
        %v701 = vmax.f32 %v611, 0.0
        %v702 = vmax.f32 %v614, 0.0
        %v703 = vmax.f32 %v619, 0.0
        %v704 = vmax.f32 %v622, 0.0
        %v705 = vmax.f32 %v627, 0.0
        %v706 = vmax.f32 %v630, 0.0
        %v707 = vmax.f32 %v635, 0.0
        %v708 = vmax.f32 %v638, 0.0
        %v709 = vmax.f32 %v643, 0.0
        %v710 = vmax.f32 %v646, 0.0
        %v711 = vmax.f32 %v651, 0.0
        %v712 = vmax.f32 %v654, 0.0
        %v713 = vmax.f32 %v659, 0.0
        %v714 = vmax.f32 %v662, 0.0
        %v715 = vmax.f32 %v667, 0.0
        %v716 = vmax.f32 %v670, 0.0
        %v717 = vmax.f32 %v675, 0.0
        %v718 = vmax.f32 %v678, 0.0
        %v719 = vmax.f32 %v683, 0.0
        %v720 = vmax.f32 %v686, 0.0
        %v721 = vpack.c.bf16 %v690, %v689
        %v722 = vpack.c.bf16 %v692, %v691
        %v723 = vpack.c.bf16 %v694, %v693
        %v724 = vpack.c.bf16 %v696, %v695
        %v725 = vpack.c.bf16 %v698, %v697
        %v726 = vpack.c.bf16 %v700, %v699
        %v727 = vpack.c.bf16 %v702, %v701
        %v728 = vpack.c.bf16 %v704, %v703
        %v729 = vpack.c.bf16 %v706, %v705
        %v730 = vpack.c.bf16 %v708, %v707
        %v731 = vpack.c.bf16 %v710, %v709
        %v732 = vpack.c.bf16 %v712, %v711
        %v733 = vpack.c.bf16 %v714, %v713
        %v734 = vpack.c.bf16 %v716, %v715
        %v735 = vpack.c.bf16 %v718, %v717
        %v736 = vpack.c.bf16 %v720, %v719
        %v753 = vunpack.c.l.b16 %v721
        %v754 = vunpack.c.h.b16 %v721
        %v755 = vunpack.c.l.b16 %v722
        %v756 = vunpack.c.h.b16 %v722
        %v757 = vunpack.c.l.b16 %v723
        %v758 = vunpack.c.h.b16 %v723
        %v759 = vunpack.c.l.b16 %v724
        %v760 = vunpack.c.h.b16 %v724
        %v761 = vunpack.c.l.b16 %v725
        %v762 = vunpack.c.h.b16 %v725
        %v763 = vunpack.c.l.b16 %v726
        %v764 = vunpack.c.h.b16 %v726
        %v765 = vunpack.c.l.b16 %v727
        %v766 = vunpack.c.h.b16 %v727
        %v767 = vunpack.c.l.b16 %v728
        %v768 = vunpack.c.h.b16 %v728
        %v769 = vunpack.c.l.b16 %v729
        %v770 = vunpack.c.h.b16 %v729
        %v771 = vunpack.c.l.b16 %v730
        %v772 = vunpack.c.h.b16 %v730
        %v773 = vunpack.c.l.b16 %v731
        %v774 = vunpack.c.h.b16 %v731
        %v775 = vunpack.c.l.b16 %v732
        %v776 = vunpack.c.h.b16 %v732
        %v777 = vunpack.c.l.b16 %v733
        %v778 = vunpack.c.h.b16 %v733
        %v779 = vunpack.c.l.b16 %v734
        %v780 = vunpack.c.h.b16 %v734
        %v781 = vunpack.c.l.b16 %v735
        %v782 = vunpack.c.h.b16 %v735
        %v783 = vunpack.c.l.b16 %v736
        %v784 = vunpack.c.h.b16 %v736
        %v785 = vpack.c.b16 %v753, %v753
        %v786 = vpack.c.b16 %v754, %v754
        %v787 = vpack.c.b16 %v755, %v755
        %v788 = vpack.c.b16 %v756, %v756
        %v789 = vpack.c.b16 %v757, %v757
        %v790 = vpack.c.b16 %v758, %v758
        %v791 = vpack.c.b16 %v759, %v759
        %v792 = vpack.c.b16 %v760, %v760
        %v793 = vpack.c.b16 %v761, %v761
        %v794 = vpack.c.b16 %v762, %v762
        %v795 = vpack.c.b16 %v763, %v763
        %v796 = vpack.c.b16 %v764, %v764
        %v797 = vpack.c.b16 %v765, %v765
        %v798 = vpack.c.b16 %v766, %v766
        %v799 = vpack.c.b16 %v767, %v767
        %v800 = vpack.c.b16 %v768, %v768
        %v801 = vpack.c.b16 %v769, %v769
        %v802 = vpack.c.b16 %v770, %v770
        %v803 = vpack.c.b16 %v771, %v771
        %v804 = vpack.c.b16 %v772, %v772
        %v805 = vpack.c.b16 %v773, %v773
        %v806 = vpack.c.b16 %v774, %v774
        %v807 = vpack.c.b16 %v775, %v775
        %v808 = vpack.c.b16 %v776, %v776
        %v809 = vpack.c.b16 %v777, %v777
        %v810 = vpack.c.b16 %v778, %v778
        %v811 = vpack.c.b16 %v779, %v779
        %v812 = vpack.c.b16 %v780, %v780
        %v813 = vpack.c.b16 %v781, %v781
        %v814 = vpack.c.b16 %v782, %v782
        %v815 = vpack.c.b16 %v783, %v783
        %v816 = vpack.c.b16 %v784, %v784
        %vm849 = vcmask 257024
        %850 = vst.msk [vmem:[%s177] sm:$0xf] %vm849, %v785
        %851 = vst.msk [vmem:[%s177 + $0x4] sm:$0xf] %vm849, %v786
        %852 = vst.msk [vmem:[%s177 + $0x8] sm:$0xf] %vm849, %v787
        %853 = vst.msk [vmem:[%s177 + $0xc] sm:$0xf] %vm849, %v788
        %854 = vst.msk [vmem:[%s177 + $0x10] sm:$0xf] %vm849, %v789
        %855 = vst.msk [vmem:[%s177 + $0x14] sm:$0xf] %vm849, %v790
        %856 = vst.msk [vmem:[%s177 + $0x18] sm:$0xf] %vm849, %v791
        %857 = vst.msk [vmem:[%s177 + $0x1c] sm:$0xf] %vm849, %v792
        %858 = vst.msk [vmem:[%s177 + $0x20] sm:$0xf] %vm849, %v793
        %859 = vst.msk [vmem:[%s177 + $0x24] sm:$0xf] %vm849, %v794
        %860 = vst.msk [vmem:[%s177 + $0x28] sm:$0xf] %vm849, %v795
        %861 = vst.msk [vmem:[%s177 + $0x2c] sm:$0xf] %vm849, %v796
        %862 = vst.msk [vmem:[%s177 + $0x30] sm:$0xf] %vm849, %v797
        %863 = vst.msk [vmem:[%s177 + $0x34] sm:$0xf] %vm849, %v798
        %864 = vst.msk [vmem:[%s177 + $0x38] sm:$0xf] %vm849, %v799
        %865 = vst.msk [vmem:[%s177 + $0x3c] sm:$0xf] %vm849, %v800
        %866 = vst.msk [vmem:[%s177 + $0x40] sm:$0xf] %vm849, %v801
        %867 = vst.msk [vmem:[%s177 + $0x44] sm:$0xf] %vm849, %v802
        %868 = vst.msk [vmem:[%s177 + $0x48] sm:$0xf] %vm849, %v803
        %869 = vst.msk [vmem:[%s177 + $0x4c] sm:$0xf] %vm849, %v804
        %870 = vst.msk [vmem:[%s177 + $0x50] sm:$0xf] %vm849, %v805
        %871 = vst.msk [vmem:[%s177 + $0x54] sm:$0xf] %vm849, %v806
        %872 = vst.msk [vmem:[%s177 + $0x58] sm:$0xf] %vm849, %v807
        %873 = vst.msk [vmem:[%s177 + $0x5c] sm:$0xf] %vm849, %v808
        %874 = vst.msk [vmem:[%s177 + $0x60] sm:$0xf] %vm849, %v809
        %875 = vst.msk [vmem:[%s177 + $0x64] sm:$0xf] %vm849, %v810
        %876 = vst.msk [vmem:[%s177 + $0x68] sm:$0xf] %vm849, %v811
        %877 = vst.msk [vmem:[%s177 + $0x6c] sm:$0xf] %vm849, %v812
        %878 = vst.msk [vmem:[%s177 + $0x70] sm:$0xf] %vm849, %v813
        %879 = vst.msk [vmem:[%s177 + $0x74] sm:$0xf] %vm849, %v814
        %880 = vst.msk [vmem:[%s177 + $0x78] sm:$0xf] %vm849, %v815
        %881 = vst.msk [vmem:[%s177 + $0x7c] sm:$0xf] %vm849, %v816
        %s882 = sand.u32 %s90, 1
        %s883 = sand.u32 %s90, 1
        %s884 = smul.addr %s883, 128
        %s885 = scalar_lea.vmem [#allocation2], %s884
        // Predicated region
        $region33: #{cnn_policy_forward.4} parent=31 // pred_check
          %p886 = pneg %p100
        $region34: #{cnn_policy_forward.4} parent=31 // pred_check_branch
          %888 = sbr.rel (%p886) target = $region36
        $region35: #{cnn_policy_forward.4} parent=31 // pred_region
          %s889 = smul.u32 32, %s14
          %s890 = ssub.s32 100, %s889
          %p891 = scmp.lt.s32.totalorder %s890, 32
          %s892 = scalar_select %p891, %s890, 32
          %s893 = smul.u32 64, %s892
          %p894 = scmp.ne.s32.totalorder 0, %s893
          %s895 = smul.addr %s889, 4
          %s896 = scalar_lea.vmem %s3, %s895
          // Predicated region
          $region37: #{cnn_policy_forward.4} parent=35 // pred_check
            %p897 = pneg %p894
          $region38: #{cnn_policy_forward.4} parent=35 // pred_check_branch
            %899 = sbr.rel (%p897) target = $region40
          $region39: #{cnn_policy_forward.4} parent=35 // pred_region
            // Predicated region
            $region41: #{cnn_policy_forward.4} parent=39 // pred_check
              _
            $region42: #{cnn_policy_forward.4} parent=39 // pred_check_branch
              %901 = sbr.rel target = $region44
            $region43: #{cnn_policy_forward.4} parent=39 // pred_region
              // Predicated region
              $region63: #{cnn_policy_forward.4} parent=43 // pred_check
                _
              $region64: #{cnn_policy_forward.4} parent=43 // pred_check_branch
                %1013 = sbr.rel (0) target = $region66
              $region65: #{cnn_policy_forward.4} parent=43 // pred_region
                %s1015 = ssub.s32 16, 1
                %s1016 = sshrl.u32 %s892, 5
                // While loop
                $region67: #{cnn_policy_forward.4} parent=65 // loop_pre_header
                  _
                $region68: #{cnn_policy_forward.4} parent=65 // loop_header
                  %s1018 = sphi 0, %s1020
                  %p1019 = scmp.ge.s32.totalorder %s1018, %s1016
                  %s1023 = sphi 0, %s1092
                  %s1024 = sphi %s885, %s1095
                  %s1025 = sphi %s896, %s1096
                $region69: #{cnn_policy_forward.4} parent=65 // loop_header_branch
                  %1022 = sbr.rel (%p1019) target = $region73
                $region70: #{cnn_policy_forward.4} parent=65 // loop_body
                  %v1026 = vld [vmem:[%s1024] sm:%s1015]
                  %1027 = vst [vmem:[%s1025] sm:%s1015] %v1026
                  %v1028 = vld [vmem:[%s1024 + $0x4] sm:%s1015]
                  %1029 = vst [vmem:[%s1025 + $0x4] sm:%s1015] %v1028
                  %v1030 = vld [vmem:[%s1024 + $0x8] sm:%s1015]
                  %1031 = vst [vmem:[%s1025 + $0x8] sm:%s1015] %v1030
                  %v1032 = vld [vmem:[%s1024 + $0xc] sm:%s1015]
                  %1033 = vst [vmem:[%s1025 + $0xc] sm:%s1015] %v1032
                  %v1034 = vld [vmem:[%s1024 + $0x10] sm:%s1015]
                  %1035 = vst [vmem:[%s1025 + $0x10] sm:%s1015] %v1034
                  %v1036 = vld [vmem:[%s1024 + $0x14] sm:%s1015]
                  %1037 = vst [vmem:[%s1025 + $0x14] sm:%s1015] %v1036
                  %v1038 = vld [vmem:[%s1024 + $0x18] sm:%s1015]
                  %1039 = vst [vmem:[%s1025 + $0x18] sm:%s1015] %v1038
                  %v1040 = vld [vmem:[%s1024 + $0x1c] sm:%s1015]
                  %1041 = vst [vmem:[%s1025 + $0x1c] sm:%s1015] %v1040
                  %v1042 = vld [vmem:[%s1024 + $0x20] sm:%s1015]
                  %1043 = vst [vmem:[%s1025 + $0x20] sm:%s1015] %v1042
                  %v1044 = vld [vmem:[%s1024 + $0x24] sm:%s1015]
                  %1045 = vst [vmem:[%s1025 + $0x24] sm:%s1015] %v1044
                  %v1046 = vld [vmem:[%s1024 + $0x28] sm:%s1015]
                  %1047 = vst [vmem:[%s1025 + $0x28] sm:%s1015] %v1046
                  %v1048 = vld [vmem:[%s1024 + $0x2c] sm:%s1015]
                  %1049 = vst [vmem:[%s1025 + $0x2c] sm:%s1015] %v1048
                  %v1050 = vld [vmem:[%s1024 + $0x30] sm:%s1015]
                  %1051 = vst [vmem:[%s1025 + $0x30] sm:%s1015] %v1050
                  %v1052 = vld [vmem:[%s1024 + $0x34] sm:%s1015]
                  %1053 = vst [vmem:[%s1025 + $0x34] sm:%s1015] %v1052
                  %v1054 = vld [vmem:[%s1024 + $0x38] sm:%s1015]
                  %1055 = vst [vmem:[%s1025 + $0x38] sm:%s1015] %v1054
                  %v1056 = vld [vmem:[%s1024 + $0x3c] sm:%s1015]
                  %1057 = vst [vmem:[%s1025 + $0x3c] sm:%s1015] %v1056
                  %v1058 = vld [vmem:[%s1024 + $0x40] sm:%s1015]
                  %1059 = vst [vmem:[%s1025 + $0x40] sm:%s1015] %v1058
                  %v1060 = vld [vmem:[%s1024 + $0x44] sm:%s1015]
                  %1061 = vst [vmem:[%s1025 + $0x44] sm:%s1015] %v1060
                  %v1062 = vld [vmem:[%s1024 + $0x48] sm:%s1015]
                  %1063 = vst [vmem:[%s1025 + $0x48] sm:%s1015] %v1062
                  %v1064 = vld [vmem:[%s1024 + $0x4c] sm:%s1015]
                  %1065 = vst [vmem:[%s1025 + $0x4c] sm:%s1015] %v1064
                  %v1066 = vld [vmem:[%s1024 + $0x50] sm:%s1015]
                  %1067 = vst [vmem:[%s1025 + $0x50] sm:%s1015] %v1066
                  %v1068 = vld [vmem:[%s1024 + $0x54] sm:%s1015]
                  %1069 = vst [vmem:[%s1025 + $0x54] sm:%s1015] %v1068
                  %v1070 = vld [vmem:[%s1024 + $0x58] sm:%s1015]
                  %1071 = vst [vmem:[%s1025 + $0x58] sm:%s1015] %v1070
                  %v1072 = vld [vmem:[%s1024 + $0x5c] sm:%s1015]
                  %1073 = vst [vmem:[%s1025 + $0x5c] sm:%s1015] %v1072
                  %v1074 = vld [vmem:[%s1024 + $0x60] sm:%s1015]
                  %1075 = vst [vmem:[%s1025 + $0x60] sm:%s1015] %v1074
                  %v1076 = vld [vmem:[%s1024 + $0x64] sm:%s1015]
                  %1077 = vst [vmem:[%s1025 + $0x64] sm:%s1015] %v1076
                  %v1078 = vld [vmem:[%s1024 + $0x68] sm:%s1015]
                  %1079 = vst [vmem:[%s1025 + $0x68] sm:%s1015] %v1078
                  %v1080 = vld [vmem:[%s1024 + $0x6c] sm:%s1015]
                  %1081 = vst [vmem:[%s1025 + $0x6c] sm:%s1015] %v1080
                  %v1082 = vld [vmem:[%s1024 + $0x70] sm:%s1015]
                  %1083 = vst [vmem:[%s1025 + $0x70] sm:%s1015] %v1082
                  %v1084 = vld [vmem:[%s1024 + $0x74] sm:%s1015]
                  %1085 = vst [vmem:[%s1025 + $0x74] sm:%s1015] %v1084
                  %v1086 = vld [vmem:[%s1024 + $0x78] sm:%s1015]
                  %1087 = vst [vmem:[%s1025 + $0x78] sm:%s1015] %v1086
                  %v1088 = vld [vmem:[%s1024 + $0x7c] sm:%s1015]
                  %1089 = vst [vmem:[%s1025 + $0x7c] sm:%s1015] %v1088
                  %s1090 = sadd.s32 1, %s1023
                  %p1091 = scmp.ge.s32.totalorder %s1090, %s1016
                  %s1092 = scalar_select %p1091, 0, %s1090
                  %s1093 = smul.u32 %s1092, 128
                  %s1094 = smul.u32 %s1092, 128
                  %s1095 = scalar_lea.vmem %s885, %s1093 [#allocation2]
                  %s1096 = scalar_lea.vmem %s896, %s1094
                $region71: #{cnn_policy_forward.4} parent=65 // loop_footer
                  %s1020 = sadd.s32 %s1018, 1
                $region72: #{cnn_policy_forward.4} parent=65 // loop_footer_branch
                  %1017 = sbr.rel target = $region68
                $region73: #{cnn_policy_forward.4} parent=65 // loop_exit
                  _
                %s1097 = sshrl.u32 %s892, 5
                %s1098 = sand.u32 %s892, 31
                %s1099 = smul.u32 %s1097, 32
                %s1100 = smul.u32 4, %s1099
                %s1101 = scalar_lea.vmem %s885, %s1100 [#allocation2]
                %s1102 = smul.u32 4, %s1099
                %s1103 = scalar_lea.vmem %s896, %s1102
                // While loop
                $region74: #{cnn_policy_forward.4} parent=65 // loop_pre_header
                  _
                $region75: #{cnn_policy_forward.4} parent=65 // loop_header
                  %s1105 = sphi 0, %s1107
                  %p1106 = scmp.ge.s32.totalorder %s1105, %s1098
                  %s1110 = sphi 0, %s1117
                  %s1111 = sphi %s1101, %s1120
                  %s1112 = sphi %s1103, %s1121
                $region76: #{cnn_policy_forward.4} parent=65 // loop_header_branch
                  %1109 = sbr.rel (%p1106) target = $region80
                $region77: #{cnn_policy_forward.4} parent=65 // loop_body
                  %v1113 = vld [vmem:[%s1111] sm:%s1015]
                  %1114 = vst [vmem:[%s1112] sm:%s1015] %v1113
                  %s1115 = sadd.s32 1, %s1110
                  %p1116 = scmp.ge.s32.totalorder %s1115, %s1098
                  %s1117 = scalar_select %p1116, 0, %s1115
                  %s1118 = smul.u32 %s1117, 4
                  %s1119 = smul.u32 %s1117, 4
                  %s1120 = scalar_lea.vmem %s1101, %s1118 [#allocation2]
                  %s1121 = scalar_lea.vmem %s1103, %s1119
                $region78: #{cnn_policy_forward.4} parent=65 // loop_footer
                  %s1107 = sadd.s32 %s1105, 1
                $region79: #{cnn_policy_forward.4} parent=65 // loop_footer_branch
                  %1104 = sbr.rel target = $region75
                $region80: #{cnn_policy_forward.4} parent=65 // loop_exit
                  _
              $region66: #{cnn_policy_forward.4} parent=43 // pred_fallthru
                _
            $region44: #{cnn_policy_forward.4} parent=39 // pred_fallthru
              _
            // Predicated region
            $region45: #{cnn_policy_forward.4} parent=39 // pred_check
              _
            $region46: #{cnn_policy_forward.4} parent=39 // pred_check_branch
              %903 = sbr.rel (0) target = $region48
            $region47: #{cnn_policy_forward.4} parent=39 // pred_region
              %s905 = ssub.s32 16, 1
              %s906 = sshrl.u32 %s892, 5
              // While loop
              $region49: #{cnn_policy_forward.4} parent=47 // loop_pre_header
                _
              $region50: #{cnn_policy_forward.4} parent=47 // loop_header
                %s908 = sphi 0, %s910
                %p909 = scmp.ge.s32.totalorder %s908, %s906
                %s913 = sphi 0, %s982
                %s914 = sphi %s885, %s985
                %s915 = sphi %s896, %s986
              $region51: #{cnn_policy_forward.4} parent=47 // loop_header_branch
                %912 = sbr.rel (%p909) target = $region55
              $region52: #{cnn_policy_forward.4} parent=47 // loop_body
                %v916 = vld [vmem:[%s914] sm:%s905]
                %917 = vst [vmem:[%s915] sm:%s905] %v916
                %v918 = vld [vmem:[%s914 + $0x4] sm:%s905]
                %919 = vst [vmem:[%s915 + $0x4] sm:%s905] %v918
                %v920 = vld [vmem:[%s914 + $0x8] sm:%s905]
                %921 = vst [vmem:[%s915 + $0x8] sm:%s905] %v920
                %v922 = vld [vmem:[%s914 + $0xc] sm:%s905]
                %923 = vst [vmem:[%s915 + $0xc] sm:%s905] %v922
                %v924 = vld [vmem:[%s914 + $0x10] sm:%s905]
                %925 = vst [vmem:[%s915 + $0x10] sm:%s905] %v924
                %v926 = vld [vmem:[%s914 + $0x14] sm:%s905]
                %927 = vst [vmem:[%s915 + $0x14] sm:%s905] %v926
                %v928 = vld [vmem:[%s914 + $0x18] sm:%s905]
                %929 = vst [vmem:[%s915 + $0x18] sm:%s905] %v928
                %v930 = vld [vmem:[%s914 + $0x1c] sm:%s905]
                %931 = vst [vmem:[%s915 + $0x1c] sm:%s905] %v930
                %v932 = vld [vmem:[%s914 + $0x20] sm:%s905]
                %933 = vst [vmem:[%s915 + $0x20] sm:%s905] %v932
                %v934 = vld [vmem:[%s914 + $0x24] sm:%s905]
                %935 = vst [vmem:[%s915 + $0x24] sm:%s905] %v934
                %v936 = vld [vmem:[%s914 + $0x28] sm:%s905]
                %937 = vst [vmem:[%s915 + $0x28] sm:%s905] %v936
                %v938 = vld [vmem:[%s914 + $0x2c] sm:%s905]
                %939 = vst [vmem:[%s915 + $0x2c] sm:%s905] %v938
                %v940 = vld [vmem:[%s914 + $0x30] sm:%s905]
                %941 = vst [vmem:[%s915 + $0x30] sm:%s905] %v940
                %v942 = vld [vmem:[%s914 + $0x34] sm:%s905]
                %943 = vst [vmem:[%s915 + $0x34] sm:%s905] %v942
                %v944 = vld [vmem:[%s914 + $0x38] sm:%s905]
                %945 = vst [vmem:[%s915 + $0x38] sm:%s905] %v944
                %v946 = vld [vmem:[%s914 + $0x3c] sm:%s905]
                %947 = vst [vmem:[%s915 + $0x3c] sm:%s905] %v946
                %v948 = vld [vmem:[%s914 + $0x40] sm:%s905]
                %949 = vst [vmem:[%s915 + $0x40] sm:%s905] %v948
                %v950 = vld [vmem:[%s914 + $0x44] sm:%s905]
                %951 = vst [vmem:[%s915 + $0x44] sm:%s905] %v950
                %v952 = vld [vmem:[%s914 + $0x48] sm:%s905]
                %953 = vst [vmem:[%s915 + $0x48] sm:%s905] %v952
                %v954 = vld [vmem:[%s914 + $0x4c] sm:%s905]
                %955 = vst [vmem:[%s915 + $0x4c] sm:%s905] %v954
                %v956 = vld [vmem:[%s914 + $0x50] sm:%s905]
                %957 = vst [vmem:[%s915 + $0x50] sm:%s905] %v956
                %v958 = vld [vmem:[%s914 + $0x54] sm:%s905]
                %959 = vst [vmem:[%s915 + $0x54] sm:%s905] %v958
                %v960 = vld [vmem:[%s914 + $0x58] sm:%s905]
                %961 = vst [vmem:[%s915 + $0x58] sm:%s905] %v960
                %v962 = vld [vmem:[%s914 + $0x5c] sm:%s905]
                %963 = vst [vmem:[%s915 + $0x5c] sm:%s905] %v962
                %v964 = vld [vmem:[%s914 + $0x60] sm:%s905]
                %965 = vst [vmem:[%s915 + $0x60] sm:%s905] %v964
                %v966 = vld [vmem:[%s914 + $0x64] sm:%s905]
                %967 = vst [vmem:[%s915 + $0x64] sm:%s905] %v966
                %v968 = vld [vmem:[%s914 + $0x68] sm:%s905]
                %969 = vst [vmem:[%s915 + $0x68] sm:%s905] %v968
                %v970 = vld [vmem:[%s914 + $0x6c] sm:%s905]
                %971 = vst [vmem:[%s915 + $0x6c] sm:%s905] %v970
                %v972 = vld [vmem:[%s914 + $0x70] sm:%s905]
                %973 = vst [vmem:[%s915 + $0x70] sm:%s905] %v972
                %v974 = vld [vmem:[%s914 + $0x74] sm:%s905]
                %975 = vst [vmem:[%s915 + $0x74] sm:%s905] %v974
                %v976 = vld [vmem:[%s914 + $0x78] sm:%s905]
                %977 = vst [vmem:[%s915 + $0x78] sm:%s905] %v976
                %v978 = vld [vmem:[%s914 + $0x7c] sm:%s905]
                %979 = vst [vmem:[%s915 + $0x7c] sm:%s905] %v978
                %s980 = sadd.s32 1, %s913
                %p981 = scmp.ge.s32.totalorder %s980, %s906
                %s982 = scalar_select %p981, 0, %s980
                %s983 = smul.u32 %s982, 128
                %s984 = smul.u32 %s982, 128
                %s985 = scalar_lea.vmem %s885, %s983 [#allocation2]
                %s986 = scalar_lea.vmem %s896, %s984
              $region53: #{cnn_policy_forward.4} parent=47 // loop_footer
                %s910 = sadd.s32 %s908, 1
              $region54: #{cnn_policy_forward.4} parent=47 // loop_footer_branch
                %907 = sbr.rel target = $region50
              $region55: #{cnn_policy_forward.4} parent=47 // loop_exit
                _
              %s987 = sshrl.u32 %s892, 5
              %s988 = sand.u32 %s892, 31
              %s989 = smul.u32 %s987, 32
              %s990 = smul.u32 4, %s989
              %s991 = scalar_lea.vmem %s885, %s990 [#allocation2]
              %s992 = smul.u32 4, %s989
              %s993 = scalar_lea.vmem %s896, %s992
              // While loop
              $region56: #{cnn_policy_forward.4} parent=47 // loop_pre_header
                _
              $region57: #{cnn_policy_forward.4} parent=47 // loop_header
                %s995 = sphi 0, %s997
                %p996 = scmp.ge.s32.totalorder %s995, %s988
                %s1000 = sphi 0, %s1007
                %s1001 = sphi %s991, %s1010
                %s1002 = sphi %s993, %s1011
              $region58: #{cnn_policy_forward.4} parent=47 // loop_header_branch
                %999 = sbr.rel (%p996) target = $region62
              $region59: #{cnn_policy_forward.4} parent=47 // loop_body
                %v1003 = vld [vmem:[%s1001] sm:%s905]
                %1004 = vst [vmem:[%s1002] sm:%s905] %v1003
                %s1005 = sadd.s32 1, %s1000
                %p1006 = scmp.ge.s32.totalorder %s1005, %s988
                %s1007 = scalar_select %p1006, 0, %s1005
                %s1008 = smul.u32 %s1007, 4
                %s1009 = smul.u32 %s1007, 4
                %s1010 = scalar_lea.vmem %s991, %s1008 [#allocation2]
                %s1011 = scalar_lea.vmem %s993, %s1009
              $region60: #{cnn_policy_forward.4} parent=47 // loop_footer
                %s997 = sadd.s32 %s995, 1
              $region61: #{cnn_policy_forward.4} parent=47 // loop_footer_branch
                %994 = sbr.rel target = $region57
              $region62: #{cnn_policy_forward.4} parent=47 // loop_exit
                _
            $region48: #{cnn_policy_forward.4} parent=39 // pred_fallthru
              _
          $region40: #{cnn_policy_forward.4} parent=35 // pred_fallthru
            _
          %1122 = vnop
        $region36: #{cnn_policy_forward.4} parent=31 // pred_fallthru
          _
      $region32: #{cnn_policy_forward.4} parent=5 // pred_fallthru
        _
      %p1123 = scmp.le.s32.totalorder 2, %s9
      // Predicated region
      $region81: #{cnn_policy_forward.4} parent=5 // pred_check
        %p1124 = pneg %p1123
      $region82: #{cnn_policy_forward.4} parent=5 // pred_check_branch
        %1126 = sbr.rel (%p1124) target = $region84
      $region83: #{cnn_policy_forward.4} parent=5 // pred_region
        %s1127 = ssub.s32 %s9, 2
        // Predicated region
        $region85: #{cnn_policy_forward.4} parent=83 // pred_check
          %p1128 = pneg %p106
        $region86: #{cnn_policy_forward.4} parent=83 // pred_check_branch
          %1130 = sbr.rel (%p1128) target = $region88
        $region87: #{cnn_policy_forward.4} parent=83 // pred_region
          %s1131 = sand.u32 %s91, 1
          %s1132 = sand.u32 %s91, 1
          %s1133 = smul.addr %s1132, 128
          %s1134 = scalar_lea.vmem [#allocation2], %s1133
        $region88: #{cnn_policy_forward.4} parent=83 // pred_fallthru
          _
      $region84: #{cnn_policy_forward.4} parent=5 // pred_fallthru
        _
    $region6: #{cnn_policy_forward.4} parent=1 // loop_footer
      %s13 = sadd.s32 1, %s9
    $region7: #{cnn_policy_forward.4} parent=1 // loop_footer_branch
      %8 = sbr.rel target = $region3
    $region8: #{cnn_policy_forward.4} parent=1 // loop_exit
      _

// kernel: cnn_policy_forward.5
$region0: #{cnn_policy_forward.5}
  #allocation0 [shape = 'u32[]', space=smem, size = 0x4, offset = 0x4, fixed_abs, tag = 'smem constant byte address 0x4 - core index']
  #allocation1 [shape = 'u32[144,128]{1,0:T(1,128)}', space=vmem, size = 0x12000, scoped, tag = 'internal scratch']
  %s0 = inlined_call_operand.vmem [shape: bf16[162,512], index: 0, kind: input, shape index: {}]
  %s1 = inlined_call_operand.vmem [shape: bf16[512,64], index: 1, kind: input, shape index: {}]
  %s2 = inlined_call_operand.vmem [shape: f32[1,64], index: 2, kind: input, shape index: {}]
  %s3 = inlined_call_operand.vmem [shape: bf16[162,64], index: 3, kind: output, shape index: {}]
  %s4 = sld [smem:[#allocation0]]
  $region89: #{cnn_policy_forward.5} parent=0
    _
  %s6 = ssub.s32 1, %s4
  %s7 = scalar_select 0, %s6, %s4
  $region1: #{cnn_policy_forward.5} parent=0
    #allocation2 [shape = 'u8[40960]{0}', space=vmem, size = 0xa000, scoped, tag = 'output window, operand 0']
    loop: start=0, step=1, limit=5
    $region2: #{cnn_policy_forward.5} parent=1 // loop_pre_header
      _
    $region3: #{cnn_policy_forward.5} parent=1 // loop_header
      %s9 = sphi 0, %s13
      %p10 = scmp.ge.s32.totalorder %s9, 5
      %s19 = sphi 0, %s21
      %s22 = sphi 0, %s19
      %s23 = sphi 0, %s22
      %s39 = sphi 0, %s23
      %s43 = sphi 0, %s43
      %s45 = sphi 0, %s43
      %s46 = sphi 0, %s45
      %s60 = sphi 0, %s46
      %s64 = sphi 0, %s64
      %s66 = sphi 0, %s64
      %s67 = sphi 0, %s66
      %s81 = sphi 0, %s67
      %s87 = sphi 0, %s89
      %s90 = sphi 0, %s87
      %s91 = sphi 0, %s90
      %s107 = sphi 0, %s91
    $region4: #{cnn_policy_forward.5} parent=1 // loop_header_branch
      %12 = sbr.rel (%p10) target = $region8
    $region5: #{cnn_policy_forward.5} parent=1 // loop_body
      %s14 = ssub.s32 %s9, 1
      %s15 = ssub.s32 %s9, 2
      %s16 = sadd.s32 %s9, 1
      %s17 = ssub.s32 %s9, %s16
      %p18 = scmp.eq.s32.totalorder %s17, 0
      %s20 = sadd.s32 %s19, 1
      %s21 = scalar_select %p18, %s19, %s20
      %p24 = pneg %p18
      %p25 = scmp.eq.s32.totalorder %s9, 2
      %p26 = por %p24, %p25
      %p27 = scmp.ne.s32.totalorder %s19, %s22
      %p28 = scmp.eq.s32.totalorder %s9, 0
      %p29 = por %p27, %p28
      %p30 = scmp.ne.s32.totalorder %s19, %s22
      %p31 = scmp.eq.s32.totalorder %s14, 2
      %p32 = por %p30, %p31
      %p33 = scmp.ne.s32.totalorder %s22, %s23
      %p34 = scmp.eq.s32.totalorder %s14, 0
      %p35 = por %p33, %p34
      %p36 = scmp.ne.s32.totalorder %s22, %s23
      %p37 = scmp.eq.s32.totalorder %s15, 2
      %p38 = por %p36, %p37
      %p40 = scmp.ne.s32.totalorder %s23, %s39
      %p41 = scmp.eq.s32.totalorder %s15, 0
      %p42 = por %p40, %p41
      %s44 = sadd.s32 %s43, 1
      %p47 = scmp.eq.s32.totalorder %s9, 2
      %p48 = scmp.ne.s32.totalorder %s43, %s45
      %p49 = scmp.eq.s32.totalorder %s9, 0
      %p50 = por %p48, %p49
      %p51 = scmp.ne.s32.totalorder %s43, %s45
      %p52 = scmp.eq.s32.totalorder %s14, 2
      %p53 = por %p51, %p52
      %p54 = scmp.ne.s32.totalorder %s45, %s46
      %p55 = scmp.eq.s32.totalorder %s14, 0
      %p56 = por %p54, %p55
      %p57 = scmp.ne.s32.totalorder %s45, %s46
      %p58 = scmp.eq.s32.totalorder %s15, 2
      %p59 = por %p57, %p58
      %p61 = scmp.ne.s32.totalorder %s46, %s60
      %p62 = scmp.eq.s32.totalorder %s15, 0
      %p63 = por %p61, %p62
      %s65 = sadd.s32 %s64, 1
      %p68 = scmp.eq.s32.totalorder %s9, 2
      %p69 = scmp.ne.s32.totalorder %s64, %s66
      %p70 = scmp.eq.s32.totalorder %s9, 0
      %p71 = por %p69, %p70
      %p72 = scmp.ne.s32.totalorder %s64, %s66
      %p73 = scmp.eq.s32.totalorder %s14, 2
      %p74 = por %p72, %p73
      %p75 = scmp.ne.s32.totalorder %s66, %s67
      %p76 = scmp.eq.s32.totalorder %s14, 0
      %p77 = por %p75, %p76
      %p78 = scmp.ne.s32.totalorder %s66, %s67
      %p79 = scmp.eq.s32.totalorder %s15, 2
      %p80 = por %p78, %p79
      %p82 = scmp.ne.s32.totalorder %s67, %s81
      %p83 = scmp.eq.s32.totalorder %s15, 0
      %p84 = por %p82, %p83
      %s85 = ssub.s32 %s9, %s16
      %p86 = scmp.eq.s32.totalorder %s85, 0
      %s88 = sadd.s32 %s87, 1
      %s89 = scalar_select %p86, %s87, %s88
      %p92 = pneg %p86
      %p93 = scmp.eq.s32.totalorder %s9, 2
      %p94 = por %p92, %p93
      %p95 = scmp.ne.s32.totalorder %s87, %s90
      %p96 = scmp.eq.s32.totalorder %s9, 0
      %p97 = por %p95, %p96
      %p98 = scmp.ne.s32.totalorder %s87, %s90
      %p99 = scmp.eq.s32.totalorder %s14, 2
      %p100 = por %p98, %p99
      %p101 = scmp.ne.s32.totalorder %s90, %s91
      %p102 = scmp.eq.s32.totalorder %s14, 0
      %p103 = por %p101, %p102
      %p104 = scmp.ne.s32.totalorder %s90, %s91
      %p105 = scmp.eq.s32.totalorder %s15, 2
      %p106 = por %p104, %p105
      %p108 = scmp.ne.s32.totalorder %s91, %s107
      %p109 = scmp.eq.s32.totalorder %s15, 0
      %p110 = por %p108, %p109
      %p111 = scmp.le.s32.totalorder 1, %s9
      %p112 = scmp.lt.s32.totalorder %s9, 4
      %p113 = pnand %p111, %p112
      %p114 = pneg %p113
      // Predicated region
      $region9: #{cnn_policy_forward.5} parent=5 // pred_check
        _
      $region10: #{cnn_policy_forward.5} parent=5 // pred_check_branch
        %116 = sbr.rel (%p113) target = $region12
      $region11: #{cnn_policy_forward.5} parent=5 // pred_region
        %s117 = ssub.s32 %s9, 1
        // Predicated region
        $region13: #{cnn_policy_forward.5} parent=11 // pred_check
          %p118 = pneg %p56
        $region14: #{cnn_policy_forward.5} parent=11 // pred_check_branch
          %120 = sbr.rel (%p118) target = $region16
        $region15: #{cnn_policy_forward.5} parent=11 // pred_region
          _
        $region16: #{cnn_policy_forward.5} parent=11 // pred_fallthru
          _
        // Predicated region
        $region17: #{cnn_policy_forward.5} parent=11 // pred_check
          %p121 = pneg %p77
        $region18: #{cnn_policy_forward.5} parent=11 // pred_check_branch
          %123 = sbr.rel (%p121) target = $region20
        $region19: #{cnn_policy_forward.5} parent=11 // pred_region
          _
        $region20: #{cnn_policy_forward.5} parent=11 // pred_fallthru
          _
      $region12: #{cnn_policy_forward.5} parent=5 // pred_fallthru
        _
      %p124 = scmp.lt.s32.totalorder %s9, 3
      // Predicated region
      $region21: #{cnn_policy_forward.5} parent=5 // pred_check
        %p125 = pneg %p124
      $region22: #{cnn_policy_forward.5} parent=5 // pred_check_branch
        %127 = sbr.rel (%p125) target = $region24
      $region23: #{cnn_policy_forward.5} parent=5 // pred_region
        // Predicated region
        $region25: #{cnn_policy_forward.5} parent=23 // pred_check
          %p128 = pneg %p29
        $region26: #{cnn_policy_forward.5} parent=23 // pred_check_branch
          %130 = sbr.rel (%p128) target = $region28
        $region27: #{cnn_policy_forward.5} parent=23 // pred_region
          %s131 = smul.u32 10, %s9
          %s132 = ssub.s32 21, %s131
          %p133 = scmp.lt.s32.totalorder %s132, 10
          %s134 = scalar_select %p133, %s132, 10
          %s135 = smul.u32 64, %s134
          %s136 = smul.u32 %s135, 4
          %p137 = scmp.lt.s32.totalorder %s131, 20
          %s138 = scalar_select %p137, %s131, 20
          %s139 = smul.addr %s138, 4
          %s140 = smul.addr %s139, 4
          %s141 = scalar_lea.vmem %s0, %s140
          %s142 = smul.u32 10, %s9
          %s143 = ssub.s32 21, %s142
          %p144 = scmp.lt.s32.totalorder %s143, 10
          %s145 = scalar_select %p144, %s143, 10
          %s146 = smul.u32 64, %s145
          %s147 = smul.u32 %s146, 4
        $region28: #{cnn_policy_forward.5} parent=23 // pred_fallthru
          _
      $region24: #{cnn_policy_forward.5} parent=5 // pred_fallthru
        _
      %p148 = scmp.le.s32.totalorder 1, %s9
      %p149 = scmp.lt.s32.totalorder %s9, 4
      %p150 = pnand %p148, %p149
      %p151 = pneg %p150
      // Predicated region
      $region29: #{cnn_policy_forward.5} parent=5 // pred_check
        _
      $region30: #{cnn_policy_forward.5} parent=5 // pred_check_branch
        %153 = sbr.rel (%p150) target = $region32
      $region31: #{cnn_policy_forward.5} parent=5 // pred_region
        %s154 = ssub.s32 %s9, 1
        %s155 = smul.u32 10, %s14
        %s156 = ssub.s32 21, %s155
        %p157 = scmp.lt.s32.totalorder %s156, 10
        %s158 = scalar_select %p157, %s156, 10
        %s159 = smul.u32 64, %s158
        %s160 = smul.u32 %s159, 4
        %p161 = scmp.lt.s32.totalorder %s155, 20
        %s162 = scalar_select %p161, %s155, 20
        %s163 = smul.addr %s162, 4
        %s164 = smul.addr %s163, 4
        %s165 = scalar_lea.vmem %s0, %s164
        %p166 = pneg %p35
        %p167 = pneg %p32
        %p168 = pneg %p56
        %p169 = pneg %p53
        %p170 = pneg %p77
        %p171 = pneg %p74
        %p172 = pneg %p103
        %p173 = pneg %p100
        %s174 = sand.u32 %s90, 1
        %s175 = sand.u32 %s90, 1
        %s176 = smul.addr %s175, 40
        %s177 = scalar_lea.vmem [#allocation2], %s176
        %s178 = smul.u32 10, %s14
        %s179 = ssub.s32 21, %s178
        %p180 = scmp.lt.s32.totalorder %s179, 10
        %s181 = scalar_select %p180, %s179, 10
        %s182 = smul.u32 64, %s181
        %s183 = smul.u32 %s182, 4
        %p184 = scmp.lt.s32.totalorder %s178, 20
        %s185 = scalar_select %p184, %s178, 20
        %s186 = smul.addr %s185, 4
        %s187 = smul.addr %s186, 4
        %s188 = scalar_lea.vmem %s0, %s187
        %s189 = smul.u32 10, %s14
        %s190 = ssub.s32 21, %s189
        %p191 = scmp.lt.s32.totalorder %s190, 10
        %s192 = scalar_select %p191, %s190, 10
        %s193 = smul.u32 64, %s192
        %s194 = smul.u32 %s193, 4
        %s195 = smul.u32 10, %s14
        %s196 = ssub.s32 21, %s195
        %p197 = scmp.lt.s32.totalorder %s196, 10
        %s198 = scalar_select %p197, %s196, 10
        %s199 = smul.u32 64, %s198
        %v201 = vld [vmem:[%s188] sm:$0xff]
        %v202 = vld [vmem:[%s188 + $0x8] sm:$0xff]
        %v203 = vld [vmem:[%s188 + $0x10] sm:$0xff]
        %v204 = vld [vmem:[%s188 + $0x18] sm:$0xff]
        %v205 = vld [vmem:[%s188 + $0x20] sm:$0xff]
        %v206 = vld [vmem:[%s188 + $0x28] sm:$0xff]
        %v207 = vld [vmem:[%s188 + $0x30] sm:$0xff]
        %v208 = vld [vmem:[%s188 + $0x38] sm:$0xff]
        %v209 = vld [vmem:[%s188 + $0x40] sm:$0xff]
        %v210 = vld [vmem:[%s188 + $0x48] sm:$0xff]
        %v211 = vld [vmem:[%s188 + $0x50] sm:$0xff]
        %v212 = vld [vmem:[%s188 + $0x58] sm:$0xff]
        %v213 = vld [vmem:[%s188 + $0x60] sm:$0xff]
        %v214 = vld [vmem:[%s188 + $0x68] sm:$0xff]
        %v215 = vld [vmem:[%s188 + $0x70] sm:$0xff]
        %v216 = vld [vmem:[%s188 + $0x78] sm:$0xff]
        %v217 = vld [vmem:[%s188 + $0x80] sm:$0xff]
        %v218 = vld [vmem:[%s188 + $0x88] sm:$0xff]
        %v219 = vld [vmem:[%s188 + $0x90] sm:$0xff]
        %v220 = vld [vmem:[%s188 + $0x98] sm:$0xff]
        %v221 = vld [vmem:[%s1] sm:$0xf]
        %v222 = vld [vmem:[%s1 + $0x4] sm:$0xf]
        %v223 = vld [vmem:[%s1 + $0x8] sm:$0xf]
        %v224 = vld [vmem:[%s1 + $0xc] sm:$0xf]
        %v225 = vld [vmem:[%s1 + $0x10] sm:$0xf]
        %v226 = vld [vmem:[%s1 + $0x14] sm:$0xf]
        %v227 = vld [vmem:[%s1 + $0x18] sm:$0xf]
        %v228 = vld [vmem:[%s1 + $0x1c] sm:$0xf]
        %v229 = vld [vmem:[%s1 + $0x20] sm:$0xf]
        %v230 = vld [vmem:[%s1 + $0x24] sm:$0xf]
        %v231 = vld [vmem:[%s1 + $0x28] sm:$0xf]
        %v232 = vld [vmem:[%s1 + $0x2c] sm:$0xf]
        %v233 = vld [vmem:[%s1 + $0x30] sm:$0xf]
        %v234 = vld [vmem:[%s1 + $0x34] sm:$0xf]
        %v235 = vld [vmem:[%s1 + $0x38] sm:$0xf]
        %v236 = vld [vmem:[%s1 + $0x3c] sm:$0xf]
        %v237 = vld [vmem:[%s1 + $0x40] sm:$0xf]
        %v238 = vld [vmem:[%s1 + $0x44] sm:$0xf]
        %v239 = vld [vmem:[%s1 + $0x48] sm:$0xf]
        %v240 = vld [vmem:[%s1 + $0x4c] sm:$0xf]
        %v241 = vld [vmem:[%s1 + $0x50] sm:$0xf]
        %v242 = vld [vmem:[%s1 + $0x54] sm:$0xf]
        %v243 = vld [vmem:[%s1 + $0x58] sm:$0xf]
        %v244 = vld [vmem:[%s1 + $0x5c] sm:$0xf]
        %v245 = vld [vmem:[%s1 + $0x60] sm:$0xf]
        %v246 = vld [vmem:[%s1 + $0x64] sm:$0xf]
        %v247 = vld [vmem:[%s1 + $0x68] sm:$0xf]
        %v248 = vld [vmem:[%s1 + $0x6c] sm:$0xf]
        %v249 = vld [vmem:[%s1 + $0x70] sm:$0xf]
        %v250 = vld [vmem:[%s1 + $0x74] sm:$0xf]
        %v251 = vld [vmem:[%s1 + $0x78] sm:$0xf]
        %v252 = vld [vmem:[%s1 + $0x7c] sm:$0xf]
        %v253 = vld [vmem:[%s1 + $0x80] sm:$0xf]
        %v254 = vld [vmem:[%s1 + $0x84] sm:$0xf]
        %v255 = vld [vmem:[%s1 + $0x88] sm:$0xf]
        %v256 = vld [vmem:[%s1 + $0x8c] sm:$0xf]
        %v257 = vld [vmem:[%s1 + $0x90] sm:$0xf]
        %v258 = vld [vmem:[%s1 + $0x94] sm:$0xf]
        %v259 = vld [vmem:[%s1 + $0x98] sm:$0xf]
        %v260 = vld [vmem:[%s1 + $0x9c] sm:$0xf]
        %v261 = vld [vmem:[%s1 + $0xa0] sm:$0xf]
        %v262 = vld [vmem:[%s1 + $0xa4] sm:$0xf]
        %v263 = vld [vmem:[%s1 + $0xa8] sm:$0xf]
        %v264 = vld [vmem:[%s1 + $0xac] sm:$0xf]
        %v265 = vld [vmem:[%s1 + $0xb0] sm:$0xf]
        %v266 = vld [vmem:[%s1 + $0xb4] sm:$0xf]
        %v267 = vld [vmem:[%s1 + $0xb8] sm:$0xf]
        %v268 = vld [vmem:[%s1 + $0xbc] sm:$0xf]
        %v269 = vld [vmem:[%s1 + $0xc0] sm:$0xf]
        %v270 = vld [vmem:[%s1 + $0xc4] sm:$0xf]
        %v271 = vld [vmem:[%s1 + $0xc8] sm:$0xf]
        %v272 = vld [vmem:[%s1 + $0xcc] sm:$0xf]
        %v273 = vld [vmem:[%s1 + $0xd0] sm:$0xf]
        %v274 = vld [vmem:[%s1 + $0xd4] sm:$0xf]
        %v275 = vld [vmem:[%s1 + $0xd8] sm:$0xf]
        %v276 = vld [vmem:[%s1 + $0xdc] sm:$0xf]
        %v277 = vld [vmem:[%s1 + $0xe0] sm:$0xf]
        %v278 = vld [vmem:[%s1 + $0xe4] sm:$0xf]
        %v279 = vld [vmem:[%s1 + $0xe8] sm:$0xf]
        %v280 = vld [vmem:[%s1 + $0xec] sm:$0xf]
        %v281 = vld [vmem:[%s1 + $0xf0] sm:$0xf]
        %v282 = vld [vmem:[%s1 + $0xf4] sm:$0xf]
        %v283 = vld [vmem:[%s1 + $0xf8] sm:$0xf]
        %v284 = vld [vmem:[%s1 + $0xfc] sm:$0xf]
        %v285 = vld [vmem:[%s2] sm:$0x1]
        %v287 = vlaneseq
        %v288 = vshrl.u32 %v287, 7
        %v289 = vsub.s32 0, %v288
        %v290 = vrot.slane %v285, %v289
        %v312 = vunpack.c.l.b16 %v201
        %v313 = vunpack.c.h.b16 %v201
        %v314 = vunpack.c.l.b16 %v202
        %v315 = vunpack.c.h.b16 %v202
        %v316 = vunpack.c.l.b16 %v203
        %v317 = vunpack.c.h.b16 %v203
        %v318 = vunpack.c.l.b16 %v204
        %v319 = vunpack.c.h.b16 %v204
        %v320 = vunpack.c.l.b16 %v205
        %v321 = vunpack.c.h.b16 %v205
        %v322 = vunpack.c.l.b16 %v206
        %v323 = vunpack.c.h.b16 %v206
        %v324 = vunpack.c.l.b16 %v207
        %v325 = vunpack.c.h.b16 %v207
        %v326 = vunpack.c.l.b16 %v208
        %v327 = vunpack.c.h.b16 %v208
        %v328 = vunpack.c.l.b16 %v209
        %v329 = vunpack.c.h.b16 %v209
        %v330 = vunpack.c.l.b16 %v210
        %v331 = vunpack.c.h.b16 %v210
        %v332 = vunpack.c.l.b16 %v211
        %v333 = vunpack.c.h.b16 %v211
        %v334 = vunpack.c.l.b16 %v212
        %v335 = vunpack.c.h.b16 %v212
        %v336 = vunpack.c.l.b16 %v213
        %v337 = vunpack.c.h.b16 %v213
        %v338 = vunpack.c.l.b16 %v214
        %v339 = vunpack.c.h.b16 %v214
        %v340 = vunpack.c.l.b16 %v215
        %v341 = vunpack.c.h.b16 %v215
        %v342 = vunpack.c.l.b16 %v216
        %v343 = vunpack.c.h.b16 %v216
        %v344 = vunpack.c.l.b16 %v217
        %v345 = vunpack.c.h.b16 %v217
        %v346 = vunpack.c.l.b16 %v218
        %v347 = vunpack.c.h.b16 %v218
        %v348 = vunpack.c.l.b16 %v219
        %v349 = vunpack.c.h.b16 %v219
        %v350 = vunpack.c.l.b16 %v220
        %v351 = vunpack.c.h.b16 %v220
        %v352 = vpack.c.b16 %v316, %v312
        %v353 = vpack.c.b16 %v317, %v313
        %v354 = vpack.c.b16 %v318, %v314
        %v355 = vpack.c.b16 %v319, %v315
        %v356 = vpack.c.b16 %v324, %v320
        %v357 = vpack.c.b16 %v325, %v321
        %v358 = vpack.c.b16 %v326, %v322
        %v359 = vpack.c.b16 %v327, %v323
        %v360 = vpack.c.b16 %v332, %v328
        %v361 = vpack.c.b16 %v333, %v329
        %v362 = vpack.c.b16 %v334, %v330
        %v363 = vpack.c.b16 %v335, %v331
        %v364 = vpack.c.b16 %v340, %v336
        %v365 = vpack.c.b16 %v341, %v337
        %v366 = vpack.c.b16 %v342, %v338
        %v367 = vpack.c.b16 %v343, %v339
        %v368 = vpack.c.b16 %v348, %v344
        %v369 = vpack.c.b16 %v349, %v345
        %v370 = vpack.c.b16 %v350, %v346
        %v371 = vpack.c.b16 %v351, %v347
        %v456 = vunpack.c.l.b16 %v221
        %v457 = vunpack.c.l.b16 %v222
        %v458 = vunpack.c.l.b16 %v223
        %v459 = vunpack.c.l.b16 %v224
        %v460 = vunpack.c.l.b16 %v225
        %v461 = vunpack.c.l.b16 %v226
        %v462 = vunpack.c.l.b16 %v227
        %v463 = vunpack.c.l.b16 %v228
        %v464 = vunpack.c.l.b16 %v229
        %v465 = vunpack.c.l.b16 %v230
        %v466 = vunpack.c.l.b16 %v231
        %v467 = vunpack.c.l.b16 %v232
        %v468 = vunpack.c.l.b16 %v233
        %v469 = vunpack.c.l.b16 %v234
        %v470 = vunpack.c.l.b16 %v235
        %v471 = vunpack.c.l.b16 %v236
        %v472 = vunpack.c.l.b16 %v237
        %v473 = vunpack.c.l.b16 %v238
        %v474 = vunpack.c.l.b16 %v239
        %v475 = vunpack.c.l.b16 %v240
        %v476 = vunpack.c.l.b16 %v241
        %v477 = vunpack.c.l.b16 %v242
        %v478 = vunpack.c.l.b16 %v243
        %v479 = vunpack.c.l.b16 %v244
        %v480 = vunpack.c.l.b16 %v245
        %v481 = vunpack.c.l.b16 %v246
        %v482 = vunpack.c.l.b16 %v247
        %v483 = vunpack.c.l.b16 %v248
        %v484 = vunpack.c.l.b16 %v249
        %v485 = vunpack.c.l.b16 %v250
        %v486 = vunpack.c.l.b16 %v251
        %v487 = vunpack.c.l.b16 %v252
        %v488 = vunpack.c.l.b16 %v253
        %v489 = vunpack.c.l.b16 %v254
        %v490 = vunpack.c.l.b16 %v255
        %v491 = vunpack.c.l.b16 %v256
        %v492 = vunpack.c.l.b16 %v257
        %v493 = vunpack.c.l.b16 %v258
        %v494 = vunpack.c.l.b16 %v259
        %v495 = vunpack.c.l.b16 %v260
        %v496 = vunpack.c.l.b16 %v261
        %v497 = vunpack.c.l.b16 %v262
        %v498 = vunpack.c.l.b16 %v263
        %v499 = vunpack.c.l.b16 %v264
        %v500 = vunpack.c.l.b16 %v265
        %v501 = vunpack.c.l.b16 %v266
        %v502 = vunpack.c.l.b16 %v267
        %v503 = vunpack.c.l.b16 %v268
        %v504 = vunpack.c.l.b16 %v269
        %v505 = vunpack.c.l.b16 %v270
        %v506 = vunpack.c.l.b16 %v271
        %v507 = vunpack.c.l.b16 %v272
        %v508 = vunpack.c.l.b16 %v273
        %v509 = vunpack.c.l.b16 %v274
        %v510 = vunpack.c.l.b16 %v275
        %v511 = vunpack.c.l.b16 %v276
        %v512 = vunpack.c.l.b16 %v277
        %v513 = vunpack.c.l.b16 %v278
        %v514 = vunpack.c.l.b16 %v279
        %v515 = vunpack.c.l.b16 %v280
        %v516 = vunpack.c.l.b16 %v281
        %v517 = vunpack.c.l.b16 %v282
        %v518 = vunpack.c.l.b16 %v283
        %v519 = vunpack.c.l.b16 %v284
        %v520 = vpack.c.b16 %v457, %v456
        %v521 = vpack.c.b16 %v459, %v458
        %v522 = vpack.c.b16 %v461, %v460
        %v523 = vpack.c.b16 %v463, %v462
        %v524 = vpack.c.b16 %v465, %v464
        %v525 = vpack.c.b16 %v467, %v466
        %v526 = vpack.c.b16 %v469, %v468
        %v527 = vpack.c.b16 %v471, %v470
        %v528 = vpack.c.b16 %v473, %v472
        %v529 = vpack.c.b16 %v475, %v474
        %v530 = vpack.c.b16 %v477, %v476
        %v531 = vpack.c.b16 %v479, %v478
        %v532 = vpack.c.b16 %v481, %v480
        %v533 = vpack.c.b16 %v483, %v482
        %v534 = vpack.c.b16 %v485, %v484
        %v535 = vpack.c.b16 %v487, %v486
        %v536 = vpack.c.b16 %v489, %v488
        %v537 = vpack.c.b16 %v491, %v490
        %v538 = vpack.c.b16 %v493, %v492
        %v539 = vpack.c.b16 %v495, %v494
        %v540 = vpack.c.b16 %v497, %v496
        %v541 = vpack.c.b16 %v499, %v498
        %v542 = vpack.c.b16 %v501, %v500
        %v543 = vpack.c.b16 %v503, %v502
        %v544 = vpack.c.b16 %v505, %v504
        %v545 = vpack.c.b16 %v507, %v506
        %v546 = vpack.c.b16 %v509, %v508
        %v547 = vpack.c.b16 %v511, %v510
        %v548 = vpack.c.b16 %v513, %v512
        %v549 = vpack.c.b16 %v515, %v514
        %v550 = vpack.c.b16 %v517, %v516
        %v551 = vpack.c.b16 %v519, %v518
        %584 = vmatprep.subr.bf16.mxu0 0
        %585 = vmatpush1.bf16.msra.mxu0 %v527
        %586 = vmatprep.subr.bf16.mxu0 0
        %587 = vmatpush1.bf16.msra.mxu0 %v526
        %588 = vmatprep.subr.bf16.mxu0 0
        %589 = vmatpush1.bf16.msra.mxu0 %v525
        %590 = vmatprep.subr.bf16.mxu0 0
        %591 = vmatpush1.bf16.msra.mxu0 %v524
        %592 = vmatprep.subr.bf16.mxu0 0
        %593 = vmatpush1.bf16.msra.mxu0 %v523
        %594 = vmatprep.subr.bf16.mxu0 0
        %595 = vmatpush1.bf16.msra.mxu0 %v522
        %596 = vmatprep.subr.bf16.mxu0 0
        %597 = vmatpush1.bf16.msra.mxu0 %v521
        %598 = vmatprep.subr.bf16.mxu0 0
        %599 = vmatpush1.bf16.msra.mxu0 %v520
        %600 = vmatprep.subr.bf16.mxu0 0
        %601 = vmatpush2.bf16.msra.mxu0 %v535
        %602 = vmatprep.subr.bf16.mxu0 0
        %603 = vmatpush2.bf16.msra.mxu0 %v534
        %604 = vmatprep.subr.bf16.mxu0 0
        %605 = vmatpush2.bf16.msra.mxu0 %v533
        %606 = vmatprep.subr.bf16.mxu0 0
        %607 = vmatpush2.bf16.msra.mxu0 %v532
        %608 = vmatprep.subr.bf16.mxu0 0
        %609 = vmatpush2.bf16.msra.mxu0 %v531
        %610 = vmatprep.subr.bf16.mxu0 0
        %611 = vmatpush2.bf16.msra.mxu0 %v530
        %612 = vmatprep.subr.bf16.mxu0 0
        %613 = vmatpush2.bf16.msra.mxu0 %v529
        %614 = vmatprep.subr.bf16.mxu0 0
        %615 = vmatpush2.bf16.msra.mxu0 %v528
        %616 = vmatprep.mubr.bf16.mxu0 %v353
        %617 = vmatmul.mubr.bf16.gmra.mxu0 %v352
        %v618 = vpop.f32.mrf.mxu0
        %v619 = vadd.f32 %v290, %v618
        %v620 = vpop.f32.mrf.mxu0
        %v621 = vpop.f32.mrf.mxu0
        %v622 = vadd.f32 %v290, %v621
        %v623 = vpop.f32.mrf.mxu0
        %624 = vmatprep.mubr.bf16.mxu0 %v357
        %625 = vmatmul.mubr.bf16.gmra.mxu0 %v356
        %v626 = vpop.f32.mrf.mxu0
        %v627 = vadd.f32 %v290, %v626
        %v628 = vpop.f32.mrf.mxu0
        %v629 = vpop.f32.mrf.mxu0
        %v630 = vadd.f32 %v290, %v629
        %v631 = vpop.f32.mrf.mxu0
        %632 = vmatprep.mubr.bf16.mxu0 %v361
        %633 = vmatmul.mubr.bf16.gmra.mxu0 %v360
        %v634 = vpop.f32.mrf.mxu0
        %v635 = vadd.f32 %v290, %v634
        %v636 = vpop.f32.mrf.mxu0
        %v637 = vpop.f32.mrf.mxu0
        %v638 = vadd.f32 %v290, %v637
        %v639 = vpop.f32.mrf.mxu0
        %640 = vmatprep.mubr.bf16.mxu0 %v365
        %641 = vmatmul.mubr.bf16.gmra.mxu0 %v364
        %v642 = vpop.f32.mrf.mxu0
        %v643 = vadd.f32 %v290, %v642
        %v644 = vpop.f32.mrf.mxu0
        %v645 = vpop.f32.mrf.mxu0
        %v646 = vadd.f32 %v290, %v645
        %v647 = vpop.f32.mrf.mxu0
        %648 = vmatprep.mubr.bf16.mxu0 %v369
        %649 = vmatmul.mubr.bf16.gmra.mxu0 %v368
        %v650 = vpop.f32.mrf.mxu0
        %v651 = vadd.f32 %v290, %v650
        %v652 = vpop.f32.mrf.mxu0
        %v653 = vpop.f32.mrf.mxu0
        %v654 = vadd.f32 %v290, %v653
        %v655 = vpop.f32.mrf.mxu0
        %656 = vdwg.mxu0
        %657 = vmatprep.subr.bf16.mxu0 0
        %658 = vmatpush1.bf16.msra.mxu0 %v543
        %659 = vmatprep.subr.bf16.mxu0 0
        %660 = vmatpush1.bf16.msra.mxu0 %v542
        %661 = vmatprep.subr.bf16.mxu0 0
        %662 = vmatpush1.bf16.msra.mxu0 %v541
        %663 = vmatprep.subr.bf16.mxu0 0
        %664 = vmatpush1.bf16.msra.mxu0 %v540
        %665 = vmatprep.subr.bf16.mxu0 0
        %666 = vmatpush1.bf16.msra.mxu0 %v539
        %667 = vmatprep.subr.bf16.mxu0 0
        %668 = vmatpush1.bf16.msra.mxu0 %v538
        %669 = vmatprep.subr.bf16.mxu0 0
        %670 = vmatpush1.bf16.msra.mxu0 %v537
        %671 = vmatprep.subr.bf16.mxu0 0
        %672 = vmatpush1.bf16.msra.mxu0 %v536
        %673 = vmatprep.subr.bf16.mxu0 0
        %674 = vmatpush2.bf16.msra.mxu0 %v551
        %675 = vmatprep.subr.bf16.mxu0 0
        %676 = vmatpush2.bf16.msra.mxu0 %v550
        %677 = vmatprep.subr.bf16.mxu0 0
        %678 = vmatpush2.bf16.msra.mxu0 %v549
        %679 = vmatprep.subr.bf16.mxu0 0
        %680 = vmatpush2.bf16.msra.mxu0 %v548
        %681 = vmatprep.subr.bf16.mxu0 0
        %682 = vmatpush2.bf16.msra.mxu0 %v547
        %683 = vmatprep.subr.bf16.mxu0 0
        %684 = vmatpush2.bf16.msra.mxu0 %v546
        %685 = vmatprep.subr.bf16.mxu0 0
        %686 = vmatpush2.bf16.msra.mxu0 %v545
        %687 = vmatprep.subr.bf16.mxu0 0
        %688 = vmatpush2.bf16.msra.mxu0 %v544
        %689 = vmatprep.mubr.bf16.mxu0 %v355
        %690 = vmatmul.mubr.bf16.gmra.mxu0 %v354
        %v691 = vpop.f32.mrf.mxu0
        %v692 = vadd.f32 %v619, %v691
        %v693 = vpop.f32.mrf.mxu0
        %v694 = vpop.f32.mrf.mxu0
        %v695 = vadd.f32 %v622, %v694
        %v696 = vpop.f32.mrf.mxu0
        %697 = vmatprep.mubr.bf16.mxu0 %v359
        %698 = vmatmul.mubr.bf16.gmra.mxu0 %v358
        %v699 = vpop.f32.mrf.mxu0
        %v700 = vadd.f32 %v627, %v699
        %v701 = vpop.f32.mrf.mxu0
        %v702 = vpop.f32.mrf.mxu0
        %v703 = vadd.f32 %v630, %v702
        %v704 = vpop.f32.mrf.mxu0
        %705 = vmatprep.mubr.bf16.mxu0 %v363
        %706 = vmatmul.mubr.bf16.gmra.mxu0 %v362
        %v707 = vpop.f32.mrf.mxu0
        %v708 = vadd.f32 %v635, %v707
        %v709 = vpop.f32.mrf.mxu0
        %v710 = vpop.f32.mrf.mxu0
        %v711 = vadd.f32 %v638, %v710
        %v712 = vpop.f32.mrf.mxu0
        %713 = vmatprep.mubr.bf16.mxu0 %v367
        %714 = vmatmul.mubr.bf16.gmra.mxu0 %v366
        %v715 = vpop.f32.mrf.mxu0
        %v716 = vadd.f32 %v643, %v715
        %v717 = vpop.f32.mrf.mxu0
        %v718 = vpop.f32.mrf.mxu0
        %v719 = vadd.f32 %v646, %v718
        %v720 = vpop.f32.mrf.mxu0
        %721 = vmatprep.mubr.bf16.mxu0 %v371
        %722 = vmatmul.mubr.bf16.gmra.mxu0 %v370
        %v723 = vpop.f32.mrf.mxu0
        %v724 = vadd.f32 %v651, %v723
        %v725 = vpop.f32.mrf.mxu0
        %v726 = vpop.f32.mrf.mxu0
        %v727 = vadd.f32 %v654, %v726
        %v728 = vpop.f32.mrf.mxu0
        %729 = vdwg.mxu0
        %v730 = vmax.f32 %v692, 0.0
        %v731 = vmax.f32 %v695, 0.0
        %v732 = vmax.f32 %v700, 0.0
        %v733 = vmax.f32 %v703, 0.0
        %v734 = vmax.f32 %v708, 0.0
        %v735 = vmax.f32 %v711, 0.0
        %v736 = vmax.f32 %v716, 0.0
        %v737 = vmax.f32 %v719, 0.0
        %v738 = vmax.f32 %v724, 0.0
        %v739 = vmax.f32 %v727, 0.0
        %v740 = vpack.c.bf16 %v731, %v730
        %v741 = vpack.c.bf16 %v733, %v732
        %v742 = vpack.c.bf16 %v735, %v734
        %v743 = vpack.c.bf16 %v737, %v736
        %v744 = vpack.c.bf16 %v739, %v738
        %v750 = vunpack.c.l.b16 %v740
        %v751 = vunpack.c.h.b16 %v740
        %v752 = vunpack.c.l.b16 %v741
        %v753 = vunpack.c.h.b16 %v741
        %v754 = vunpack.c.l.b16 %v742
        %v755 = vunpack.c.h.b16 %v742
        %v756 = vunpack.c.l.b16 %v743
        %v757 = vunpack.c.h.b16 %v743
        %v758 = vunpack.c.l.b16 %v744
        %v759 = vunpack.c.h.b16 %v744
        %v760 = vpack.c.b16 %v750, %v750
        %v761 = vpack.c.b16 %v751, %v751
        %v762 = vpack.c.b16 %v752, %v752
        %v763 = vpack.c.b16 %v753, %v753
        %v764 = vpack.c.b16 %v754, %v754
        %v765 = vpack.c.b16 %v755, %v755
        %v766 = vpack.c.b16 %v756, %v756
        %v767 = vpack.c.b16 %v757, %v757
        %v768 = vpack.c.b16 %v758, %v758
        %v769 = vpack.c.b16 %v759, %v759
        %vm780 = vcmask 519168
        %781 = vst.msk [vmem:[%s177] sm:$0xf] %vm780, %v760
        %782 = vst.msk [vmem:[%s177 + $0x4] sm:$0xf] %vm780, %v761
        %783 = vst.msk [vmem:[%s177 + $0x8] sm:$0xf] %vm780, %v762
        %784 = vst.msk [vmem:[%s177 + $0xc] sm:$0xf] %vm780, %v763
        %785 = vst.msk [vmem:[%s177 + $0x10] sm:$0xf] %vm780, %v764
        %786 = vst.msk [vmem:[%s177 + $0x14] sm:$0xf] %vm780, %v765
        %787 = vst.msk [vmem:[%s177 + $0x18] sm:$0xf] %vm780, %v766
        %788 = vst.msk [vmem:[%s177 + $0x1c] sm:$0xf] %vm780, %v767
        %789 = vst.msk [vmem:[%s177 + $0x20] sm:$0xf] %vm780, %v768
        %790 = vst.msk [vmem:[%s177 + $0x24] sm:$0xf] %vm780, %v769
        %s791 = sand.u32 %s90, 1
        %s792 = sand.u32 %s90, 1
        %s793 = smul.addr %s792, 40
        %s794 = scalar_lea.vmem [#allocation2], %s793
        // Predicated region
        $region33: #{cnn_policy_forward.5} parent=31 // pred_check
          %p795 = pneg %p100
        $region34: #{cnn_policy_forward.5} parent=31 // pred_check_branch
          %797 = sbr.rel (%p795) target = $region36
        $region35: #{cnn_policy_forward.5} parent=31 // pred_region
          %s798 = smul.u32 10, %s14
          %s799 = ssub.s32 21, %s798
          %p800 = scmp.lt.s32.totalorder %s799, 10
          %s801 = scalar_select %p800, %s799, 10
          %s802 = smul.u32 64, %s801
          %p803 = scmp.ne.s32.totalorder 0, %s802
          %s804 = smul.addr %s798, 4
          %s805 = scalar_lea.vmem %s3, %s804
          // Predicated region
          $region37: #{cnn_policy_forward.5} parent=35 // pred_check
            %p806 = pneg %p803
          $region38: #{cnn_policy_forward.5} parent=35 // pred_check_branch
            %808 = sbr.rel (%p806) target = $region40
          $region39: #{cnn_policy_forward.5} parent=35 // pred_region
            // Predicated region
            $region41: #{cnn_policy_forward.5} parent=39 // pred_check
              _
            $region42: #{cnn_policy_forward.5} parent=39 // pred_check_branch
              %810 = sbr.rel target = $region44
            $region43: #{cnn_policy_forward.5} parent=39 // pred_region
              // Predicated region
              $region63: #{cnn_policy_forward.5} parent=43 // pred_check
                _
              $region64: #{cnn_policy_forward.5} parent=43 // pred_check_branch
                %879 = sbr.rel (0) target = $region66
              $region65: #{cnn_policy_forward.5} parent=43 // pred_region
                %s881 = ssub.s32 16, 1
                %s882 = sdiv.u32.pop %s801, 10
                %s883 = srem.u32.pop %s801, 10
                // While loop
                $region67: #{cnn_policy_forward.5} parent=65 // loop_pre_header
                  _
                $region68: #{cnn_policy_forward.5} parent=65 // loop_header
                  %s885 = sphi 0, %s887
                  %p886 = scmp.ge.s32.totalorder %s885, %s882
                  %s890 = sphi 0, %s915
                  %s891 = sphi %s794, %s918
                  %s892 = sphi %s805, %s919
                $region69: #{cnn_policy_forward.5} parent=65 // loop_header_branch
                  %889 = sbr.rel (%p886) target = $region73
                $region70: #{cnn_policy_forward.5} parent=65 // loop_body
                  %v893 = vld [vmem:[%s891] sm:%s881]
                  %894 = vst [vmem:[%s892] sm:%s881] %v893
                  %v895 = vld [vmem:[%s891 + $0x4] sm:%s881]
                  %896 = vst [vmem:[%s892 + $0x4] sm:%s881] %v895
                  %v897 = vld [vmem:[%s891 + $0x8] sm:%s881]
                  %898 = vst [vmem:[%s892 + $0x8] sm:%s881] %v897
                  %v899 = vld [vmem:[%s891 + $0xc] sm:%s881]
                  %900 = vst [vmem:[%s892 + $0xc] sm:%s881] %v899
                  %v901 = vld [vmem:[%s891 + $0x10] sm:%s881]
                  %902 = vst [vmem:[%s892 + $0x10] sm:%s881] %v901
                  %v903 = vld [vmem:[%s891 + $0x14] sm:%s881]
                  %904 = vst [vmem:[%s892 + $0x14] sm:%s881] %v903
                  %v905 = vld [vmem:[%s891 + $0x18] sm:%s881]
                  %906 = vst [vmem:[%s892 + $0x18] sm:%s881] %v905
                  %v907 = vld [vmem:[%s891 + $0x1c] sm:%s881]
                  %908 = vst [vmem:[%s892 + $0x1c] sm:%s881] %v907
                  %v909 = vld [vmem:[%s891 + $0x20] sm:%s881]
                  %910 = vst [vmem:[%s892 + $0x20] sm:%s881] %v909
                  %v911 = vld [vmem:[%s891 + $0x24] sm:%s881]
                  %912 = vst [vmem:[%s892 + $0x24] sm:%s881] %v911
                  %s913 = sadd.s32 1, %s890
                  %p914 = scmp.ge.s32.totalorder %s913, %s882
                  %s915 = scalar_select %p914, 0, %s913
                  %s916 = smul.u32 %s915, 40
                  %s917 = smul.u32 %s915, 40
                  %s918 = scalar_lea.vmem %s794, %s916 [#allocation2]
                  %s919 = scalar_lea.vmem %s805, %s917
                $region71: #{cnn_policy_forward.5} parent=65 // loop_footer
                  %s887 = sadd.s32 %s885, 1
                $region72: #{cnn_policy_forward.5} parent=65 // loop_footer_branch
                  %884 = sbr.rel target = $region68
                $region73: #{cnn_policy_forward.5} parent=65 // loop_exit
                  _
                %s920 = sdiv.u32.pop %s801, 10
                %s921 = srem.u32.pop %s801, 10
                %s922 = smul.u32 %s920, 10
                %s923 = smul.u32 4, %s922
                %s924 = scalar_lea.vmem %s794, %s923 [#allocation2]
                %s925 = smul.u32 4, %s922
                %s926 = scalar_lea.vmem %s805, %s925
                // While loop
                $region74: #{cnn_policy_forward.5} parent=65 // loop_pre_header
                  _
                $region75: #{cnn_policy_forward.5} parent=65 // loop_header
                  %s928 = sphi 0, %s930
                  %p929 = scmp.ge.s32.totalorder %s928, %s921
                  %s933 = sphi 0, %s940
                  %s934 = sphi %s924, %s943
                  %s935 = sphi %s926, %s944
                $region76: #{cnn_policy_forward.5} parent=65 // loop_header_branch
                  %932 = sbr.rel (%p929) target = $region80
                $region77: #{cnn_policy_forward.5} parent=65 // loop_body
                  %v936 = vld [vmem:[%s934] sm:%s881]
                  %937 = vst [vmem:[%s935] sm:%s881] %v936
                  %s938 = sadd.s32 1, %s933
                  %p939 = scmp.ge.s32.totalorder %s938, %s921
                  %s940 = scalar_select %p939, 0, %s938
                  %s941 = smul.u32 %s940, 4
                  %s942 = smul.u32 %s940, 4
                  %s943 = scalar_lea.vmem %s924, %s941 [#allocation2]
                  %s944 = scalar_lea.vmem %s926, %s942
                $region78: #{cnn_policy_forward.5} parent=65 // loop_footer
                  %s930 = sadd.s32 %s928, 1
                $region79: #{cnn_policy_forward.5} parent=65 // loop_footer_branch
                  %927 = sbr.rel target = $region75
                $region80: #{cnn_policy_forward.5} parent=65 // loop_exit
                  _
              $region66: #{cnn_policy_forward.5} parent=43 // pred_fallthru
                _
            $region44: #{cnn_policy_forward.5} parent=39 // pred_fallthru
              _
            // Predicated region
            $region45: #{cnn_policy_forward.5} parent=39 // pred_check
              _
            $region46: #{cnn_policy_forward.5} parent=39 // pred_check_branch
              %812 = sbr.rel (0) target = $region48
            $region47: #{cnn_policy_forward.5} parent=39 // pred_region
              %s814 = ssub.s32 16, 1
              %s815 = sdiv.u32.pop %s801, 10
              %s816 = srem.u32.pop %s801, 10
              // While loop
              $region49: #{cnn_policy_forward.5} parent=47 // loop_pre_header
                _
              $region50: #{cnn_policy_forward.5} parent=47 // loop_header
                %s818 = sphi 0, %s820
                %p819 = scmp.ge.s32.totalorder %s818, %s815
                %s823 = sphi 0, %s848
                %s824 = sphi %s794, %s851
                %s825 = sphi %s805, %s852
              $region51: #{cnn_policy_forward.5} parent=47 // loop_header_branch
                %822 = sbr.rel (%p819) target = $region55
              $region52: #{cnn_policy_forward.5} parent=47 // loop_body
                %v826 = vld [vmem:[%s824] sm:%s814]
                %827 = vst [vmem:[%s825] sm:%s814] %v826
                %v828 = vld [vmem:[%s824 + $0x4] sm:%s814]
                %829 = vst [vmem:[%s825 + $0x4] sm:%s814] %v828
                %v830 = vld [vmem:[%s824 + $0x8] sm:%s814]
                %831 = vst [vmem:[%s825 + $0x8] sm:%s814] %v830
                %v832 = vld [vmem:[%s824 + $0xc] sm:%s814]
                %833 = vst [vmem:[%s825 + $0xc] sm:%s814] %v832
                %v834 = vld [vmem:[%s824 + $0x10] sm:%s814]
                %835 = vst [vmem:[%s825 + $0x10] sm:%s814] %v834
                %v836 = vld [vmem:[%s824 + $0x14] sm:%s814]
                %837 = vst [vmem:[%s825 + $0x14] sm:%s814] %v836
                %v838 = vld [vmem:[%s824 + $0x18] sm:%s814]
                %839 = vst [vmem:[%s825 + $0x18] sm:%s814] %v838
                %v840 = vld [vmem:[%s824 + $0x1c] sm:%s814]
                %841 = vst [vmem:[%s825 + $0x1c] sm:%s814] %v840
                %v842 = vld [vmem:[%s824 + $0x20] sm:%s814]
                %843 = vst [vmem:[%s825 + $0x20] sm:%s814] %v842
                %v844 = vld [vmem:[%s824 + $0x24] sm:%s814]
                %845 = vst [vmem:[%s825 + $0x24] sm:%s814] %v844
                %s846 = sadd.s32 1, %s823
                %p847 = scmp.ge.s32.totalorder %s846, %s815
                %s848 = scalar_select %p847, 0, %s846
                %s849 = smul.u32 %s848, 40
                %s850 = smul.u32 %s848, 40
                %s851 = scalar_lea.vmem %s794, %s849 [#allocation2]
                %s852 = scalar_lea.vmem %s805, %s850
              $region53: #{cnn_policy_forward.5} parent=47 // loop_footer
                %s820 = sadd.s32 %s818, 1
              $region54: #{cnn_policy_forward.5} parent=47 // loop_footer_branch
                %817 = sbr.rel target = $region50
              $region55: #{cnn_policy_forward.5} parent=47 // loop_exit
                _
              %s853 = sdiv.u32.pop %s801, 10
              %s854 = srem.u32.pop %s801, 10
              %s855 = smul.u32 %s853, 10
              %s856 = smul.u32 4, %s855
              %s857 = scalar_lea.vmem %s794, %s856 [#allocation2]
              %s858 = smul.u32 4, %s855
              %s859 = scalar_lea.vmem %s805, %s858
              // While loop
              $region56: #{cnn_policy_forward.5} parent=47 // loop_pre_header
                _
              $region57: #{cnn_policy_forward.5} parent=47 // loop_header
                %s861 = sphi 0, %s863
                %p862 = scmp.ge.s32.totalorder %s861, %s854
                %s866 = sphi 0, %s873
                %s867 = sphi %s857, %s876
                %s868 = sphi %s859, %s877
              $region58: #{cnn_policy_forward.5} parent=47 // loop_header_branch
                %865 = sbr.rel (%p862) target = $region62
              $region59: #{cnn_policy_forward.5} parent=47 // loop_body
                %v869 = vld [vmem:[%s867] sm:%s814]
                %870 = vst [vmem:[%s868] sm:%s814] %v869
                %s871 = sadd.s32 1, %s866
                %p872 = scmp.ge.s32.totalorder %s871, %s854
                %s873 = scalar_select %p872, 0, %s871
                %s874 = smul.u32 %s873, 4
                %s875 = smul.u32 %s873, 4
                %s876 = scalar_lea.vmem %s857, %s874 [#allocation2]
                %s877 = scalar_lea.vmem %s859, %s875
              $region60: #{cnn_policy_forward.5} parent=47 // loop_footer
                %s863 = sadd.s32 %s861, 1
              $region61: #{cnn_policy_forward.5} parent=47 // loop_footer_branch
                %860 = sbr.rel target = $region57
              $region62: #{cnn_policy_forward.5} parent=47 // loop_exit
                _
            $region48: #{cnn_policy_forward.5} parent=39 // pred_fallthru
              _
          $region40: #{cnn_policy_forward.5} parent=35 // pred_fallthru
            _
          %945 = vnop
        $region36: #{cnn_policy_forward.5} parent=31 // pred_fallthru
          _
      $region32: #{cnn_policy_forward.5} parent=5 // pred_fallthru
        _
      %p946 = scmp.le.s32.totalorder 2, %s9
      // Predicated region
      $region81: #{cnn_policy_forward.5} parent=5 // pred_check
        %p947 = pneg %p946
      $region82: #{cnn_policy_forward.5} parent=5 // pred_check_branch
        %949 = sbr.rel (%p947) target = $region84
      $region83: #{cnn_policy_forward.5} parent=5 // pred_region
        %s950 = ssub.s32 %s9, 2
        // Predicated region
        $region85: #{cnn_policy_forward.5} parent=83 // pred_check
          %p951 = pneg %p106
        $region86: #{cnn_policy_forward.5} parent=83 // pred_check_branch
          %953 = sbr.rel (%p951) target = $region88
        $region87: #{cnn_policy_forward.5} parent=83 // pred_region
          %s954 = sand.u32 %s91, 1
          %s955 = sand.u32 %s91, 1
          %s956 = smul.addr %s955, 40
          %s957 = scalar_lea.vmem [#allocation2], %s956
        $region88: #{cnn_policy_forward.5} parent=83 // pred_fallthru
          _
      $region84: #{cnn_policy_forward.5} parent=5 // pred_fallthru
        _
    $region6: #{cnn_policy_forward.5} parent=1 // loop_footer
      %s13 = sadd.s32 1, %s9
    $region7: #{cnn_policy_forward.5} parent=1 // loop_footer_branch
      %8 = sbr.rel target = $region3
    $region8: #{cnn_policy_forward.5} parent=1 // loop_exit
      _

// kernel: cnn_policy_forward.6
$region0: #{cnn_policy_forward.6}
  #allocation0 [shape = 'u32[]', space=smem, size = 0x4, offset = 0x4, fixed_abs, tag = 'smem constant byte address 0x4 - core index']
  #allocation1 [shape = 'u32[144,128]{1,0:T(1,128)}', space=vmem, size = 0x12000, scoped, tag = 'internal scratch']
  %s0 = inlined_call_operand.vmem [shape: bf16[98,576], index: 0, kind: input, shape index: {}]
  %s1 = inlined_call_operand.vmem [shape: bf16[576,32], index: 1, kind: input, shape index: {}]
  %s2 = inlined_call_operand.vmem [shape: f32[1,32], index: 2, kind: input, shape index: {}]
  %s3 = inlined_call_operand.vmem [shape: bf16[98,32], index: 3, kind: output, shape index: {}]
  %s4 = sld [smem:[#allocation0]]
  $region89: #{cnn_policy_forward.6} parent=0
    _
  %s6 = ssub.s32 1, %s4
  %s7 = scalar_select 0, %s6, %s4
  $region1: #{cnn_policy_forward.6} parent=0
    #allocation2 [shape = 'u8[24576]{0}', space=vmem, size = 0x6000, scoped, tag = 'output window, operand 0']
    loop: start=0, step=1, limit=5
    $region2: #{cnn_policy_forward.6} parent=1 // loop_pre_header
      _
    $region3: #{cnn_policy_forward.6} parent=1 // loop_header
      %s9 = sphi 0, %s13
      %p10 = scmp.ge.s32.totalorder %s9, 5
      %s19 = sphi 0, %s21
      %s22 = sphi 0, %s19
      %s23 = sphi 0, %s22
      %s39 = sphi 0, %s23
      %s43 = sphi 0, %s43
      %s45 = sphi 0, %s43
      %s46 = sphi 0, %s45
      %s60 = sphi 0, %s46
      %s64 = sphi 0, %s64
      %s66 = sphi 0, %s64
      %s67 = sphi 0, %s66
      %s81 = sphi 0, %s67
      %s87 = sphi 0, %s89
      %s90 = sphi 0, %s87
      %s91 = sphi 0, %s90
      %s107 = sphi 0, %s91
    $region4: #{cnn_policy_forward.6} parent=1 // loop_header_branch
      %12 = sbr.rel (%p10) target = $region8
    $region5: #{cnn_policy_forward.6} parent=1 // loop_body
      %s14 = ssub.s32 %s9, 1
      %s15 = ssub.s32 %s9, 2
      %s16 = sadd.s32 %s9, 1
      %s17 = ssub.s32 %s9, %s16
      %p18 = scmp.eq.s32.totalorder %s17, 0
      %s20 = sadd.s32 %s19, 1
      %s21 = scalar_select %p18, %s19, %s20
      %p24 = pneg %p18
      %p25 = scmp.eq.s32.totalorder %s9, 2
      %p26 = por %p24, %p25
      %p27 = scmp.ne.s32.totalorder %s19, %s22
      %p28 = scmp.eq.s32.totalorder %s9, 0
      %p29 = por %p27, %p28
      %p30 = scmp.ne.s32.totalorder %s19, %s22
      %p31 = scmp.eq.s32.totalorder %s14, 2
      %p32 = por %p30, %p31
      %p33 = scmp.ne.s32.totalorder %s22, %s23
      %p34 = scmp.eq.s32.totalorder %s14, 0
      %p35 = por %p33, %p34
      %p36 = scmp.ne.s32.totalorder %s22, %s23
      %p37 = scmp.eq.s32.totalorder %s15, 2
      %p38 = por %p36, %p37
      %p40 = scmp.ne.s32.totalorder %s23, %s39
      %p41 = scmp.eq.s32.totalorder %s15, 0
      %p42 = por %p40, %p41
      %s44 = sadd.s32 %s43, 1
      %p47 = scmp.eq.s32.totalorder %s9, 2
      %p48 = scmp.ne.s32.totalorder %s43, %s45
      %p49 = scmp.eq.s32.totalorder %s9, 0
      %p50 = por %p48, %p49
      %p51 = scmp.ne.s32.totalorder %s43, %s45
      %p52 = scmp.eq.s32.totalorder %s14, 2
      %p53 = por %p51, %p52
      %p54 = scmp.ne.s32.totalorder %s45, %s46
      %p55 = scmp.eq.s32.totalorder %s14, 0
      %p56 = por %p54, %p55
      %p57 = scmp.ne.s32.totalorder %s45, %s46
      %p58 = scmp.eq.s32.totalorder %s15, 2
      %p59 = por %p57, %p58
      %p61 = scmp.ne.s32.totalorder %s46, %s60
      %p62 = scmp.eq.s32.totalorder %s15, 0
      %p63 = por %p61, %p62
      %s65 = sadd.s32 %s64, 1
      %p68 = scmp.eq.s32.totalorder %s9, 2
      %p69 = scmp.ne.s32.totalorder %s64, %s66
      %p70 = scmp.eq.s32.totalorder %s9, 0
      %p71 = por %p69, %p70
      %p72 = scmp.ne.s32.totalorder %s64, %s66
      %p73 = scmp.eq.s32.totalorder %s14, 2
      %p74 = por %p72, %p73
      %p75 = scmp.ne.s32.totalorder %s66, %s67
      %p76 = scmp.eq.s32.totalorder %s14, 0
      %p77 = por %p75, %p76
      %p78 = scmp.ne.s32.totalorder %s66, %s67
      %p79 = scmp.eq.s32.totalorder %s15, 2
      %p80 = por %p78, %p79
      %p82 = scmp.ne.s32.totalorder %s67, %s81
      %p83 = scmp.eq.s32.totalorder %s15, 0
      %p84 = por %p82, %p83
      %s85 = ssub.s32 %s9, %s16
      %p86 = scmp.eq.s32.totalorder %s85, 0
      %s88 = sadd.s32 %s87, 1
      %s89 = scalar_select %p86, %s87, %s88
      %p92 = pneg %p86
      %p93 = scmp.eq.s32.totalorder %s9, 2
      %p94 = por %p92, %p93
      %p95 = scmp.ne.s32.totalorder %s87, %s90
      %p96 = scmp.eq.s32.totalorder %s9, 0
      %p97 = por %p95, %p96
      %p98 = scmp.ne.s32.totalorder %s87, %s90
      %p99 = scmp.eq.s32.totalorder %s14, 2
      %p100 = por %p98, %p99
      %p101 = scmp.ne.s32.totalorder %s90, %s91
      %p102 = scmp.eq.s32.totalorder %s14, 0
      %p103 = por %p101, %p102
      %p104 = scmp.ne.s32.totalorder %s90, %s91
      %p105 = scmp.eq.s32.totalorder %s15, 2
      %p106 = por %p104, %p105
      %p108 = scmp.ne.s32.totalorder %s91, %s107
      %p109 = scmp.eq.s32.totalorder %s15, 0
      %p110 = por %p108, %p109
      %p111 = scmp.le.s32.totalorder 1, %s9
      %p112 = scmp.lt.s32.totalorder %s9, 4
      %p113 = pnand %p111, %p112
      %p114 = pneg %p113
      // Predicated region
      $region9: #{cnn_policy_forward.6} parent=5 // pred_check
        _
      $region10: #{cnn_policy_forward.6} parent=5 // pred_check_branch
        %116 = sbr.rel (%p113) target = $region12
      $region11: #{cnn_policy_forward.6} parent=5 // pred_region
        %s117 = ssub.s32 %s9, 1
        // Predicated region
        $region13: #{cnn_policy_forward.6} parent=11 // pred_check
          %p118 = pneg %p56
        $region14: #{cnn_policy_forward.6} parent=11 // pred_check_branch
          %120 = sbr.rel (%p118) target = $region16
        $region15: #{cnn_policy_forward.6} parent=11 // pred_region
          _
        $region16: #{cnn_policy_forward.6} parent=11 // pred_fallthru
          _
        // Predicated region
        $region17: #{cnn_policy_forward.6} parent=11 // pred_check
          %p121 = pneg %p77
        $region18: #{cnn_policy_forward.6} parent=11 // pred_check_branch
          %123 = sbr.rel (%p121) target = $region20
        $region19: #{cnn_policy_forward.6} parent=11 // pred_region
          _
        $region20: #{cnn_policy_forward.6} parent=11 // pred_fallthru
          _
      $region12: #{cnn_policy_forward.6} parent=5 // pred_fallthru
        _
      %p124 = scmp.lt.s32.totalorder %s9, 3
      // Predicated region
      $region21: #{cnn_policy_forward.6} parent=5 // pred_check
        %p125 = pneg %p124
      $region22: #{cnn_policy_forward.6} parent=5 // pred_check_branch
        %127 = sbr.rel (%p125) target = $region24
      $region23: #{cnn_policy_forward.6} parent=5 // pred_region
        // Predicated region
        $region25: #{cnn_policy_forward.6} parent=23 // pred_check
          %p128 = pneg %p29
        $region26: #{cnn_policy_forward.6} parent=23 // pred_check_branch
          %130 = sbr.rel (%p128) target = $region28
        $region27: #{cnn_policy_forward.6} parent=23 // pred_region
          %s131 = smul.u32 6, %s9
          %s132 = ssub.s32 13, %s131
          %p133 = scmp.lt.s32.totalorder %s132, 6
          %s134 = scalar_select %p133, %s132, 6
          %s135 = smul.u32 64, %s134
          %s136 = smul.u32 %s135, 5
          %p137 = scmp.lt.s32.totalorder %s131, 12
          %s138 = scalar_select %p137, %s131, 12
          %s139 = smul.addr %s138, 5
          %s140 = smul.addr %s139, 4
          %s141 = scalar_lea.vmem %s0, %s140
          %s142 = smul.u32 6, %s9
          %s143 = ssub.s32 13, %s142
          %p144 = scmp.lt.s32.totalorder %s143, 6
          %s145 = scalar_select %p144, %s143, 6
          %s146 = smul.u32 64, %s145
          %s147 = smul.u32 %s146, 5
        $region28: #{cnn_policy_forward.6} parent=23 // pred_fallthru
          _
      $region24: #{cnn_policy_forward.6} parent=5 // pred_fallthru
        _
      %p148 = scmp.le.s32.totalorder 1, %s9
      %p149 = scmp.lt.s32.totalorder %s9, 4
      %p150 = pnand %p148, %p149
      %p151 = pneg %p150
      // Predicated region
      $region29: #{cnn_policy_forward.6} parent=5 // pred_check
        _
      $region30: #{cnn_policy_forward.6} parent=5 // pred_check_branch
        %153 = sbr.rel (%p150) target = $region32
      $region31: #{cnn_policy_forward.6} parent=5 // pred_region
        %s154 = ssub.s32 %s9, 1
        %s155 = smul.u32 6, %s14
        %s156 = ssub.s32 13, %s155
        %p157 = scmp.lt.s32.totalorder %s156, 6
        %s158 = scalar_select %p157, %s156, 6
        %s159 = smul.u32 64, %s158
        %s160 = smul.u32 %s159, 5
        %p161 = scmp.lt.s32.totalorder %s155, 12
        %s162 = scalar_select %p161, %s155, 12
        %s163 = smul.addr %s162, 5
        %s164 = smul.addr %s163, 4
        %s165 = scalar_lea.vmem %s0, %s164
        %p166 = pneg %p35
        %p167 = pneg %p32
        %p168 = pneg %p56
        %p169 = pneg %p53
        %p170 = pneg %p77
        %p171 = pneg %p74
        %p172 = pneg %p103
        %p173 = pneg %p100
        %s174 = sand.u32 %s90, 1
        %s175 = sand.u32 %s90, 1
        %s176 = smul.addr %s175, 24
        %s177 = scalar_lea.vmem [#allocation2], %s176
        %s178 = smul.u32 6, %s14
        %s179 = ssub.s32 13, %s178
        %p180 = scmp.lt.s32.totalorder %s179, 6
        %s181 = scalar_select %p180, %s179, 6
        %s182 = smul.u32 64, %s181
        %s183 = smul.u32 %s182, 5
        %p184 = scmp.lt.s32.totalorder %s178, 12
        %s185 = scalar_select %p184, %s178, 12
        %s186 = smul.addr %s185, 5
        %s187 = smul.addr %s186, 4
        %s188 = scalar_lea.vmem %s0, %s187
        %s189 = smul.u32 6, %s14
        %s190 = ssub.s32 13, %s189
        %p191 = scmp.lt.s32.totalorder %s190, 6
        %s192 = scalar_select %p191, %s190, 6
        %s193 = smul.u32 64, %s192
        %s194 = smul.u32 %s193, 5
        %s195 = smul.u32 6, %s14
        %s196 = ssub.s32 13, %s195
        %p197 = scmp.lt.s32.totalorder %s196, 6
        %s198 = scalar_select %p197, %s196, 6
        %s199 = smul.u32 64, %s198
        %v201 = vld [vmem:[%s188] sm:$0xff]
        %v202 = vld [vmem:[%s188 + $0x8] sm:$0xff]
        %v203 = vld [vmem:[%s188 + $0x10] sm:$0xf]
        %v204 = vld [vmem:[%s188 + $0x14] sm:$0xff]
        %v205 = vld [vmem:[%s188 + $0x1c] sm:$0xff]
        %v206 = vld [vmem:[%s188 + $0x24] sm:$0xf]
        %v207 = vld [vmem:[%s188 + $0x28] sm:$0xff]
        %v208 = vld [vmem:[%s188 + $0x30] sm:$0xff]
        %v209 = vld [vmem:[%s188 + $0x38] sm:$0xf]
        %v210 = vld [vmem:[%s188 + $0x3c] sm:$0xff]
        %v211 = vld [vmem:[%s188 + $0x44] sm:$0xff]
        %v212 = vld [vmem:[%s188 + $0x4c] sm:$0xf]
        %v213 = vld [vmem:[%s188 + $0x50] sm:$0xff]
        %v214 = vld [vmem:[%s188 + $0x58] sm:$0xff]
        %v215 = vld [vmem:[%s188 + $0x60] sm:$0xf]
        %v216 = vld [vmem:[%s188 + $0x64] sm:$0xff]
        %v217 = vld [vmem:[%s188 + $0x6c] sm:$0xff]
        %v218 = vld [vmem:[%s188 + $0x74] sm:$0xf]
        %v219 = vld [vmem:[%s1] sm:$0xf]
        %v220 = vld [vmem:[%s1 + $0x4] sm:$0xf]
        %v221 = vld [vmem:[%s1 + $0x8] sm:$0xf]
        %v222 = vld [vmem:[%s1 + $0xc] sm:$0xf]
        %v223 = vld [vmem:[%s1 + $0x10] sm:$0xf]
        %v224 = vld [vmem:[%s1 + $0x14] sm:$0xf]
        %v225 = vld [vmem:[%s1 + $0x18] sm:$0xf]
        %v226 = vld [vmem:[%s1 + $0x1c] sm:$0xf]
        %v227 = vld [vmem:[%s1 + $0x20] sm:$0xf]
        %v228 = vld [vmem:[%s1 + $0x24] sm:$0xf]
        %v229 = vld [vmem:[%s1 + $0x28] sm:$0xf]
        %v230 = vld [vmem:[%s1 + $0x2c] sm:$0xf]
        %v231 = vld [vmem:[%s1 + $0x30] sm:$0xf]
        %v232 = vld [vmem:[%s1 + $0x34] sm:$0xf]
        %v233 = vld [vmem:[%s1 + $0x38] sm:$0xf]
        %v234 = vld [vmem:[%s1 + $0x3c] sm:$0xf]
        %v235 = vld [vmem:[%s1 + $0x40] sm:$0xf]
        %v236 = vld [vmem:[%s1 + $0x44] sm:$0xf]
        %v237 = vld [vmem:[%s1 + $0x48] sm:$0xf]
        %v238 = vld [vmem:[%s1 + $0x4c] sm:$0xf]
        %v239 = vld [vmem:[%s1 + $0x50] sm:$0xf]
        %v240 = vld [vmem:[%s1 + $0x54] sm:$0xf]
        %v241 = vld [vmem:[%s1 + $0x58] sm:$0xf]
        %v242 = vld [vmem:[%s1 + $0x5c] sm:$0xf]
        %v243 = vld [vmem:[%s1 + $0x60] sm:$0xf]
        %v244 = vld [vmem:[%s1 + $0x64] sm:$0xf]
        %v245 = vld [vmem:[%s1 + $0x68] sm:$0xf]
        %v246 = vld [vmem:[%s1 + $0x6c] sm:$0xf]
        %v247 = vld [vmem:[%s1 + $0x70] sm:$0xf]
        %v248 = vld [vmem:[%s1 + $0x74] sm:$0xf]
        %v249 = vld [vmem:[%s1 + $0x78] sm:$0xf]
        %v250 = vld [vmem:[%s1 + $0x7c] sm:$0xf]
        %v251 = vld [vmem:[%s1 + $0x80] sm:$0xf]
        %v252 = vld [vmem:[%s1 + $0x84] sm:$0xf]
        %v253 = vld [vmem:[%s1 + $0x88] sm:$0xf]
        %v254 = vld [vmem:[%s1 + $0x8c] sm:$0xf]
        %v255 = vld [vmem:[%s1 + $0x90] sm:$0xf]
        %v256 = vld [vmem:[%s1 + $0x94] sm:$0xf]
        %v257 = vld [vmem:[%s1 + $0x98] sm:$0xf]
        %v258 = vld [vmem:[%s1 + $0x9c] sm:$0xf]
        %v259 = vld [vmem:[%s1 + $0xa0] sm:$0xf]
        %v260 = vld [vmem:[%s1 + $0xa4] sm:$0xf]
        %v261 = vld [vmem:[%s1 + $0xa8] sm:$0xf]
        %v262 = vld [vmem:[%s1 + $0xac] sm:$0xf]
        %v263 = vld [vmem:[%s1 + $0xb0] sm:$0xf]
        %v264 = vld [vmem:[%s1 + $0xb4] sm:$0xf]
        %v265 = vld [vmem:[%s1 + $0xb8] sm:$0xf]
        %v266 = vld [vmem:[%s1 + $0xbc] sm:$0xf]
        %v267 = vld [vmem:[%s1 + $0xc0] sm:$0xf]
        %v268 = vld [vmem:[%s1 + $0xc4] sm:$0xf]
        %v269 = vld [vmem:[%s1 + $0xc8] sm:$0xf]
        %v270 = vld [vmem:[%s1 + $0xcc] sm:$0xf]
        %v271 = vld [vmem:[%s1 + $0xd0] sm:$0xf]
        %v272 = vld [vmem:[%s1 + $0xd4] sm:$0xf]
        %v273 = vld [vmem:[%s1 + $0xd8] sm:$0xf]
        %v274 = vld [vmem:[%s1 + $0xdc] sm:$0xf]
        %v275 = vld [vmem:[%s1 + $0xe0] sm:$0xf]
        %v276 = vld [vmem:[%s1 + $0xe4] sm:$0xf]
        %v277 = vld [vmem:[%s1 + $0xe8] sm:$0xf]
        %v278 = vld [vmem:[%s1 + $0xec] sm:$0xf]
        %v279 = vld [vmem:[%s1 + $0xf0] sm:$0xf]
        %v280 = vld [vmem:[%s1 + $0xf4] sm:$0xf]
        %v281 = vld [vmem:[%s1 + $0xf8] sm:$0xf]
        %v282 = vld [vmem:[%s1 + $0xfc] sm:$0xf]
        %v283 = vld [vmem:[%s1 + $0x100] sm:$0xf]
        %v284 = vld [vmem:[%s1 + $0x104] sm:$0xf]
        %v285 = vld [vmem:[%s1 + $0x108] sm:$0xf]
        %v286 = vld [vmem:[%s1 + $0x10c] sm:$0xf]
        %v287 = vld [vmem:[%s1 + $0x110] sm:$0xf]
        %v288 = vld [vmem:[%s1 + $0x114] sm:$0xf]
        %v289 = vld [vmem:[%s1 + $0x118] sm:$0xf]
        %v290 = vld [vmem:[%s1 + $0x11c] sm:$0xf]
        %v291 = vld [vmem:[%s2] sm:$0x1]
        %v293 = vlaneseq
        %v294 = vshrl.u32 %v293, 7
        %v295 = vsub.s32 0, %v294
        %v296 = vrot.slane %v291, %v295
        %v316 = vunpack.c.l.b16 %v201
        %v317 = vunpack.c.h.b16 %v201
        %v318 = vunpack.c.l.b16 %v202
        %v319 = vunpack.c.h.b16 %v202
        %v320 = vunpack.c.l.b16 %v203
        %v321 = vunpack.c.l.b16 %v204
        %v322 = vunpack.c.h.b16 %v204
        %v323 = vunpack.c.l.b16 %v205
        %v324 = vunpack.c.h.b16 %v205
        %v325 = vunpack.c.l.b16 %v206
        %v326 = vunpack.c.l.b16 %v207
        %v327 = vunpack.c.h.b16 %v207
        %v328 = vunpack.c.l.b16 %v208
        %v329 = vunpack.c.h.b16 %v208
        %v330 = vunpack.c.l.b16 %v209
        %v331 = vunpack.c.l.b16 %v210
        %v332 = vunpack.c.h.b16 %v210
        %v333 = vunpack.c.l.b16 %v211
        %v334 = vunpack.c.h.b16 %v211
        %v335 = vunpack.c.l.b16 %v212
        %v336 = vunpack.c.l.b16 %v213
        %v337 = vunpack.c.h.b16 %v213
        %v338 = vunpack.c.l.b16 %v214
        %v339 = vunpack.c.h.b16 %v214
        %v340 = vunpack.c.l.b16 %v215
        %v341 = vunpack.c.l.b16 %v216
        %v342 = vunpack.c.h.b16 %v216
        %v343 = vunpack.c.l.b16 %v217
        %v344 = vunpack.c.h.b16 %v217
        %v345 = vunpack.c.l.b16 %v218
        %v346 = vpack.c.b16 %v321, %v316
        %v347 = vpack.c.b16 %v322, %v317
        %v348 = vpack.c.b16 %v323, %v318
        %v349 = vpack.c.b16 %v324, %v319
        %v350 = vpack.c.b16 %v325, %v320
        %v351 = vpack.c.b16 %v331, %v326
        %v352 = vpack.c.b16 %v332, %v327
        %v353 = vpack.c.b16 %v333, %v328
        %v354 = vpack.c.b16 %v334, %v329
        %v355 = vpack.c.b16 %v335, %v330
        %v356 = vpack.c.b16 %v341, %v336
        %v357 = vpack.c.b16 %v342, %v337
        %v358 = vpack.c.b16 %v343, %v338
        %v359 = vpack.c.b16 %v344, %v339
        %v360 = vpack.c.b16 %v345, %v340
        %v445 = vunpack.c.l.b16 %v219
        %v446 = vunpack.c.l.b16 %v220
        %v447 = vunpack.c.l.b16 %v221
        %v448 = vunpack.c.l.b16 %v222
        %v449 = vunpack.c.l.b16 %v223
        %v450 = vunpack.c.l.b16 %v224
        %v451 = vunpack.c.l.b16 %v225
        %v452 = vunpack.c.l.b16 %v226
        %v453 = vunpack.c.l.b16 %v227
        %v454 = vunpack.c.l.b16 %v228
        %v455 = vunpack.c.l.b16 %v229
        %v456 = vunpack.c.l.b16 %v230
        %v457 = vunpack.c.l.b16 %v231
        %v458 = vunpack.c.l.b16 %v232
        %v459 = vunpack.c.l.b16 %v233
        %v460 = vunpack.c.l.b16 %v234
        %v461 = vunpack.c.l.b16 %v235
        %v462 = vunpack.c.l.b16 %v236
        %v463 = vunpack.c.l.b16 %v237
        %v464 = vunpack.c.l.b16 %v238
        %v465 = vunpack.c.l.b16 %v239
        %v466 = vunpack.c.l.b16 %v240
        %v467 = vunpack.c.l.b16 %v241
        %v468 = vunpack.c.l.b16 %v242
        %v469 = vunpack.c.l.b16 %v243
        %v470 = vunpack.c.l.b16 %v244
        %v471 = vunpack.c.l.b16 %v245
        %v472 = vunpack.c.l.b16 %v246
        %v473 = vunpack.c.l.b16 %v247
        %v474 = vunpack.c.l.b16 %v248
        %v475 = vunpack.c.l.b16 %v249
        %v476 = vunpack.c.l.b16 %v250
        %v477 = vunpack.c.l.b16 %v251
        %v478 = vunpack.c.l.b16 %v252
        %v479 = vunpack.c.l.b16 %v253
        %v480 = vunpack.c.l.b16 %v254
        %v481 = vunpack.c.l.b16 %v255
        %v482 = vunpack.c.l.b16 %v256
        %v483 = vunpack.c.l.b16 %v257
        %v484 = vunpack.c.l.b16 %v258
        %v485 = vunpack.c.l.b16 %v259
        %v486 = vunpack.c.l.b16 %v260
        %v487 = vunpack.c.l.b16 %v261
        %v488 = vunpack.c.l.b16 %v262
        %v489 = vunpack.c.l.b16 %v263
        %v490 = vunpack.c.l.b16 %v264
        %v491 = vunpack.c.l.b16 %v265
        %v492 = vunpack.c.l.b16 %v266
        %v493 = vunpack.c.l.b16 %v267
        %v494 = vunpack.c.l.b16 %v268
        %v495 = vunpack.c.l.b16 %v269
        %v496 = vunpack.c.l.b16 %v270
        %v497 = vunpack.c.l.b16 %v271
        %v498 = vunpack.c.l.b16 %v272
        %v499 = vunpack.c.l.b16 %v273
        %v500 = vunpack.c.l.b16 %v274
        %v501 = vunpack.c.l.b16 %v275
        %v502 = vunpack.c.l.b16 %v276
        %v503 = vunpack.c.l.b16 %v277
        %v504 = vunpack.c.l.b16 %v278
        %v505 = vunpack.c.l.b16 %v279
        %v506 = vunpack.c.l.b16 %v280
        %v507 = vunpack.c.l.b16 %v281
        %v508 = vunpack.c.l.b16 %v282
        %v509 = vunpack.c.l.b16 %v283
        %v510 = vunpack.c.l.b16 %v284
        %v511 = vunpack.c.l.b16 %v285
        %v512 = vunpack.c.l.b16 %v286
        %v513 = vunpack.c.l.b16 %v287
        %v514 = vunpack.c.l.b16 %v288
        %v515 = vunpack.c.l.b16 %v289
        %v516 = vunpack.c.l.b16 %v290
        %v517 = vpack.c.b16 %v446, %v445
        %v518 = vpack.c.b16 %v448, %v447
        %v519 = vpack.c.b16 %v450, %v449
        %v520 = vpack.c.b16 %v452, %v451
        %v521 = vpack.c.b16 %v454, %v453
        %v522 = vpack.c.b16 %v456, %v455
        %v523 = vpack.c.b16 %v458, %v457
        %v524 = vpack.c.b16 %v460, %v459
        %v525 = vpack.c.b16 %v462, %v461
        %v526 = vpack.c.b16 %v464, %v463
        %v527 = vpack.c.b16 %v466, %v465
        %v528 = vpack.c.b16 %v468, %v467
        %v529 = vpack.c.b16 %v470, %v469
        %v530 = vpack.c.b16 %v472, %v471
        %v531 = vpack.c.b16 %v474, %v473
        %v532 = vpack.c.b16 %v476, %v475
        %v533 = vpack.c.b16 %v478, %v477
        %v534 = vpack.c.b16 %v480, %v479
        %v535 = vpack.c.b16 %v482, %v481
        %v536 = vpack.c.b16 %v484, %v483
        %v537 = vpack.c.b16 %v486, %v485
        %v538 = vpack.c.b16 %v488, %v487
        %v539 = vpack.c.b16 %v490, %v489
        %v540 = vpack.c.b16 %v492, %v491
        %v541 = vpack.c.b16 %v494, %v493
        %v542 = vpack.c.b16 %v496, %v495
        %v543 = vpack.c.b16 %v498, %v497
        %v544 = vpack.c.b16 %v500, %v499
        %v545 = vpack.c.b16 %v502, %v501
        %v546 = vpack.c.b16 %v504, %v503
        %v547 = vpack.c.b16 %v506, %v505
        %v548 = vpack.c.b16 %v508, %v507
        %v549 = vpack.c.b16 %v510, %v509
        %v550 = vpack.c.b16 %v512, %v511
        %v551 = vpack.c.b16 %v514, %v513
        %v552 = vpack.c.b16 %v516, %v515
        %vm589 = vcmask 523264
        %v591 = vsel %vm589, %v350, 0
        %v594 = vsel %vm589, %v355, 0
        %v597 = vsel %vm589, %v360, 0
        %599 = vmatprep.subr.bf16.mxu0 0
        %600 = vmatpush1.bf16.msra.mxu0 %v524
        %601 = vmatprep.subr.bf16.mxu0 0
        %602 = vmatpush1.bf16.msra.mxu0 %v523
        %603 = vmatprep.subr.bf16.mxu0 0
        %604 = vmatpush1.bf16.msra.mxu0 %v522
        %605 = vmatprep.subr.bf16.mxu0 0
        %606 = vmatpush1.bf16.msra.mxu0 %v521
        %607 = vmatprep.subr.bf16.mxu0 0
        %608 = vmatpush1.bf16.msra.mxu0 %v520
        %609 = vmatprep.subr.bf16.mxu0 0
        %610 = vmatpush1.bf16.msra.mxu0 %v519
        %611 = vmatprep.subr.bf16.mxu0 0
        %612 = vmatpush1.bf16.msra.mxu0 %v518
        %613 = vmatprep.subr.bf16.mxu0 0
        %614 = vmatpush1.bf16.msra.mxu0 %v517
        %615 = vmatprep.subr.bf16.mxu0 0
        %616 = vmatpush2.bf16.msra.mxu0 %v532
        %617 = vmatprep.subr.bf16.mxu0 0
        %618 = vmatpush2.bf16.msra.mxu0 %v531
        %619 = vmatprep.subr.bf16.mxu0 0
        %620 = vmatpush2.bf16.msra.mxu0 %v530
        %621 = vmatprep.subr.bf16.mxu0 0
        %622 = vmatpush2.bf16.msra.mxu0 %v529
        %623 = vmatprep.subr.bf16.mxu0 0
        %624 = vmatpush2.bf16.msra.mxu0 %v528
        %625 = vmatprep.subr.bf16.mxu0 0
        %626 = vmatpush2.bf16.msra.mxu0 %v527
        %627 = vmatprep.subr.bf16.mxu0 0
        %628 = vmatpush2.bf16.msra.mxu0 %v526
        %629 = vmatprep.subr.bf16.mxu0 0
        %630 = vmatpush2.bf16.msra.mxu0 %v525
        %631 = vmatprep.mubr.bf16.mxu0 %v347
        %632 = vmatmul.mubr.bf16.gmra.mxu0 %v346
        %v633 = vpop.f32.mrf.mxu0
        %v634 = vadd.f32 %v296, %v633
        %v635 = vpop.f32.mrf.mxu0
        %v636 = vpop.f32.mrf.mxu0
        %v637 = vadd.f32 %v296, %v636
        %v638 = vpop.f32.mrf.mxu0
        %639 = vmatprep.mubr.bf16.mxu0 %v352
        %640 = vmatmul.mubr.bf16.gmra.mxu0 %v351
        %v641 = vpop.f32.mrf.mxu0
        %v642 = vadd.f32 %v296, %v641
        %v643 = vpop.f32.mrf.mxu0
        %v644 = vpop.f32.mrf.mxu0
        %v645 = vadd.f32 %v296, %v644
        %v646 = vpop.f32.mrf.mxu0
        %647 = vmatprep.mubr.bf16.mxu0 %v357
        %648 = vmatmul.mubr.bf16.gmra.mxu0 %v356
        %v649 = vpop.f32.mrf.mxu0
        %v650 = vadd.f32 %v296, %v649
        %v651 = vpop.f32.mrf.mxu0
        %v652 = vpop.f32.mrf.mxu0
        %v653 = vadd.f32 %v296, %v652
        %v654 = vpop.f32.mrf.mxu0
        %655 = vdwg.mxu0
        %656 = vmatprep.subr.bf16.mxu0 0
        %657 = vmatpush1.bf16.msra.mxu0 %v540
        %658 = vmatprep.subr.bf16.mxu0 0
        %659 = vmatpush1.bf16.msra.mxu0 %v539
        %660 = vmatprep.subr.bf16.mxu0 0
        %661 = vmatpush1.bf16.msra.mxu0 %v538
        %662 = vmatprep.subr.bf16.mxu0 0
        %663 = vmatpush1.bf16.msra.mxu0 %v537
        %664 = vmatprep.subr.bf16.mxu0 0
        %665 = vmatpush1.bf16.msra.mxu0 %v536
        %666 = vmatprep.subr.bf16.mxu0 0
        %667 = vmatpush1.bf16.msra.mxu0 %v535
        %668 = vmatprep.subr.bf16.mxu0 0
        %669 = vmatpush1.bf16.msra.mxu0 %v534
        %670 = vmatprep.subr.bf16.mxu0 0
        %671 = vmatpush1.bf16.msra.mxu0 %v533
        %672 = vmatprep.subr.bf16.mxu0 0
        %673 = vmatpush2.bf16.msra.mxu0 %v548
        %674 = vmatprep.subr.bf16.mxu0 0
        %675 = vmatpush2.bf16.msra.mxu0 %v547
        %676 = vmatprep.subr.bf16.mxu0 0
        %677 = vmatpush2.bf16.msra.mxu0 %v546
        %678 = vmatprep.subr.bf16.mxu0 0
        %679 = vmatpush2.bf16.msra.mxu0 %v545
        %680 = vmatprep.subr.bf16.mxu0 0
        %681 = vmatpush2.bf16.msra.mxu0 %v544
        %682 = vmatprep.subr.bf16.mxu0 0
        %683 = vmatpush2.bf16.msra.mxu0 %v543
        %684 = vmatprep.subr.bf16.mxu0 0
        %685 = vmatpush2.bf16.msra.mxu0 %v542
        %686 = vmatprep.subr.bf16.mxu0 0
        %687 = vmatpush2.bf16.msra.mxu0 %v541
        %688 = vmatprep.mubr.bf16.mxu0 %v349
        %689 = vmatmul.mubr.bf16.gmra.mxu0 %v348
        %v690 = vpop.f32.mrf.mxu0
        %v691 = vadd.f32 %v634, %v690
        %v692 = vpop.f32.mrf.mxu0
        %v693 = vpop.f32.mrf.mxu0
        %v694 = vadd.f32 %v637, %v693
        %v695 = vpop.f32.mrf.mxu0
        %696 = vmatprep.mubr.bf16.mxu0 %v354
        %697 = vmatmul.mubr.bf16.gmra.mxu0 %v353
        %v698 = vpop.f32.mrf.mxu0
        %v699 = vadd.f32 %v642, %v698
        %v700 = vpop.f32.mrf.mxu0
        %v701 = vpop.f32.mrf.mxu0
        %v702 = vadd.f32 %v645, %v701
        %v703 = vpop.f32.mrf.mxu0
        %704 = vmatprep.mubr.bf16.mxu0 %v359
        %705 = vmatmul.mubr.bf16.gmra.mxu0 %v358
        %v706 = vpop.f32.mrf.mxu0
        %v707 = vadd.f32 %v650, %v706
        %v708 = vpop.f32.mrf.mxu0
        %v709 = vpop.f32.mrf.mxu0
        %v710 = vadd.f32 %v653, %v709
        %v711 = vpop.f32.mrf.mxu0
        %712 = vdwg.mxu0
        %713 = vmatprep.subr.bf16.mxu0 0
        %714 = vmatpush1.bf16.msra.mxu0 0
        %715 = vmatprep.subr.bf16.mxu0 0
        %716 = vmatpush1.bf16.msra.mxu0 0
        %717 = vmatprep.subr.bf16.mxu0 0
        %718 = vmatpush1.bf16.msra.mxu0 0
        %719 = vmatprep.subr.bf16.mxu0 0
        %720 = vmatpush1.bf16.msra.mxu0 0
        %721 = vmatprep.subr.bf16.mxu0 0
        %722 = vmatpush1.bf16.msra.mxu0 %v552
        %723 = vmatprep.subr.bf16.mxu0 0
        %724 = vmatpush1.bf16.msra.mxu0 %v551
        %725 = vmatprep.subr.bf16.mxu0 0
        %726 = vmatpush1.bf16.msra.mxu0 %v550
        %727 = vmatprep.subr.bf16.mxu0 0
        %728 = vmatpush1.bf16.msra.mxu0 %v549
        %729 = vmatprep.subr.bf16.mxu0 0
        %730 = vmatpush2.bf16.msra.mxu0 0
        %731 = vmatprep.subr.bf16.mxu0 0
        %732 = vmatpush2.bf16.msra.mxu0 0
        %733 = vmatprep.subr.bf16.mxu0 0
        %734 = vmatpush2.bf16.msra.mxu0 0
        %735 = vmatprep.subr.bf16.mxu0 0
        %736 = vmatpush2.bf16.msra.mxu0 0
        %737 = vmatprep.subr.bf16.mxu0 0
        %738 = vmatpush2.bf16.msra.mxu0 0
        %739 = vmatprep.subr.bf16.mxu0 0
        %740 = vmatpush2.bf16.msra.mxu0 0
        %741 = vmatprep.subr.bf16.mxu0 0
        %742 = vmatpush2.bf16.msra.mxu0 0
        %743 = vmatprep.subr.bf16.mxu0 0
        %744 = vmatpush2.bf16.msra.mxu0 0
        %745 = vmatprep.mubr.bf16.mxu0 0
        %746 = vmatmul.mubr.bf16.gmra.mxu0 %v591
        %v747 = vpop.f32.mrf.mxu0
        %v748 = vadd.f32 %v691, %v747
        %v749 = vpop.f32.mrf.mxu0
        %v750 = vpop.f32.mrf.mxu0
        %v751 = vadd.f32 %v694, %v750
        %v752 = vpop.f32.mrf.mxu0
        %753 = vmatprep.mubr.bf16.mxu0 0
        %754 = vmatmul.mubr.bf16.gmra.mxu0 %v594
        %v755 = vpop.f32.mrf.mxu0
        %v756 = vadd.f32 %v699, %v755
        %v757 = vpop.f32.mrf.mxu0
        %v758 = vpop.f32.mrf.mxu0
        %v759 = vadd.f32 %v702, %v758
        %v760 = vpop.f32.mrf.mxu0
        %761 = vmatprep.mubr.bf16.mxu0 0
        %762 = vmatmul.mubr.bf16.gmra.mxu0 %v597
        %v763 = vpop.f32.mrf.mxu0
        %v764 = vadd.f32 %v707, %v763
        %v765 = vpop.f32.mrf.mxu0
        %v766 = vpop.f32.mrf.mxu0
        %v767 = vadd.f32 %v710, %v766
        %v768 = vpop.f32.mrf.mxu0
        %769 = vdwg.mxu0
        %v770 = vmax.f32 %v748, 0.0
        %v771 = vmax.f32 %v751, 0.0
        %v772 = vmax.f32 %v756, 0.0
        %v773 = vmax.f32 %v759, 0.0
        %v774 = vmax.f32 %v764, 0.0
        %v775 = vmax.f32 %v767, 0.0
        %v776 = vpack.c.bf16 %v771, %v770
        %v777 = vpack.c.bf16 %v773, %v772
        %v778 = vpack.c.bf16 %v775, %v774
        %v782 = vunpack.c.l.b16 %v776
        %v783 = vunpack.c.h.b16 %v776
        %v784 = vunpack.c.l.b16 %v777
        %v785 = vunpack.c.h.b16 %v777
        %v786 = vunpack.c.l.b16 %v778
        %v787 = vunpack.c.h.b16 %v778
        %v788 = vpack.c.b16 %v782, %v782
        %v789 = vpack.c.b16 %v783, %v783
        %v790 = vpack.c.b16 %v784, %v784
        %v791 = vpack.c.b16 %v785, %v785
        %v792 = vpack.c.b16 %v786, %v786
        %v793 = vpack.c.b16 %v787, %v787
        %vm800 = vcmask 257024
        %801 = vst.msk [vmem:[%s177] sm:$0xf] %vm800, %v788
        %802 = vst.msk [vmem:[%s177 + $0x4] sm:$0xf] %vm800, %v789
        %803 = vst.msk [vmem:[%s177 + $0x8] sm:$0xf] %vm800, %v790
        %804 = vst.msk [vmem:[%s177 + $0xc] sm:$0xf] %vm800, %v791
        %805 = vst.msk [vmem:[%s177 + $0x10] sm:$0xf] %vm800, %v792
        %806 = vst.msk [vmem:[%s177 + $0x14] sm:$0xf] %vm800, %v793
        %s807 = sand.u32 %s90, 1
        %s808 = sand.u32 %s90, 1
        %s809 = smul.addr %s808, 24
        %s810 = scalar_lea.vmem [#allocation2], %s809
        // Predicated region
        $region33: #{cnn_policy_forward.6} parent=31 // pred_check
          %p811 = pneg %p100
        $region34: #{cnn_policy_forward.6} parent=31 // pred_check_branch
          %813 = sbr.rel (%p811) target = $region36
        $region35: #{cnn_policy_forward.6} parent=31 // pred_region
          %s814 = smul.u32 6, %s14
          %s815 = ssub.s32 13, %s814
          %p816 = scmp.lt.s32.totalorder %s815, 6
          %s817 = scalar_select %p816, %s815, 6
          %s818 = smul.u32 64, %s817
          %p819 = scmp.ne.s32.totalorder 0, %s818
          %s820 = smul.addr %s814, 4
          %s821 = scalar_lea.vmem %s3, %s820
          // Predicated region
          $region37: #{cnn_policy_forward.6} parent=35 // pred_check
            %p822 = pneg %p819
          $region38: #{cnn_policy_forward.6} parent=35 // pred_check_branch
            %824 = sbr.rel (%p822) target = $region40
          $region39: #{cnn_policy_forward.6} parent=35 // pred_region
            // Predicated region
            $region41: #{cnn_policy_forward.6} parent=39 // pred_check
              _
            $region42: #{cnn_policy_forward.6} parent=39 // pred_check_branch
              %826 = sbr.rel target = $region44
            $region43: #{cnn_policy_forward.6} parent=39 // pred_region
              // Predicated region
              $region63: #{cnn_policy_forward.6} parent=43 // pred_check
                _
              $region64: #{cnn_policy_forward.6} parent=43 // pred_check_branch
                %887 = sbr.rel (0) target = $region66
              $region65: #{cnn_policy_forward.6} parent=43 // pred_region
                %s889 = ssub.s32 16, 1
                %s890 = sdiv.u32.pop %s817, 6
                %s891 = srem.u32.pop %s817, 6
                // While loop
                $region67: #{cnn_policy_forward.6} parent=65 // loop_pre_header
                  _
                $region68: #{cnn_policy_forward.6} parent=65 // loop_header
                  %s893 = sphi 0, %s895
                  %p894 = scmp.ge.s32.totalorder %s893, %s890
                  %s898 = sphi 0, %s915
                  %s899 = sphi %s810, %s918
                  %s900 = sphi %s821, %s919
                $region69: #{cnn_policy_forward.6} parent=65 // loop_header_branch
                  %897 = sbr.rel (%p894) target = $region73
                $region70: #{cnn_policy_forward.6} parent=65 // loop_body
                  %v901 = vld [vmem:[%s899] sm:%s889]
                  %902 = vst [vmem:[%s900] sm:%s889] %v901
                  %v903 = vld [vmem:[%s899 + $0x4] sm:%s889]
                  %904 = vst [vmem:[%s900 + $0x4] sm:%s889] %v903
                  %v905 = vld [vmem:[%s899 + $0x8] sm:%s889]
                  %906 = vst [vmem:[%s900 + $0x8] sm:%s889] %v905
                  %v907 = vld [vmem:[%s899 + $0xc] sm:%s889]
                  %908 = vst [vmem:[%s900 + $0xc] sm:%s889] %v907
                  %v909 = vld [vmem:[%s899 + $0x10] sm:%s889]
                  %910 = vst [vmem:[%s900 + $0x10] sm:%s889] %v909
                  %v911 = vld [vmem:[%s899 + $0x14] sm:%s889]
                  %912 = vst [vmem:[%s900 + $0x14] sm:%s889] %v911
                  %s913 = sadd.s32 1, %s898
                  %p914 = scmp.ge.s32.totalorder %s913, %s890
                  %s915 = scalar_select %p914, 0, %s913
                  %s916 = smul.u32 %s915, 24
                  %s917 = smul.u32 %s915, 24
                  %s918 = scalar_lea.vmem %s810, %s916 [#allocation2]
                  %s919 = scalar_lea.vmem %s821, %s917
                $region71: #{cnn_policy_forward.6} parent=65 // loop_footer
                  %s895 = sadd.s32 %s893, 1
                $region72: #{cnn_policy_forward.6} parent=65 // loop_footer_branch
                  %892 = sbr.rel target = $region68
                $region73: #{cnn_policy_forward.6} parent=65 // loop_exit
                  _
                %s920 = sdiv.u32.pop %s817, 6
                %s921 = srem.u32.pop %s817, 6
                %s922 = smul.u32 %s920, 6
                %s923 = smul.u32 4, %s922
                %s924 = scalar_lea.vmem %s810, %s923 [#allocation2]
                %s925 = smul.u32 4, %s922
                %s926 = scalar_lea.vmem %s821, %s925
                // While loop
                $region74: #{cnn_policy_forward.6} parent=65 // loop_pre_header
                  _
                $region75: #{cnn_policy_forward.6} parent=65 // loop_header
                  %s928 = sphi 0, %s930
                  %p929 = scmp.ge.s32.totalorder %s928, %s921
                  %s933 = sphi 0, %s940
                  %s934 = sphi %s924, %s943
                  %s935 = sphi %s926, %s944
                $region76: #{cnn_policy_forward.6} parent=65 // loop_header_branch
                  %932 = sbr.rel (%p929) target = $region80
                $region77: #{cnn_policy_forward.6} parent=65 // loop_body
                  %v936 = vld [vmem:[%s934] sm:%s889]
                  %937 = vst [vmem:[%s935] sm:%s889] %v936
                  %s938 = sadd.s32 1, %s933
                  %p939 = scmp.ge.s32.totalorder %s938, %s921
                  %s940 = scalar_select %p939, 0, %s938
                  %s941 = smul.u32 %s940, 4
                  %s942 = smul.u32 %s940, 4
                  %s943 = scalar_lea.vmem %s924, %s941 [#allocation2]
                  %s944 = scalar_lea.vmem %s926, %s942
                $region78: #{cnn_policy_forward.6} parent=65 // loop_footer
                  %s930 = sadd.s32 %s928, 1
                $region79: #{cnn_policy_forward.6} parent=65 // loop_footer_branch
                  %927 = sbr.rel target = $region75
                $region80: #{cnn_policy_forward.6} parent=65 // loop_exit
                  _
              $region66: #{cnn_policy_forward.6} parent=43 // pred_fallthru
                _
            $region44: #{cnn_policy_forward.6} parent=39 // pred_fallthru
              _
            // Predicated region
            $region45: #{cnn_policy_forward.6} parent=39 // pred_check
              _
            $region46: #{cnn_policy_forward.6} parent=39 // pred_check_branch
              %828 = sbr.rel (0) target = $region48
            $region47: #{cnn_policy_forward.6} parent=39 // pred_region
              %s830 = ssub.s32 16, 1
              %s831 = sdiv.u32.pop %s817, 6
              %s832 = srem.u32.pop %s817, 6
              // While loop
              $region49: #{cnn_policy_forward.6} parent=47 // loop_pre_header
                _
              $region50: #{cnn_policy_forward.6} parent=47 // loop_header
                %s834 = sphi 0, %s836
                %p835 = scmp.ge.s32.totalorder %s834, %s831
                %s839 = sphi 0, %s856
                %s840 = sphi %s810, %s859
                %s841 = sphi %s821, %s860
              $region51: #{cnn_policy_forward.6} parent=47 // loop_header_branch
                %838 = sbr.rel (%p835) target = $region55
              $region52: #{cnn_policy_forward.6} parent=47 // loop_body
                %v842 = vld [vmem:[%s840] sm:%s830]
                %843 = vst [vmem:[%s841] sm:%s830] %v842
                %v844 = vld [vmem:[%s840 + $0x4] sm:%s830]
                %845 = vst [vmem:[%s841 + $0x4] sm:%s830] %v844
                %v846 = vld [vmem:[%s840 + $0x8] sm:%s830]
                %847 = vst [vmem:[%s841 + $0x8] sm:%s830] %v846
                %v848 = vld [vmem:[%s840 + $0xc] sm:%s830]
                %849 = vst [vmem:[%s841 + $0xc] sm:%s830] %v848
                %v850 = vld [vmem:[%s840 + $0x10] sm:%s830]
                %851 = vst [vmem:[%s841 + $0x10] sm:%s830] %v850
                %v852 = vld [vmem:[%s840 + $0x14] sm:%s830]
                %853 = vst [vmem:[%s841 + $0x14] sm:%s830] %v852
                %s854 = sadd.s32 1, %s839
                %p855 = scmp.ge.s32.totalorder %s854, %s831
                %s856 = scalar_select %p855, 0, %s854
                %s857 = smul.u32 %s856, 24
                %s858 = smul.u32 %s856, 24
                %s859 = scalar_lea.vmem %s810, %s857 [#allocation2]
                %s860 = scalar_lea.vmem %s821, %s858
              $region53: #{cnn_policy_forward.6} parent=47 // loop_footer
                %s836 = sadd.s32 %s834, 1
              $region54: #{cnn_policy_forward.6} parent=47 // loop_footer_branch
                %833 = sbr.rel target = $region50
              $region55: #{cnn_policy_forward.6} parent=47 // loop_exit
                _
              %s861 = sdiv.u32.pop %s817, 6
              %s862 = srem.u32.pop %s817, 6
              %s863 = smul.u32 %s861, 6
              %s864 = smul.u32 4, %s863
              %s865 = scalar_lea.vmem %s810, %s864 [#allocation2]
              %s866 = smul.u32 4, %s863
              %s867 = scalar_lea.vmem %s821, %s866
              // While loop
              $region56: #{cnn_policy_forward.6} parent=47 // loop_pre_header
                _
              $region57: #{cnn_policy_forward.6} parent=47 // loop_header
                %s869 = sphi 0, %s871
                %p870 = scmp.ge.s32.totalorder %s869, %s862
                %s874 = sphi 0, %s881
                %s875 = sphi %s865, %s884
                %s876 = sphi %s867, %s885
              $region58: #{cnn_policy_forward.6} parent=47 // loop_header_branch
                %873 = sbr.rel (%p870) target = $region62
              $region59: #{cnn_policy_forward.6} parent=47 // loop_body
                %v877 = vld [vmem:[%s875] sm:%s830]
                %878 = vst [vmem:[%s876] sm:%s830] %v877
                %s879 = sadd.s32 1, %s874
                %p880 = scmp.ge.s32.totalorder %s879, %s862
                %s881 = scalar_select %p880, 0, %s879
                %s882 = smul.u32 %s881, 4
                %s883 = smul.u32 %s881, 4
                %s884 = scalar_lea.vmem %s865, %s882 [#allocation2]
                %s885 = scalar_lea.vmem %s867, %s883
              $region60: #{cnn_policy_forward.6} parent=47 // loop_footer
                %s871 = sadd.s32 %s869, 1
              $region61: #{cnn_policy_forward.6} parent=47 // loop_footer_branch
                %868 = sbr.rel target = $region57
              $region62: #{cnn_policy_forward.6} parent=47 // loop_exit
                _
            $region48: #{cnn_policy_forward.6} parent=39 // pred_fallthru
              _
          $region40: #{cnn_policy_forward.6} parent=35 // pred_fallthru
            _
          %945 = vnop
        $region36: #{cnn_policy_forward.6} parent=31 // pred_fallthru
          _
      $region32: #{cnn_policy_forward.6} parent=5 // pred_fallthru
        _
      %p946 = scmp.le.s32.totalorder 2, %s9
      // Predicated region
      $region81: #{cnn_policy_forward.6} parent=5 // pred_check
        %p947 = pneg %p946
      $region82: #{cnn_policy_forward.6} parent=5 // pred_check_branch
        %949 = sbr.rel (%p947) target = $region84
      $region83: #{cnn_policy_forward.6} parent=5 // pred_region
        %s950 = ssub.s32 %s9, 2
        // Predicated region
        $region85: #{cnn_policy_forward.6} parent=83 // pred_check
          %p951 = pneg %p106
        $region86: #{cnn_policy_forward.6} parent=83 // pred_check_branch
          %953 = sbr.rel (%p951) target = $region88
        $region87: #{cnn_policy_forward.6} parent=83 // pred_region
          %s954 = sand.u32 %s91, 1
          %s955 = sand.u32 %s91, 1
          %s956 = smul.addr %s955, 24
          %s957 = scalar_lea.vmem [#allocation2], %s956
        $region88: #{cnn_policy_forward.6} parent=83 // pred_fallthru
          _
      $region84: #{cnn_policy_forward.6} parent=5 // pred_fallthru
        _
    $region6: #{cnn_policy_forward.6} parent=1 // loop_footer
      %s13 = sadd.s32 1, %s9
    $region7: #{cnn_policy_forward.6} parent=1 // loop_footer_branch
      %8 = sbr.rel target = $region3
    $region8: #{cnn_policy_forward.6} parent=1 // loop_exit
      _

// kernel: cnn_policy_forward.7
$region0: #{cnn_policy_forward.7}
  #allocation0 [shape = 'u32[]', space=smem, size = 0x4, offset = 0x4, fixed_abs, tag = 'smem constant byte address 0x4 - core index']
  #allocation1 [shape = 'u32[144,128]{1,0:T(1,128)}', space=vmem, size = 0x12000, scoped, tag = 'internal scratch']
  #allocation2 [shape = 'f32[1,1]{1,0:T(1,128)S(1)}', space=vmem, size = 0x200, scoped, tag = 'scoped memory for cnn_policy_forward.7']
  %s0 = inlined_call_operand.vmem [shape: bf16[2,1568], index: 0, kind: input, shape index: {}]
  %s1 = inlined_call_operand.vmem [shape: bf16[1568,512], index: 1, kind: input, shape index: {}]
  %s2 = inlined_call_operand.vmem [shape: f32[1,512], index: 2, kind: input, shape index: {}]
  %s3 = inlined_call_operand.vmem [shape: f32[1,512], index: 3, kind: input, shape index: {}]
  %s4 = inlined_call_operand.<no memory space> [shape: f32[1,1], index: 4, kind: input, shape index: {}]
  %s5 = inlined_call_operand.hbm [shape: bf16[2,512], index: 5, kind: output, shape index: {0}]
  %s6 = inlined_call_operand.vmem [shape: f32[2,1], index: 6, kind: output, shape index: {1}]
  %7 = xla_tuple %s5, %s6
  %s8 = sld [smem:[#allocation0]]
  $region38: #{cnn_policy_forward.7} parent=0
    _
  %s10 = ssub.s32 1, %s8
  %s11 = scalar_select 0, %s10, %s8
  %v12 = vstv %s4
  %13 = vst [vmem:[#allocation2] sm:$0x1] %v12
  $region1: #{cnn_policy_forward.7} parent=0
    #allocation3 [shape = 'u8[2048]{0}', space=vmem, size = 0x800, scoped, tag = 'output window, operand 0, single buffered']
    #allocation4 [shape = 's32[1]{0}', space=sflag, size = 0x4, scoped, tag = 'scoped memory for cnn_policy_forward.7']
    %14 = vsyncpa [#allocation4], 0
    // Predicated region
    $region2: #{cnn_policy_forward.7} parent=1 // pred_check
      _
    $region3: #{cnn_policy_forward.7} parent=1 // pred_check_branch
      %16 = sbr.rel (0) target = $region5
    $region4: #{cnn_policy_forward.7} parent=1 // pred_region
      _
    $region5: #{cnn_policy_forward.7} parent=1 // pred_fallthru
      _
    // Predicated region
    $region6: #{cnn_policy_forward.7} parent=1 // pred_check
      _
    $region7: #{cnn_policy_forward.7} parent=1 // pred_check_branch
      %18 = sbr.rel (0) target = $region9
    $region8: #{cnn_policy_forward.7} parent=1 // pred_region
      _
    $region9: #{cnn_policy_forward.7} parent=1 // pred_fallthru
      _
    // Predicated region
    $region10: #{cnn_policy_forward.7} parent=1 // pred_check
      _
    $region11: #{cnn_policy_forward.7} parent=1 // pred_check_branch
      %20 = sbr.rel (0) target = $region13
    $region12: #{cnn_policy_forward.7} parent=1 // pred_region
      _
    $region13: #{cnn_policy_forward.7} parent=1 // pred_fallthru
      _
    // Predicated region
    $region14: #{cnn_policy_forward.7} parent=1 // pred_check
      _
    $region15: #{cnn_policy_forward.7} parent=1 // pred_check_branch
      %22 = sbr.rel (0) target = $region17
    $region16: #{cnn_policy_forward.7} parent=1 // pred_region
      _
    $region17: #{cnn_policy_forward.7} parent=1 // pred_fallthru
      _
    // Predicated region
    $region18: #{cnn_policy_forward.7} parent=1 // pred_check
      _
    $region19: #{cnn_policy_forward.7} parent=1 // pred_check_branch
      %24 = sbr.rel (0) target = $region21
    $region20: #{cnn_policy_forward.7} parent=1 // pred_region
      _
    $region21: #{cnn_policy_forward.7} parent=1 // pred_fallthru
      _
    %v26 = vld [vmem:[%s0] sm:$0xff]
    %v27 = vld [vmem:[%s0 + $0x8] sm:$0x1f]
    %v28 = vld [vmem:[%s1] sm:$0xff]
    %v29 = vld [vmem:[%s1 + $0x8] sm:$0xff]
    %v30 = vld [vmem:[%s1 + $0x10] sm:$0xff]
    %v31 = vld [vmem:[%s1 + $0x18] sm:$0xff]
    %v32 = vld [vmem:[%s1 + $0x20] sm:$0xff]
    %v33 = vld [vmem:[%s1 + $0x28] sm:$0xff]
    %v34 = vld [vmem:[%s1 + $0x30] sm:$0xff]
    %v35 = vld [vmem:[%s1 + $0x38] sm:$0xff]
    %v36 = vld [vmem:[%s1 + $0x40] sm:$0xff]
    %v37 = vld [vmem:[%s1 + $0x48] sm:$0xff]
    %v38 = vld [vmem:[%s1 + $0x50] sm:$0xff]
    %v39 = vld [vmem:[%s1 + $0x58] sm:$0xff]
    %v40 = vld [vmem:[%s1 + $0x60] sm:$0xff]
    %v41 = vld [vmem:[%s1 + $0x68] sm:$0xff]
    %v42 = vld [vmem:[%s1 + $0x70] sm:$0xff]
    %v43 = vld [vmem:[%s1 + $0x78] sm:$0xff]
    %v44 = vld [vmem:[%s1 + $0x80] sm:$0xff]
    %v45 = vld [vmem:[%s1 + $0x88] sm:$0xff]
    %v46 = vld [vmem:[%s1 + $0x90] sm:$0xff]
    %v47 = vld [vmem:[%s1 + $0x98] sm:$0xff]
    %v48 = vld [vmem:[%s1 + $0xa0] sm:$0xff]
    %v49 = vld [vmem:[%s1 + $0xa8] sm:$0xff]
    %v50 = vld [vmem:[%s1 + $0xb0] sm:$0xff]
    %v51 = vld [vmem:[%s1 + $0xb8] sm:$0xff]
    %v52 = vld [vmem:[%s1 + $0xc0] sm:$0xff]
    %v53 = vld [vmem:[%s1 + $0xc8] sm:$0xff]
    %v54 = vld [vmem:[%s1 + $0xd0] sm:$0xff]
    %v55 = vld [vmem:[%s1 + $0xd8] sm:$0xff]
    %v56 = vld [vmem:[%s1 + $0xe0] sm:$0xff]
    %v57 = vld [vmem:[%s1 + $0xe8] sm:$0xff]
    %v58 = vld [vmem:[%s1 + $0xf0] sm:$0xff]
    %v59 = vld [vmem:[%s1 + $0xf8] sm:$0xff]
    %v60 = vld [vmem:[%s1 + $0x100] sm:$0xff]
    %v61 = vld [vmem:[%s1 + $0x108] sm:$0xff]
    %v62 = vld [vmem:[%s1 + $0x110] sm:$0xff]
    %v63 = vld [vmem:[%s1 + $0x118] sm:$0xff]
    %v64 = vld [vmem:[%s1 + $0x120] sm:$0xff]
    %v65 = vld [vmem:[%s1 + $0x128] sm:$0xff]
    %v66 = vld [vmem:[%s1 + $0x130] sm:$0xff]
    %v67 = vld [vmem:[%s1 + $0x138] sm:$0xff]
    %v68 = vld [vmem:[%s1 + $0x140] sm:$0xff]
    %v69 = vld [vmem:[%s1 + $0x148] sm:$0xff]
    %v70 = vld [vmem:[%s1 + $0x150] sm:$0xff]
    %v71 = vld [vmem:[%s1 + $0x158] sm:$0xff]
    %v72 = vld [vmem:[%s1 + $0x160] sm:$0xff]
    %v73 = vld [vmem:[%s1 + $0x168] sm:$0xff]
    %v74 = vld [vmem:[%s1 + $0x170] sm:$0xff]
    %v75 = vld [vmem:[%s1 + $0x178] sm:$0xff]
    %v76 = vld [vmem:[%s1 + $0x180] sm:$0xff]
    %v77 = vld [vmem:[%s1 + $0x188] sm:$0xff]
    %v78 = vld [vmem:[%s1 + $0x190] sm:$0xff]
    %v79 = vld [vmem:[%s1 + $0x198] sm:$0xff]
    %v80 = vld [vmem:[%s1 + $0x1a0] sm:$0xff]
    %v81 = vld [vmem:[%s1 + $0x1a8] sm:$0xff]
    %v82 = vld [vmem:[%s1 + $0x1b0] sm:$0xff]
    %v83 = vld [vmem:[%s1 + $0x1b8] sm:$0xff]
    %v84 = vld [vmem:[%s1 + $0x1c0] sm:$0xff]
    %v85 = vld [vmem:[%s1 + $0x1c8] sm:$0xff]
    %v86 = vld [vmem:[%s1 + $0x1d0] sm:$0xff]
    %v87 = vld [vmem:[%s1 + $0x1d8] sm:$0xff]
    %v88 = vld [vmem:[%s1 + $0x1e0] sm:$0xff]
    %v89 = vld [vmem:[%s1 + $0x1e8] sm:$0xff]
    %v90 = vld [vmem:[%s1 + $0x1f0] sm:$0xff]
    %v91 = vld [vmem:[%s1 + $0x1f8] sm:$0xff]
    %v92 = vld [vmem:[%s1 + $0x200] sm:$0xff]
    %v93 = vld [vmem:[%s1 + $0x208] sm:$0xff]
    %v94 = vld [vmem:[%s1 + $0x210] sm:$0xff]
    %v95 = vld [vmem:[%s1 + $0x218] sm:$0xff]
    %v96 = vld [vmem:[%s1 + $0x220] sm:$0xff]
    %v97 = vld [vmem:[%s1 + $0x228] sm:$0xff]
    %v98 = vld [vmem:[%s1 + $0x230] sm:$0xff]
    %v99 = vld [vmem:[%s1 + $0x238] sm:$0xff]
    %v100 = vld [vmem:[%s1 + $0x240] sm:$0xff]
    %v101 = vld [vmem:[%s1 + $0x248] sm:$0xff]
    %v102 = vld [vmem:[%s1 + $0x250] sm:$0xff]
    %v103 = vld [vmem:[%s1 + $0x258] sm:$0xff]
    %v104 = vld [vmem:[%s1 + $0x260] sm:$0xff]
    %v105 = vld [vmem:[%s1 + $0x268] sm:$0xff]
    %v106 = vld [vmem:[%s1 + $0x270] sm:$0xff]
    %v107 = vld [vmem:[%s1 + $0x278] sm:$0xff]
    %v108 = vld [vmem:[%s1 + $0x280] sm:$0xff]
    %v109 = vld [vmem:[%s1 + $0x288] sm:$0xff]
    %v110 = vld [vmem:[%s1 + $0x290] sm:$0xff]
    %v111 = vld [vmem:[%s1 + $0x298] sm:$0xff]
    %v112 = vld [vmem:[%s1 + $0x2a0] sm:$0xff]
    %v113 = vld [vmem:[%s1 + $0x2a8] sm:$0xff]
    %v114 = vld [vmem:[%s1 + $0x2b0] sm:$0xff]
    %v115 = vld [vmem:[%s1 + $0x2b8] sm:$0xff]
    %v116 = vld [vmem:[%s1 + $0x2c0] sm:$0xff]
    %v117 = vld [vmem:[%s1 + $0x2c8] sm:$0xff]
    %v118 = vld [vmem:[%s1 + $0x2d0] sm:$0xff]
    %v119 = vld [vmem:[%s1 + $0x2d8] sm:$0xff]
    %v120 = vld [vmem:[%s1 + $0x2e0] sm:$0xff]
    %v121 = vld [vmem:[%s1 + $0x2e8] sm:$0xff]
    %v122 = vld [vmem:[%s1 + $0x2f0] sm:$0xff]
    %v123 = vld [vmem:[%s1 + $0x2f8] sm:$0xff]
    %v124 = vld [vmem:[%s1 + $0x300] sm:$0xff]
    %v125 = vld [vmem:[%s1 + $0x308] sm:$0xff]
    %v126 = vld [vmem:[%s1 + $0x310] sm:$0xff]
    %v127 = vld [vmem:[%s1 + $0x318] sm:$0xff]
    %v128 = vld [vmem:[%s1 + $0x320] sm:$0xff]
    %v129 = vld [vmem:[%s1 + $0x328] sm:$0xff]
    %v130 = vld [vmem:[%s1 + $0x330] sm:$0xff]
    %v131 = vld [vmem:[%s1 + $0x338] sm:$0xff]
    %v132 = vld [vmem:[%s1 + $0x340] sm:$0xff]
    %v133 = vld [vmem:[%s1 + $0x348] sm:$0xff]
    %v134 = vld [vmem:[%s1 + $0x350] sm:$0xff]
    %v135 = vld [vmem:[%s1 + $0x358] sm:$0xff]
    %v136 = vld [vmem:[%s1 + $0x360] sm:$0xff]
    %v137 = vld [vmem:[%s1 + $0x368] sm:$0xff]
    %v138 = vld [vmem:[%s1 + $0x370] sm:$0xff]
    %v139 = vld [vmem:[%s1 + $0x378] sm:$0xff]
    %v140 = vld [vmem:[%s1 + $0x380] sm:$0xff]
    %v141 = vld [vmem:[%s1 + $0x388] sm:$0xff]
    %v142 = vld [vmem:[%s1 + $0x390] sm:$0xff]
    %v143 = vld [vmem:[%s1 + $0x398] sm:$0xff]
    %v144 = vld [vmem:[%s1 + $0x3a0] sm:$0xff]
    %v145 = vld [vmem:[%s1 + $0x3a8] sm:$0xff]
    %v146 = vld [vmem:[%s1 + $0x3b0] sm:$0xff]
    %v147 = vld [vmem:[%s1 + $0x3b8] sm:$0xff]
    %v148 = vld [vmem:[%s1 + $0x3c0] sm:$0xff]
    %v149 = vld [vmem:[%s1 + $0x3c8] sm:$0xff]
    %v150 = vld [vmem:[%s1 + $0x3d0] sm:$0xff]
    %v151 = vld [vmem:[%s1 + $0x3d8] sm:$0xff]
    %v152 = vld [vmem:[%s1 + $0x3e0] sm:$0xff]
    %v153 = vld [vmem:[%s1 + $0x3e8] sm:$0xff]
    %v154 = vld [vmem:[%s1 + $0x3f0] sm:$0xff]
    %v155 = vld [vmem:[%s1 + $0x3f8] sm:$0xff]
    %v156 = vld [vmem:[%s1 + $0x400] sm:$0xff]
    %v157 = vld [vmem:[%s1 + $0x408] sm:$0xff]
    %v158 = vld [vmem:[%s1 + $0x410] sm:$0xff]
    %v159 = vld [vmem:[%s1 + $0x418] sm:$0xff]
    %v160 = vld [vmem:[%s1 + $0x420] sm:$0xff]
    %v161 = vld [vmem:[%s1 + $0x428] sm:$0xff]
    %v162 = vld [vmem:[%s1 + $0x430] sm:$0xff]
    %v163 = vld [vmem:[%s1 + $0x438] sm:$0xff]
    %v164 = vld [vmem:[%s1 + $0x440] sm:$0xff]
    %v165 = vld [vmem:[%s1 + $0x448] sm:$0xff]
    %v166 = vld [vmem:[%s1 + $0x450] sm:$0xff]
    %v167 = vld [vmem:[%s1 + $0x458] sm:$0xff]
    %v168 = vld [vmem:[%s1 + $0x460] sm:$0xff]
    %v169 = vld [vmem:[%s1 + $0x468] sm:$0xff]
    %v170 = vld [vmem:[%s1 + $0x470] sm:$0xff]
    %v171 = vld [vmem:[%s1 + $0x478] sm:$0xff]
    %v172 = vld [vmem:[%s1 + $0x480] sm:$0xff]
    %v173 = vld [vmem:[%s1 + $0x488] sm:$0xff]
    %v174 = vld [vmem:[%s1 + $0x490] sm:$0xff]
    %v175 = vld [vmem:[%s1 + $0x498] sm:$0xff]
    %v176 = vld [vmem:[%s1 + $0x4a0] sm:$0xff]
    %v177 = vld [vmem:[%s1 + $0x4a8] sm:$0xff]
    %v178 = vld [vmem:[%s1 + $0x4b0] sm:$0xff]
    %v179 = vld [vmem:[%s1 + $0x4b8] sm:$0xff]
    %v180 = vld [vmem:[%s1 + $0x4c0] sm:$0xff]
    %v181 = vld [vmem:[%s1 + $0x4c8] sm:$0xff]
    %v182 = vld [vmem:[%s1 + $0x4d0] sm:$0xff]
    %v183 = vld [vmem:[%s1 + $0x4d8] sm:$0xff]
    %v184 = vld [vmem:[%s1 + $0x4e0] sm:$0xff]
    %v185 = vld [vmem:[%s1 + $0x4e8] sm:$0xff]
    %v186 = vld [vmem:[%s1 + $0x4f0] sm:$0xff]
    %v187 = vld [vmem:[%s1 + $0x4f8] sm:$0xff]
    %v188 = vld [vmem:[%s1 + $0x500] sm:$0xff]
    %v189 = vld [vmem:[%s1 + $0x508] sm:$0xff]
    %v190 = vld [vmem:[%s1 + $0x510] sm:$0xff]
    %v191 = vld [vmem:[%s1 + $0x518] sm:$0xff]
    %v192 = vld [vmem:[%s1 + $0x520] sm:$0xff]
    %v193 = vld [vmem:[%s1 + $0x528] sm:$0xff]
    %v194 = vld [vmem:[%s1 + $0x530] sm:$0xff]
    %v195 = vld [vmem:[%s1 + $0x538] sm:$0xff]
    %v196 = vld [vmem:[%s1 + $0x540] sm:$0xff]
    %v197 = vld [vmem:[%s1 + $0x548] sm:$0xff]
    %v198 = vld [vmem:[%s1 + $0x550] sm:$0xff]
    %v199 = vld [vmem:[%s1 + $0x558] sm:$0xff]
    %v200 = vld [vmem:[%s1 + $0x560] sm:$0xff]
    %v201 = vld [vmem:[%s1 + $0x568] sm:$0xff]
    %v202 = vld [vmem:[%s1 + $0x570] sm:$0xff]
    %v203 = vld [vmem:[%s1 + $0x578] sm:$0xff]
    %v204 = vld [vmem:[%s1 + $0x580] sm:$0xff]
    %v205 = vld [vmem:[%s1 + $0x588] sm:$0xff]
    %v206 = vld [vmem:[%s1 + $0x590] sm:$0xff]
    %v207 = vld [vmem:[%s1 + $0x598] sm:$0xff]
    %v208 = vld [vmem:[%s1 + $0x5a0] sm:$0xff]
    %v209 = vld [vmem:[%s1 + $0x5a8] sm:$0xff]
    %v210 = vld [vmem:[%s1 + $0x5b0] sm:$0xff]
    %v211 = vld [vmem:[%s1 + $0x5b8] sm:$0xff]
    %v212 = vld [vmem:[%s1 + $0x5c0] sm:$0xff]
    %v213 = vld [vmem:[%s1 + $0x5c8] sm:$0xff]
    %v214 = vld [vmem:[%s1 + $0x5d0] sm:$0xff]
    %v215 = vld [vmem:[%s1 + $0x5d8] sm:$0xff]
    %v216 = vld [vmem:[%s1 + $0x5e0] sm:$0xff]
    %v217 = vld [vmem:[%s1 + $0x5e8] sm:$0xff]
    %v218 = vld [vmem:[%s1 + $0x5f0] sm:$0xff]
    %v219 = vld [vmem:[%s1 + $0x5f8] sm:$0xff]
    %v220 = vld [vmem:[%s1 + $0x600] sm:$0xff]
    %v221 = vld [vmem:[%s1 + $0x608] sm:$0xff]
    %v222 = vld [vmem:[%s1 + $0x610] sm:$0xff]
    %v223 = vld [vmem:[%s1 + $0x618] sm:$0xff]
    %v224 = vld [vmem:[%s1 + $0x620] sm:$0xff]
    %v225 = vld [vmem:[%s1 + $0x628] sm:$0xff]
    %v226 = vld [vmem:[%s1 + $0x630] sm:$0xff]
    %v227 = vld [vmem:[%s1 + $0x638] sm:$0xff]
    %v228 = vld [vmem:[%s1 + $0x640] sm:$0xff]
    %v229 = vld [vmem:[%s1 + $0x648] sm:$0xff]
    %v230 = vld [vmem:[%s1 + $0x650] sm:$0xff]
    %v231 = vld [vmem:[%s1 + $0x658] sm:$0xff]
    %v232 = vld [vmem:[%s1 + $0x660] sm:$0xff]
    %v233 = vld [vmem:[%s1 + $0x668] sm:$0xff]
    %v234 = vld [vmem:[%s1 + $0x670] sm:$0xff]
    %v235 = vld [vmem:[%s1 + $0x678] sm:$0xff]
    %v236 = vld [vmem:[%s1 + $0x680] sm:$0xff]
    %v237 = vld [vmem:[%s1 + $0x688] sm:$0xff]
    %v238 = vld [vmem:[%s1 + $0x690] sm:$0xff]
    %v239 = vld [vmem:[%s1 + $0x698] sm:$0xff]
    %v240 = vld [vmem:[%s1 + $0x6a0] sm:$0xff]
    %v241 = vld [vmem:[%s1 + $0x6a8] sm:$0xff]
    %v242 = vld [vmem:[%s1 + $0x6b0] sm:$0xff]
    %v243 = vld [vmem:[%s1 + $0x6b8] sm:$0xff]
    %v244 = vld [vmem:[%s1 + $0x6c0] sm:$0xff]
    %v245 = vld [vmem:[%s1 + $0x6c8] sm:$0xff]
    %v246 = vld [vmem:[%s1 + $0x6d0] sm:$0xff]
    %v247 = vld [vmem:[%s1 + $0x6d8] sm:$0xff]
    %v248 = vld [vmem:[%s1 + $0x6e0] sm:$0xff]
    %v249 = vld [vmem:[%s1 + $0x6e8] sm:$0xff]
    %v250 = vld [vmem:[%s1 + $0x6f0] sm:$0xff]
    %v251 = vld [vmem:[%s1 + $0x6f8] sm:$0xff]
    %v252 = vld [vmem:[%s1 + $0x700] sm:$0xff]
    %v253 = vld [vmem:[%s1 + $0x708] sm:$0xff]
    %v254 = vld [vmem:[%s1 + $0x710] sm:$0xff]
    %v255 = vld [vmem:[%s1 + $0x718] sm:$0xff]
    %v256 = vld [vmem:[%s1 + $0x720] sm:$0xff]
    %v257 = vld [vmem:[%s1 + $0x728] sm:$0xff]
    %v258 = vld [vmem:[%s1 + $0x730] sm:$0xff]
    %v259 = vld [vmem:[%s1 + $0x738] sm:$0xff]
    %v260 = vld [vmem:[%s1 + $0x740] sm:$0xff]
    %v261 = vld [vmem:[%s1 + $0x748] sm:$0xff]
    %v262 = vld [vmem:[%s1 + $0x750] sm:$0xff]
    %v263 = vld [vmem:[%s1 + $0x758] sm:$0xff]
    %v264 = vld [vmem:[%s1 + $0x760] sm:$0xff]
    %v265 = vld [vmem:[%s1 + $0x768] sm:$0xff]
    %v266 = vld [vmem:[%s1 + $0x770] sm:$0xff]
    %v267 = vld [vmem:[%s1 + $0x778] sm:$0xff]
    %v268 = vld [vmem:[%s1 + $0x780] sm:$0xff]
    %v269 = vld [vmem:[%s1 + $0x788] sm:$0xff]
    %v270 = vld [vmem:[%s1 + $0x790] sm:$0xff]
    %v271 = vld [vmem:[%s1 + $0x798] sm:$0xff]
    %v272 = vld [vmem:[%s1 + $0x7a0] sm:$0xff]
    %v273 = vld [vmem:[%s1 + $0x7a8] sm:$0xff]
    %v274 = vld [vmem:[%s1 + $0x7b0] sm:$0xff]
    %v275 = vld [vmem:[%s1 + $0x7b8] sm:$0xff]
    %v276 = vld [vmem:[%s1 + $0x7c0] sm:$0xff]
    %v277 = vld [vmem:[%s1 + $0x7c8] sm:$0xff]
    %v278 = vld [vmem:[%s1 + $0x7d0] sm:$0xff]
    %v279 = vld [vmem:[%s1 + $0x7d8] sm:$0xff]
    %v280 = vld [vmem:[%s1 + $0x7e0] sm:$0xff]
    %v281 = vld [vmem:[%s1 + $0x7e8] sm:$0xff]
    %v282 = vld [vmem:[%s1 + $0x7f0] sm:$0xff]
    %v283 = vld [vmem:[%s1 + $0x7f8] sm:$0xff]
    %v284 = vld [vmem:[%s1 + $0x800] sm:$0xff]
    %v285 = vld [vmem:[%s1 + $0x808] sm:$0xff]
    %v286 = vld [vmem:[%s1 + $0x810] sm:$0xff]
    %v287 = vld [vmem:[%s1 + $0x818] sm:$0xff]
    %v288 = vld [vmem:[%s1 + $0x820] sm:$0xff]
    %v289 = vld [vmem:[%s1 + $0x828] sm:$0xff]
    %v290 = vld [vmem:[%s1 + $0x830] sm:$0xff]
    %v291 = vld [vmem:[%s1 + $0x838] sm:$0xff]
    %v292 = vld [vmem:[%s1 + $0x840] sm:$0xff]
    %v293 = vld [vmem:[%s1 + $0x848] sm:$0xff]
    %v294 = vld [vmem:[%s1 + $0x850] sm:$0xff]
    %v295 = vld [vmem:[%s1 + $0x858] sm:$0xff]
    %v296 = vld [vmem:[%s1 + $0x860] sm:$0xff]
    %v297 = vld [vmem:[%s1 + $0x868] sm:$0xff]
    %v298 = vld [vmem:[%s1 + $0x870] sm:$0xff]
    %v299 = vld [vmem:[%s1 + $0x878] sm:$0xff]
    %v300 = vld [vmem:[%s1 + $0x880] sm:$0xff]
    %v301 = vld [vmem:[%s1 + $0x888] sm:$0xff]
    %v302 = vld [vmem:[%s1 + $0x890] sm:$0xff]
    %v303 = vld [vmem:[%s1 + $0x898] sm:$0xff]
    %v304 = vld [vmem:[%s1 + $0x8a0] sm:$0xff]
    %v305 = vld [vmem:[%s1 + $0x8a8] sm:$0xff]
    %v306 = vld [vmem:[%s1 + $0x8b0] sm:$0xff]
    %v307 = vld [vmem:[%s1 + $0x8b8] sm:$0xff]
    %v308 = vld [vmem:[%s1 + $0x8c0] sm:$0xff]
    %v309 = vld [vmem:[%s1 + $0x8c8] sm:$0xff]
    %v310 = vld [vmem:[%s1 + $0x8d0] sm:$0xff]
    %v311 = vld [vmem:[%s1 + $0x8d8] sm:$0xff]
    %v312 = vld [vmem:[%s1 + $0x8e0] sm:$0xff]
    %v313 = vld [vmem:[%s1 + $0x8e8] sm:$0xff]
    %v314 = vld [vmem:[%s1 + $0x8f0] sm:$0xff]
    %v315 = vld [vmem:[%s1 + $0x8f8] sm:$0xff]
    %v316 = vld [vmem:[%s1 + $0x900] sm:$0xff]
    %v317 = vld [vmem:[%s1 + $0x908] sm:$0xff]
    %v318 = vld [vmem:[%s1 + $0x910] sm:$0xff]
    %v319 = vld [vmem:[%s1 + $0x918] sm:$0xff]
    %v320 = vld [vmem:[%s1 + $0x920] sm:$0xff]
    %v321 = vld [vmem:[%s1 + $0x928] sm:$0xff]
    %v322 = vld [vmem:[%s1 + $0x930] sm:$0xff]
    %v323 = vld [vmem:[%s1 + $0x938] sm:$0xff]
    %v324 = vld [vmem:[%s1 + $0x940] sm:$0xff]
    %v325 = vld [vmem:[%s1 + $0x948] sm:$0xff]
    %v326 = vld [vmem:[%s1 + $0x950] sm:$0xff]
    %v327 = vld [vmem:[%s1 + $0x958] sm:$0xff]
    %v328 = vld [vmem:[%s1 + $0x960] sm:$0xff]
    %v329 = vld [vmem:[%s1 + $0x968] sm:$0xff]
    %v330 = vld [vmem:[%s1 + $0x970] sm:$0xff]
    %v331 = vld [vmem:[%s1 + $0x978] sm:$0xff]
    %v332 = vld [vmem:[%s1 + $0x980] sm:$0xff]
    %v333 = vld [vmem:[%s1 + $0x988] sm:$0xff]
    %v334 = vld [vmem:[%s1 + $0x990] sm:$0xff]
    %v335 = vld [vmem:[%s1 + $0x998] sm:$0xff]
    %v336 = vld [vmem:[%s1 + $0x9a0] sm:$0xff]
    %v337 = vld [vmem:[%s1 + $0x9a8] sm:$0xff]
    %v338 = vld [vmem:[%s1 + $0x9b0] sm:$0xff]
    %v339 = vld [vmem:[%s1 + $0x9b8] sm:$0xff]
    %v340 = vld [vmem:[%s1 + $0x9c0] sm:$0xff]
    %v341 = vld [vmem:[%s1 + $0x9c8] sm:$0xff]
    %v342 = vld [vmem:[%s1 + $0x9d0] sm:$0xff]
    %v343 = vld [vmem:[%s1 + $0x9d8] sm:$0xff]
    %v344 = vld [vmem:[%s1 + $0x9e0] sm:$0xff]
    %v345 = vld [vmem:[%s1 + $0x9e8] sm:$0xff]
    %v346 = vld [vmem:[%s1 + $0x9f0] sm:$0xff]
    %v347 = vld [vmem:[%s1 + $0x9f8] sm:$0xff]
    %v348 = vld [vmem:[%s1 + $0xa00] sm:$0xff]
    %v349 = vld [vmem:[%s1 + $0xa08] sm:$0xff]
    %v350 = vld [vmem:[%s1 + $0xa10] sm:$0xff]
    %v351 = vld [vmem:[%s1 + $0xa18] sm:$0xff]
    %v352 = vld [vmem:[%s1 + $0xa20] sm:$0xff]
    %v353 = vld [vmem:[%s1 + $0xa28] sm:$0xff]
    %v354 = vld [vmem:[%s1 + $0xa30] sm:$0xff]
    %v355 = vld [vmem:[%s1 + $0xa38] sm:$0xff]
    %v356 = vld [vmem:[%s1 + $0xa40] sm:$0xff]
    %v357 = vld [vmem:[%s1 + $0xa48] sm:$0xff]
    %v358 = vld [vmem:[%s1 + $0xa50] sm:$0xff]
    %v359 = vld [vmem:[%s1 + $0xa58] sm:$0xff]
    %v360 = vld [vmem:[%s1 + $0xa60] sm:$0xff]
    %v361 = vld [vmem:[%s1 + $0xa68] sm:$0xff]
    %v362 = vld [vmem:[%s1 + $0xa70] sm:$0xff]
    %v363 = vld [vmem:[%s1 + $0xa78] sm:$0xff]
    %v364 = vld [vmem:[%s1 + $0xa80] sm:$0xff]
    %v365 = vld [vmem:[%s1 + $0xa88] sm:$0xff]
    %v366 = vld [vmem:[%s1 + $0xa90] sm:$0xff]
    %v367 = vld [vmem:[%s1 + $0xa98] sm:$0xff]
    %v368 = vld [vmem:[%s1 + $0xaa0] sm:$0xff]
    %v369 = vld [vmem:[%s1 + $0xaa8] sm:$0xff]
    %v370 = vld [vmem:[%s1 + $0xab0] sm:$0xff]
    %v371 = vld [vmem:[%s1 + $0xab8] sm:$0xff]
    %v372 = vld [vmem:[%s1 + $0xac0] sm:$0xff]
    %v373 = vld [vmem:[%s1 + $0xac8] sm:$0xff]
    %v374 = vld [vmem:[%s1 + $0xad0] sm:$0xff]
    %v375 = vld [vmem:[%s1 + $0xad8] sm:$0xff]
    %v376 = vld [vmem:[%s1 + $0xae0] sm:$0xff]
    %v377 = vld [vmem:[%s1 + $0xae8] sm:$0xff]
    %v378 = vld [vmem:[%s1 + $0xaf0] sm:$0xff]
    %v379 = vld [vmem:[%s1 + $0xaf8] sm:$0xff]
    %v380 = vld [vmem:[%s1 + $0xb00] sm:$0xff]
    %v381 = vld [vmem:[%s1 + $0xb08] sm:$0xff]
    %v382 = vld [vmem:[%s1 + $0xb10] sm:$0xff]
    %v383 = vld [vmem:[%s1 + $0xb18] sm:$0xff]
    %v384 = vld [vmem:[%s1 + $0xb20] sm:$0xff]
    %v385 = vld [vmem:[%s1 + $0xb28] sm:$0xff]
    %v386 = vld [vmem:[%s1 + $0xb30] sm:$0xff]
    %v387 = vld [vmem:[%s1 + $0xb38] sm:$0xff]
    %v388 = vld [vmem:[%s1 + $0xb40] sm:$0xff]
    %v389 = vld [vmem:[%s1 + $0xb48] sm:$0xff]
    %v390 = vld [vmem:[%s1 + $0xb50] sm:$0xff]
    %v391 = vld [vmem:[%s1 + $0xb58] sm:$0xff]
    %v392 = vld [vmem:[%s1 + $0xb60] sm:$0xff]
    %v393 = vld [vmem:[%s1 + $0xb68] sm:$0xff]
    %v394 = vld [vmem:[%s1 + $0xb70] sm:$0xff]
    %v395 = vld [vmem:[%s1 + $0xb78] sm:$0xff]
    %v396 = vld [vmem:[%s1 + $0xb80] sm:$0xff]
    %v397 = vld [vmem:[%s1 + $0xb88] sm:$0xff]
    %v398 = vld [vmem:[%s1 + $0xb90] sm:$0xff]
    %v399 = vld [vmem:[%s1 + $0xb98] sm:$0xff]
    %v400 = vld [vmem:[%s1 + $0xba0] sm:$0xff]
    %v401 = vld [vmem:[%s1 + $0xba8] sm:$0xff]
    %v402 = vld [vmem:[%s1 + $0xbb0] sm:$0xff]
    %v403 = vld [vmem:[%s1 + $0xbb8] sm:$0xff]
    %v404 = vld [vmem:[%s1 + $0xbc0] sm:$0xff]
    %v405 = vld [vmem:[%s1 + $0xbc8] sm:$0xff]
    %v406 = vld [vmem:[%s1 + $0xbd0] sm:$0xff]
    %v407 = vld [vmem:[%s1 + $0xbd8] sm:$0xff]
    %v408 = vld [vmem:[%s1 + $0xbe0] sm:$0xff]
    %v409 = vld [vmem:[%s1 + $0xbe8] sm:$0xff]
    %v410 = vld [vmem:[%s1 + $0xbf0] sm:$0xff]
    %v411 = vld [vmem:[%s1 + $0xbf8] sm:$0xff]
    %v412 = vld [vmem:[%s1 + $0xc00] sm:$0xff]
    %v413 = vld [vmem:[%s1 + $0xc08] sm:$0xff]
    %v414 = vld [vmem:[%s1 + $0xc10] sm:$0xff]
    %v415 = vld [vmem:[%s1 + $0xc18] sm:$0xff]
    %v416 = vld [vmem:[%s1 + $0xc20] sm:$0xff]
    %v417 = vld [vmem:[%s1 + $0xc28] sm:$0xff]
    %v418 = vld [vmem:[%s1 + $0xc30] sm:$0xff]
    %v419 = vld [vmem:[%s1 + $0xc38] sm:$0xff]
    %v420 = vld [vmem:[%s2] sm:$0xf]
    %v422 = vlaneseq
    %v423 = vshrl.u32 %v422, 7
    %v424 = vsub.s32 0, %v423
    %v425 = vrot.slane %v420, %v424
    %v426 = vlaneseq
    %v427 = vshrl.u32 %v426, 7
    %v428 = vsub.s32 1, %v427
    %v429 = vrot.slane %v420, %v428
    %v430 = vlaneseq
    %v431 = vshrl.u32 %v430, 7
    %v432 = vsub.s32 2, %v431
    %v433 = vrot.slane %v420, %v432
    %v434 = vlaneseq
    %v435 = vshrl.u32 %v434, 7
    %v436 = vsub.s32 3, %v435
    %v437 = vrot.slane %v420, %v436
    %v444 = vcombine.high %v26, %v26
    %v446 = vunpack.c.l.s4 1966171168
    %v447 = vunpack.c.0.s8 %v446
    %v448 = vlaneseq
    %v449 = vshrl.u32 %v448, 7
    %v450 = vsub.s32 %v447, %v449
    %v451 = vrot.slane %v26, %v450
    %v453 = vunpack.c.l.s4 1966171168
    %v454 = vunpack.c.0.s8 %v453
    %v455 = vlaneseq
    %v456 = vshrl.u32 %v455, 7
    %v457 = vsub.s32 %v454, %v456
    %v458 = vrot.slane %v444, %v457
    %v459 = vcombine.high %v451, %v451
    %v460 = vcombine.high %v458, %v458
    %v462 = vunpack.c.l.s4 1966171168
    %v463 = vunpack.c.0.s8 %v462
    %v464 = vlaneseq
    %v465 = vshrl.u32 %v464, 7
    %v466 = vsub.s32 %v463, %v465
    %v467 = vrot.slane %v451, %v466
    %v469 = vunpack.c.l.s4 1966171168
    %v470 = vunpack.c.0.s8 %v469
    %v471 = vlaneseq
    %v472 = vshrl.u32 %v471, 7
    %v473 = vsub.s32 %v470, %v472
    %v474 = vrot.slane %v458, %v473
    %v476 = vunpack.c.l.s4 1966171168
    %v477 = vunpack.c.0.s8 %v476
    %v478 = vlaneseq
    %v479 = vshrl.u32 %v478, 7
    %v480 = vsub.s32 %v477, %v479
    %v481 = vrot.slane %v459, %v480
    %v483 = vunpack.c.l.s4 1966171168
    %v484 = vunpack.c.0.s8 %v483
    %v485 = vlaneseq
    %v486 = vshrl.u32 %v485, 7
    %v487 = vsub.s32 %v484, %v486
    %v488 = vrot.slane %v460, %v487
    %v489 = vcombine.high %v467, %v467
    %v490 = vcombine.high %v474, %v474
    %v491 = vcombine.high %v481, %v481
    %v492 = vcombine.high %v488, %v488
    %v493 = vcombine.high %v27, %v27
    %v495 = vunpack.c.l.s4 1966171168
    %v496 = vunpack.c.0.s8 %v495
    %v497 = vlaneseq
    %v498 = vshrl.u32 %v497, 7
    %v499 = vsub.s32 %v496, %v498
    %v500 = vrot.slane %v27, %v499
    %v502 = vunpack.c.l.s4 1966171168
    %v503 = vunpack.c.0.s8 %v502
    %v504 = vlaneseq
    %v505 = vshrl.u32 %v504, 7
    %v506 = vsub.s32 %v503, %v505
    %v507 = vrot.slane %v493, %v506
    %v508 = vcombine.high %v500, %v500
    %v510 = vunpack.c.l.s4 1966171168
    %v511 = vunpack.c.0.s8 %v510
    %v512 = vlaneseq
    %v513 = vshrl.u32 %v512, 7
    %v514 = vsub.s32 %v511, %v513
    %v515 = vrot.slane %v500, %v514
    %v517 = vunpack.c.l.s4 1966171168
    %v518 = vunpack.c.0.s8 %v517
    %v519 = vlaneseq
    %v520 = vshrl.u32 %v519, 7
    %v521 = vsub.s32 %v518, %v520
    %v522 = vrot.slane %v507, %v521
    %v524 = vunpack.c.l.s4 1966171168
    %v525 = vunpack.c.0.s8 %v524
    %v526 = vlaneseq
    %v527 = vshrl.u32 %v526, 7
    %v528 = vsub.s32 %v525, %v527
    %v529 = vrot.slane %v508, %v528
    %v530 = vcombine.high %v515, %v515
    %v531 = vcombine.high %v529, %v529
    %v936 = vunpack.c.l.b16 %v28
    %v937 = vunpack.c.h.b16 %v28
    %v938 = vunpack.c.l.b16 %v29
    %v939 = vunpack.c.h.b16 %v29
    %v940 = vunpack.c.l.b16 %v30
    %v941 = vunpack.c.h.b16 %v30
    %v942 = vunpack.c.l.b16 %v31
    %v943 = vunpack.c.h.b16 %v31
    %v944 = vunpack.c.l.b16 %v32
    %v945 = vunpack.c.h.b16 %v32
    %v946 = vunpack.c.l.b16 %v33
    %v947 = vunpack.c.h.b16 %v33
    %v948 = vunpack.c.l.b16 %v34
    %v949 = vunpack.c.h.b16 %v34
    %v950 = vunpack.c.l.b16 %v35
    %v951 = vunpack.c.h.b16 %v35
    %v952 = vunpack.c.l.b16 %v36
    %v953 = vunpack.c.h.b16 %v36
    %v954 = vunpack.c.l.b16 %v37
    %v955 = vunpack.c.h.b16 %v37
    %v956 = vunpack.c.l.b16 %v38
    %v957 = vunpack.c.h.b16 %v38
    %v958 = vunpack.c.l.b16 %v39
    %v959 = vunpack.c.h.b16 %v39
    %v960 = vunpack.c.l.b16 %v40
    %v961 = vunpack.c.h.b16 %v40
    %v962 = vunpack.c.l.b16 %v41
    %v963 = vunpack.c.h.b16 %v41
    %v964 = vunpack.c.l.b16 %v42
    %v965 = vunpack.c.h.b16 %v42
    %v966 = vunpack.c.l.b16 %v43
    %v967 = vunpack.c.h.b16 %v43
    %v968 = vunpack.c.l.b16 %v44
    %v969 = vunpack.c.h.b16 %v44
    %v970 = vunpack.c.l.b16 %v45
    %v971 = vunpack.c.h.b16 %v45
    %v972 = vunpack.c.l.b16 %v46
    %v973 = vunpack.c.h.b16 %v46
    %v974 = vunpack.c.l.b16 %v47
    %v975 = vunpack.c.h.b16 %v47
    %v976 = vunpack.c.l.b16 %v48
    %v977 = vunpack.c.h.b16 %v48
    %v978 = vunpack.c.l.b16 %v49
    %v979 = vunpack.c.h.b16 %v49
    %v980 = vunpack.c.l.b16 %v50
    %v981 = vunpack.c.h.b16 %v50
    %v982 = vunpack.c.l.b16 %v51
    %v983 = vunpack.c.h.b16 %v51
    %v984 = vunpack.c.l.b16 %v52
    %v985 = vunpack.c.h.b16 %v52
    %v986 = vunpack.c.l.b16 %v53
    %v987 = vunpack.c.h.b16 %v53
    %v988 = vunpack.c.l.b16 %v54
    %v989 = vunpack.c.h.b16 %v54
    %v990 = vunpack.c.l.b16 %v55
    %v991 = vunpack.c.h.b16 %v55
    %v992 = vunpack.c.l.b16 %v56
    %v993 = vunpack.c.h.b16 %v56
    %v994 = vunpack.c.l.b16 %v57
    %v995 = vunpack.c.h.b16 %v57
    %v996 = vunpack.c.l.b16 %v58
    %v997 = vunpack.c.h.b16 %v58
    %v998 = vunpack.c.l.b16 %v59
    %v999 = vunpack.c.h.b16 %v59
    %v1000 = vunpack.c.l.b16 %v60
    %v1001 = vunpack.c.h.b16 %v60
    %v1002 = vunpack.c.l.b16 %v61
    %v1003 = vunpack.c.h.b16 %v61
    %v1004 = vunpack.c.l.b16 %v62
    %v1005 = vunpack.c.h.b16 %v62
    %v1006 = vunpack.c.l.b16 %v63
    %v1007 = vunpack.c.h.b16 %v63
    %v1008 = vunpack.c.l.b16 %v64
    %v1009 = vunpack.c.h.b16 %v64
    %v1010 = vunpack.c.l.b16 %v65
    %v1011 = vunpack.c.h.b16 %v65
    %v1012 = vunpack.c.l.b16 %v66
    %v1013 = vunpack.c.h.b16 %v66
    %v1014 = vunpack.c.l.b16 %v67
    %v1015 = vunpack.c.h.b16 %v67
    %v1016 = vunpack.c.l.b16 %v68
    %v1017 = vunpack.c.h.b16 %v68
    %v1018 = vunpack.c.l.b16 %v69
    %v1019 = vunpack.c.h.b16 %v69
    %v1020 = vunpack.c.l.b16 %v70
    %v1021 = vunpack.c.h.b16 %v70
    %v1022 = vunpack.c.l.b16 %v71
    %v1023 = vunpack.c.h.b16 %v71
    %v1024 = vunpack.c.l.b16 %v72
    %v1025 = vunpack.c.h.b16 %v72
    %v1026 = vunpack.c.l.b16 %v73
    %v1027 = vunpack.c.h.b16 %v73
    %v1028 = vunpack.c.l.b16 %v74
    %v1029 = vunpack.c.h.b16 %v74
    %v1030 = vunpack.c.l.b16 %v75
    %v1031 = vunpack.c.h.b16 %v75
    %v1032 = vunpack.c.l.b16 %v76
    %v1033 = vunpack.c.h.b16 %v76
    %v1034 = vunpack.c.l.b16 %v77
    %v1035 = vunpack.c.h.b16 %v77
    %v1036 = vunpack.c.l.b16 %v78
    %v1037 = vunpack.c.h.b16 %v78
    %v1038 = vunpack.c.l.b16 %v79
    %v1039 = vunpack.c.h.b16 %v79
    %v1040 = vunpack.c.l.b16 %v80
    %v1041 = vunpack.c.h.b16 %v80
    %v1042 = vunpack.c.l.b16 %v81
    %v1043 = vunpack.c.h.b16 %v81
    %v1044 = vunpack.c.l.b16 %v82
    %v1045 = vunpack.c.h.b16 %v82
    %v1046 = vunpack.c.l.b16 %v83
    %v1047 = vunpack.c.h.b16 %v83
    %v1048 = vunpack.c.l.b16 %v84
    %v1049 = vunpack.c.h.b16 %v84
    %v1050 = vunpack.c.l.b16 %v85
    %v1051 = vunpack.c.h.b16 %v85
    %v1052 = vunpack.c.l.b16 %v86
    %v1053 = vunpack.c.h.b16 %v86
    %v1054 = vunpack.c.l.b16 %v87
    %v1055 = vunpack.c.h.b16 %v87
    %v1056 = vunpack.c.l.b16 %v88
    %v1057 = vunpack.c.h.b16 %v88
    %v1058 = vunpack.c.l.b16 %v89
    %v1059 = vunpack.c.h.b16 %v89
    %v1060 = vunpack.c.l.b16 %v90
    %v1061 = vunpack.c.h.b16 %v90
    %v1062 = vunpack.c.l.b16 %v91
    %v1063 = vunpack.c.h.b16 %v91
    %v1064 = vunpack.c.l.b16 %v92
    %v1065 = vunpack.c.h.b16 %v92
    %v1066 = vunpack.c.l.b16 %v93
    %v1067 = vunpack.c.h.b16 %v93
    %v1068 = vunpack.c.l.b16 %v94
    %v1069 = vunpack.c.h.b16 %v94
    %v1070 = vunpack.c.l.b16 %v95
    %v1071 = vunpack.c.h.b16 %v95
    %v1072 = vunpack.c.l.b16 %v96
    %v1073 = vunpack.c.h.b16 %v96
    %v1074 = vunpack.c.l.b16 %v97
    %v1075 = vunpack.c.h.b16 %v97
    %v1076 = vunpack.c.l.b16 %v98
    %v1077 = vunpack.c.h.b16 %v98
    %v1078 = vunpack.c.l.b16 %v99
    %v1079 = vunpack.c.h.b16 %v99
    %v1080 = vunpack.c.l.b16 %v100
    %v1081 = vunpack.c.h.b16 %v100
    %v1082 = vunpack.c.l.b16 %v101
    %v1083 = vunpack.c.h.b16 %v101
    %v1084 = vunpack.c.l.b16 %v102
    %v1085 = vunpack.c.h.b16 %v102
    %v1086 = vunpack.c.l.b16 %v103
    %v1087 = vunpack.c.h.b16 %v103
    %v1088 = vunpack.c.l.b16 %v104
    %v1089 = vunpack.c.h.b16 %v104
    %v1090 = vunpack.c.l.b16 %v105
    %v1091 = vunpack.c.h.b16 %v105
    %v1092 = vunpack.c.l.b16 %v106
    %v1093 = vunpack.c.h.b16 %v106
    %v1094 = vunpack.c.l.b16 %v107
    %v1095 = vunpack.c.h.b16 %v107
    %v1096 = vunpack.c.l.b16 %v108
    %v1097 = vunpack.c.h.b16 %v108
    %v1098 = vunpack.c.l.b16 %v109
    %v1099 = vunpack.c.h.b16 %v109
    %v1100 = vunpack.c.l.b16 %v110
    %v1101 = vunpack.c.h.b16 %v110
    %v1102 = vunpack.c.l.b16 %v111
    %v1103 = vunpack.c.h.b16 %v111
    %v1104 = vunpack.c.l.b16 %v112
    %v1105 = vunpack.c.h.b16 %v112
    %v1106 = vunpack.c.l.b16 %v113
    %v1107 = vunpack.c.h.b16 %v113
    %v1108 = vunpack.c.l.b16 %v114
    %v1109 = vunpack.c.h.b16 %v114
    %v1110 = vunpack.c.l.b16 %v115
    %v1111 = vunpack.c.h.b16 %v115
    %v1112 = vunpack.c.l.b16 %v116
    %v1113 = vunpack.c.h.b16 %v116
    %v1114 = vunpack.c.l.b16 %v117
    %v1115 = vunpack.c.h.b16 %v117
    %v1116 = vunpack.c.l.b16 %v118
    %v1117 = vunpack.c.h.b16 %v118
    %v1118 = vunpack.c.l.b16 %v119
    %v1119 = vunpack.c.h.b16 %v119
    %v1120 = vunpack.c.l.b16 %v120
    %v1121 = vunpack.c.h.b16 %v120
    %v1122 = vunpack.c.l.b16 %v121
    %v1123 = vunpack.c.h.b16 %v121
    %v1124 = vunpack.c.l.b16 %v122
    %v1125 = vunpack.c.h.b16 %v122
    %v1126 = vunpack.c.l.b16 %v123
    %v1127 = vunpack.c.h.b16 %v123
    %v1128 = vunpack.c.l.b16 %v124
    %v1129 = vunpack.c.h.b16 %v124
    %v1130 = vunpack.c.l.b16 %v125
    %v1131 = vunpack.c.h.b16 %v125
    %v1132 = vunpack.c.l.b16 %v126
    %v1133 = vunpack.c.h.b16 %v126
    %v1134 = vunpack.c.l.b16 %v127
    %v1135 = vunpack.c.h.b16 %v127
    %v1136 = vunpack.c.l.b16 %v128
    %v1137 = vunpack.c.h.b16 %v128
    %v1138 = vunpack.c.l.b16 %v129
    %v1139 = vunpack.c.h.b16 %v129
    %v1140 = vunpack.c.l.b16 %v130
    %v1141 = vunpack.c.h.b16 %v130
    %v1142 = vunpack.c.l.b16 %v131
    %v1143 = vunpack.c.h.b16 %v131
    %v1144 = vunpack.c.l.b16 %v132
    %v1145 = vunpack.c.h.b16 %v132
    %v1146 = vunpack.c.l.b16 %v133
    %v1147 = vunpack.c.h.b16 %v133
    %v1148 = vunpack.c.l.b16 %v134
    %v1149 = vunpack.c.h.b16 %v134
    %v1150 = vunpack.c.l.b16 %v135
    %v1151 = vunpack.c.h.b16 %v135
    %v1152 = vunpack.c.l.b16 %v136
    %v1153 = vunpack.c.h.b16 %v136
    %v1154 = vunpack.c.l.b16 %v137
    %v1155 = vunpack.c.h.b16 %v137
    %v1156 = vunpack.c.l.b16 %v138
    %v1157 = vunpack.c.h.b16 %v138
    %v1158 = vunpack.c.l.b16 %v139
    %v1159 = vunpack.c.h.b16 %v139
    %v1160 = vunpack.c.l.b16 %v140
    %v1161 = vunpack.c.h.b16 %v140
    %v1162 = vunpack.c.l.b16 %v141
    %v1163 = vunpack.c.h.b16 %v141
    %v1164 = vunpack.c.l.b16 %v142
    %v1165 = vunpack.c.h.b16 %v142
    %v1166 = vunpack.c.l.b16 %v143
    %v1167 = vunpack.c.h.b16 %v143
    %v1168 = vunpack.c.l.b16 %v144
    %v1169 = vunpack.c.h.b16 %v144
    %v1170 = vunpack.c.l.b16 %v145
    %v1171 = vunpack.c.h.b16 %v145
    %v1172 = vunpack.c.l.b16 %v146
    %v1173 = vunpack.c.h.b16 %v146
    %v1174 = vunpack.c.l.b16 %v147
    %v1175 = vunpack.c.h.b16 %v147
    %v1176 = vunpack.c.l.b16 %v148
    %v1177 = vunpack.c.h.b16 %v148
    %v1178 = vunpack.c.l.b16 %v149
    %v1179 = vunpack.c.h.b16 %v149
    %v1180 = vunpack.c.l.b16 %v150
    %v1181 = vunpack.c.h.b16 %v150
    %v1182 = vunpack.c.l.b16 %v151
    %v1183 = vunpack.c.h.b16 %v151
    %v1184 = vunpack.c.l.b16 %v152
    %v1185 = vunpack.c.h.b16 %v152
    %v1186 = vunpack.c.l.b16 %v153
    %v1187 = vunpack.c.h.b16 %v153
    %v1188 = vunpack.c.l.b16 %v154
    %v1189 = vunpack.c.h.b16 %v154
    %v1190 = vunpack.c.l.b16 %v155
    %v1191 = vunpack.c.h.b16 %v155
    %v1192 = vunpack.c.l.b16 %v156
    %v1193 = vunpack.c.h.b16 %v156
    %v1194 = vunpack.c.l.b16 %v157
    %v1195 = vunpack.c.h.b16 %v157
    %v1196 = vunpack.c.l.b16 %v158
    %v1197 = vunpack.c.h.b16 %v158
    %v1198 = vunpack.c.l.b16 %v159
    %v1199 = vunpack.c.h.b16 %v159
    %v1200 = vunpack.c.l.b16 %v160
    %v1201 = vunpack.c.h.b16 %v160
    %v1202 = vunpack.c.l.b16 %v161
    %v1203 = vunpack.c.h.b16 %v161
    %v1204 = vunpack.c.l.b16 %v162
    %v1205 = vunpack.c.h.b16 %v162
    %v1206 = vunpack.c.l.b16 %v163
    %v1207 = vunpack.c.h.b16 %v163
    %v1208 = vunpack.c.l.b16 %v164
    %v1209 = vunpack.c.h.b16 %v164
    %v1210 = vunpack.c.l.b16 %v165
    %v1211 = vunpack.c.h.b16 %v165
    %v1212 = vunpack.c.l.b16 %v166
    %v1213 = vunpack.c.h.b16 %v166
    %v1214 = vunpack.c.l.b16 %v167
    %v1215 = vunpack.c.h.b16 %v167
    %v1216 = vunpack.c.l.b16 %v168
    %v1217 = vunpack.c.h.b16 %v168
    %v1218 = vunpack.c.l.b16 %v169
    %v1219 = vunpack.c.h.b16 %v169
    %v1220 = vunpack.c.l.b16 %v170
    %v1221 = vunpack.c.h.b16 %v170
    %v1222 = vunpack.c.l.b16 %v171
    %v1223 = vunpack.c.h.b16 %v171
    %v1224 = vunpack.c.l.b16 %v172
    %v1225 = vunpack.c.h.b16 %v172
    %v1226 = vunpack.c.l.b16 %v173
    %v1227 = vunpack.c.h.b16 %v173
    %v1228 = vunpack.c.l.b16 %v174
    %v1229 = vunpack.c.h.b16 %v174
    %v1230 = vunpack.c.l.b16 %v175
    %v1231 = vunpack.c.h.b16 %v175
    %v1232 = vunpack.c.l.b16 %v176
    %v1233 = vunpack.c.h.b16 %v176
    %v1234 = vunpack.c.l.b16 %v177
    %v1235 = vunpack.c.h.b16 %v177
    %v1236 = vunpack.c.l.b16 %v178
    %v1237 = vunpack.c.h.b16 %v178
    %v1238 = vunpack.c.l.b16 %v179
    %v1239 = vunpack.c.h.b16 %v179
    %v1240 = vunpack.c.l.b16 %v180
    %v1241 = vunpack.c.h.b16 %v180
    %v1242 = vunpack.c.l.b16 %v181
    %v1243 = vunpack.c.h.b16 %v181
    %v1244 = vunpack.c.l.b16 %v182
    %v1245 = vunpack.c.h.b16 %v182
    %v1246 = vunpack.c.l.b16 %v183
    %v1247 = vunpack.c.h.b16 %v183
    %v1248 = vunpack.c.l.b16 %v184
    %v1249 = vunpack.c.h.b16 %v184
    %v1250 = vunpack.c.l.b16 %v185
    %v1251 = vunpack.c.h.b16 %v185
    %v1252 = vunpack.c.l.b16 %v186
    %v1253 = vunpack.c.h.b16 %v186
    %v1254 = vunpack.c.l.b16 %v187
    %v1255 = vunpack.c.h.b16 %v187
    %v1256 = vunpack.c.l.b16 %v188
    %v1257 = vunpack.c.h.b16 %v188
    %v1258 = vunpack.c.l.b16 %v189
    %v1259 = vunpack.c.h.b16 %v189
    %v1260 = vunpack.c.l.b16 %v190
    %v1261 = vunpack.c.h.b16 %v190
    %v1262 = vunpack.c.l.b16 %v191
    %v1263 = vunpack.c.h.b16 %v191
    %v1264 = vunpack.c.l.b16 %v192
    %v1265 = vunpack.c.h.b16 %v192
    %v1266 = vunpack.c.l.b16 %v193
    %v1267 = vunpack.c.h.b16 %v193
    %v1268 = vunpack.c.l.b16 %v194
    %v1269 = vunpack.c.h.b16 %v194
    %v1270 = vunpack.c.l.b16 %v195
    %v1271 = vunpack.c.h.b16 %v195
    %v1272 = vunpack.c.l.b16 %v196
    %v1273 = vunpack.c.h.b16 %v196
    %v1274 = vunpack.c.l.b16 %v197
    %v1275 = vunpack.c.h.b16 %v197
    %v1276 = vunpack.c.l.b16 %v198
    %v1277 = vunpack.c.h.b16 %v198
    %v1278 = vunpack.c.l.b16 %v199
    %v1279 = vunpack.c.h.b16 %v199
    %v1280 = vunpack.c.l.b16 %v200
    %v1281 = vunpack.c.h.b16 %v200
    %v1282 = vunpack.c.l.b16 %v201
    %v1283 = vunpack.c.h.b16 %v201
    %v1284 = vunpack.c.l.b16 %v202
    %v1285 = vunpack.c.h.b16 %v202
    %v1286 = vunpack.c.l.b16 %v203
    %v1287 = vunpack.c.h.b16 %v203
    %v1288 = vunpack.c.l.b16 %v204
    %v1289 = vunpack.c.h.b16 %v204
    %v1290 = vunpack.c.l.b16 %v205
    %v1291 = vunpack.c.h.b16 %v205
    %v1292 = vunpack.c.l.b16 %v206
    %v1293 = vunpack.c.h.b16 %v206
    %v1294 = vunpack.c.l.b16 %v207
    %v1295 = vunpack.c.h.b16 %v207
    %v1296 = vunpack.c.l.b16 %v208
    %v1297 = vunpack.c.h.b16 %v208
    %v1298 = vunpack.c.l.b16 %v209
    %v1299 = vunpack.c.h.b16 %v209
    %v1300 = vunpack.c.l.b16 %v210
    %v1301 = vunpack.c.h.b16 %v210
    %v1302 = vunpack.c.l.b16 %v211
    %v1303 = vunpack.c.h.b16 %v211
    %v1304 = vunpack.c.l.b16 %v212
    %v1305 = vunpack.c.h.b16 %v212
    %v1306 = vunpack.c.l.b16 %v213
    %v1307 = vunpack.c.h.b16 %v213
    %v1308 = vunpack.c.l.b16 %v214
    %v1309 = vunpack.c.h.b16 %v214
    %v1310 = vunpack.c.l.b16 %v215
    %v1311 = vunpack.c.h.b16 %v215
    %v1312 = vunpack.c.l.b16 %v216
    %v1313 = vunpack.c.h.b16 %v216
    %v1314 = vunpack.c.l.b16 %v217
    %v1315 = vunpack.c.h.b16 %v217
    %v1316 = vunpack.c.l.b16 %v218
    %v1317 = vunpack.c.h.b16 %v218
    %v1318 = vunpack.c.l.b16 %v219
    %v1319 = vunpack.c.h.b16 %v219
    %v1320 = vunpack.c.l.b16 %v220
    %v1321 = vunpack.c.h.b16 %v220
    %v1322 = vunpack.c.l.b16 %v221
    %v1323 = vunpack.c.h.b16 %v221
    %v1324 = vunpack.c.l.b16 %v222
    %v1325 = vunpack.c.h.b16 %v222
    %v1326 = vunpack.c.l.b16 %v223
    %v1327 = vunpack.c.h.b16 %v223
    %v1328 = vunpack.c.l.b16 %v224
    %v1329 = vunpack.c.h.b16 %v224
    %v1330 = vunpack.c.l.b16 %v225
    %v1331 = vunpack.c.h.b16 %v225
    %v1332 = vunpack.c.l.b16 %v226
    %v1333 = vunpack.c.h.b16 %v226
    %v1334 = vunpack.c.l.b16 %v227
    %v1335 = vunpack.c.h.b16 %v227
    %v1336 = vunpack.c.l.b16 %v228
    %v1337 = vunpack.c.h.b16 %v228
    %v1338 = vunpack.c.l.b16 %v229
    %v1339 = vunpack.c.h.b16 %v229
    %v1340 = vunpack.c.l.b16 %v230
    %v1341 = vunpack.c.h.b16 %v230
    %v1342 = vunpack.c.l.b16 %v231
    %v1343 = vunpack.c.h.b16 %v231
    %v1344 = vunpack.c.l.b16 %v232
    %v1345 = vunpack.c.h.b16 %v232
    %v1346 = vunpack.c.l.b16 %v233
    %v1347 = vunpack.c.h.b16 %v233
    %v1348 = vunpack.c.l.b16 %v234
    %v1349 = vunpack.c.h.b16 %v234
    %v1350 = vunpack.c.l.b16 %v235
    %v1351 = vunpack.c.h.b16 %v235
    %v1352 = vunpack.c.l.b16 %v236
    %v1353 = vunpack.c.h.b16 %v236
    %v1354 = vunpack.c.l.b16 %v237
    %v1355 = vunpack.c.h.b16 %v237
    %v1356 = vunpack.c.l.b16 %v238
    %v1357 = vunpack.c.h.b16 %v238
    %v1358 = vunpack.c.l.b16 %v239
    %v1359 = vunpack.c.h.b16 %v239
    %v1360 = vunpack.c.l.b16 %v240
    %v1361 = vunpack.c.h.b16 %v240
    %v1362 = vunpack.c.l.b16 %v241
    %v1363 = vunpack.c.h.b16 %v241
    %v1364 = vunpack.c.l.b16 %v242
    %v1365 = vunpack.c.h.b16 %v242
    %v1366 = vunpack.c.l.b16 %v243
    %v1367 = vunpack.c.h.b16 %v243
    %v1368 = vunpack.c.l.b16 %v244
    %v1369 = vunpack.c.h.b16 %v244
    %v1370 = vunpack.c.l.b16 %v245
    %v1371 = vunpack.c.h.b16 %v245
    %v1372 = vunpack.c.l.b16 %v246
    %v1373 = vunpack.c.h.b16 %v246
    %v1374 = vunpack.c.l.b16 %v247
    %v1375 = vunpack.c.h.b16 %v247
    %v1376 = vunpack.c.l.b16 %v248
    %v1377 = vunpack.c.h.b16 %v248
    %v1378 = vunpack.c.l.b16 %v249
    %v1379 = vunpack.c.h.b16 %v249
    %v1380 = vunpack.c.l.b16 %v250
    %v1381 = vunpack.c.h.b16 %v250
    %v1382 = vunpack.c.l.b16 %v251
    %v1383 = vunpack.c.h.b16 %v251
    %v1384 = vunpack.c.l.b16 %v252
    %v1385 = vunpack.c.h.b16 %v252
    %v1386 = vunpack.c.l.b16 %v253
    %v1387 = vunpack.c.h.b16 %v253
    %v1388 = vunpack.c.l.b16 %v254
    %v1389 = vunpack.c.h.b16 %v254
    %v1390 = vunpack.c.l.b16 %v255
    %v1391 = vunpack.c.h.b16 %v255
    %v1392 = vunpack.c.l.b16 %v256
    %v1393 = vunpack.c.h.b16 %v256
    %v1394 = vunpack.c.l.b16 %v257
    %v1395 = vunpack.c.h.b16 %v257
    %v1396 = vunpack.c.l.b16 %v258
    %v1397 = vunpack.c.h.b16 %v258
    %v1398 = vunpack.c.l.b16 %v259
    %v1399 = vunpack.c.h.b16 %v259
    %v1400 = vunpack.c.l.b16 %v260
    %v1401 = vunpack.c.h.b16 %v260
    %v1402 = vunpack.c.l.b16 %v261
    %v1403 = vunpack.c.h.b16 %v261
    %v1404 = vunpack.c.l.b16 %v262
    %v1405 = vunpack.c.h.b16 %v262
    %v1406 = vunpack.c.l.b16 %v263
    %v1407 = vunpack.c.h.b16 %v263
    %v1408 = vunpack.c.l.b16 %v264
    %v1409 = vunpack.c.h.b16 %v264
    %v1410 = vunpack.c.l.b16 %v265
    %v1411 = vunpack.c.h.b16 %v265
    %v1412 = vunpack.c.l.b16 %v266
    %v1413 = vunpack.c.h.b16 %v266
    %v1414 = vunpack.c.l.b16 %v267
    %v1415 = vunpack.c.h.b16 %v267
    %v1416 = vunpack.c.l.b16 %v268
    %v1417 = vunpack.c.h.b16 %v268
    %v1418 = vunpack.c.l.b16 %v269
    %v1419 = vunpack.c.h.b16 %v269
    %v1420 = vunpack.c.l.b16 %v270
    %v1421 = vunpack.c.h.b16 %v270
    %v1422 = vunpack.c.l.b16 %v271
    %v1423 = vunpack.c.h.b16 %v271
    %v1424 = vunpack.c.l.b16 %v272
    %v1425 = vunpack.c.h.b16 %v272
    %v1426 = vunpack.c.l.b16 %v273
    %v1427 = vunpack.c.h.b16 %v273
    %v1428 = vunpack.c.l.b16 %v274
    %v1429 = vunpack.c.h.b16 %v274
    %v1430 = vunpack.c.l.b16 %v275
    %v1431 = vunpack.c.h.b16 %v275
    %v1432 = vunpack.c.l.b16 %v276
    %v1433 = vunpack.c.h.b16 %v276
    %v1434 = vunpack.c.l.b16 %v277
    %v1435 = vunpack.c.h.b16 %v277
    %v1436 = vunpack.c.l.b16 %v278
    %v1437 = vunpack.c.h.b16 %v278
    %v1438 = vunpack.c.l.b16 %v279
    %v1439 = vunpack.c.h.b16 %v279
    %v1440 = vunpack.c.l.b16 %v280
    %v1441 = vunpack.c.h.b16 %v280
    %v1442 = vunpack.c.l.b16 %v281
    %v1443 = vunpack.c.h.b16 %v281
    %v1444 = vunpack.c.l.b16 %v282
    %v1445 = vunpack.c.h.b16 %v282
    %v1446 = vunpack.c.l.b16 %v283
    %v1447 = vunpack.c.h.b16 %v283
    %v1448 = vunpack.c.l.b16 %v284
    %v1449 = vunpack.c.h.b16 %v284
    %v1450 = vunpack.c.l.b16 %v285
    %v1451 = vunpack.c.h.b16 %v285
    %v1452 = vunpack.c.l.b16 %v286
    %v1453 = vunpack.c.h.b16 %v286
    %v1454 = vunpack.c.l.b16 %v287
    %v1455 = vunpack.c.h.b16 %v287
    %v1456 = vunpack.c.l.b16 %v288
    %v1457 = vunpack.c.h.b16 %v288
    %v1458 = vunpack.c.l.b16 %v289
    %v1459 = vunpack.c.h.b16 %v289
    %v1460 = vunpack.c.l.b16 %v290
    %v1461 = vunpack.c.h.b16 %v290
    %v1462 = vunpack.c.l.b16 %v291
    %v1463 = vunpack.c.h.b16 %v291
    %v1464 = vunpack.c.l.b16 %v292
    %v1465 = vunpack.c.h.b16 %v292
    %v1466 = vunpack.c.l.b16 %v293
    %v1467 = vunpack.c.h.b16 %v293
    %v1468 = vunpack.c.l.b16 %v294
    %v1469 = vunpack.c.h.b16 %v294
    %v1470 = vunpack.c.l.b16 %v295
    %v1471 = vunpack.c.h.b16 %v295
    %v1472 = vunpack.c.l.b16 %v296
    %v1473 = vunpack.c.h.b16 %v296
    %v1474 = vunpack.c.l.b16 %v297
    %v1475 = vunpack.c.h.b16 %v297
    %v1476 = vunpack.c.l.b16 %v298
    %v1477 = vunpack.c.h.b16 %v298
    %v1478 = vunpack.c.l.b16 %v299
    %v1479 = vunpack.c.h.b16 %v299
    %v1480 = vunpack.c.l.b16 %v300
    %v1481 = vunpack.c.h.b16 %v300
    %v1482 = vunpack.c.l.b16 %v301
    %v1483 = vunpack.c.h.b16 %v301
    %v1484 = vunpack.c.l.b16 %v302
    %v1485 = vunpack.c.h.b16 %v302
    %v1486 = vunpack.c.l.b16 %v303
    %v1487 = vunpack.c.h.b16 %v303
    %v1488 = vunpack.c.l.b16 %v304
    %v1489 = vunpack.c.h.b16 %v304
    %v1490 = vunpack.c.l.b16 %v305
    %v1491 = vunpack.c.h.b16 %v305
    %v1492 = vunpack.c.l.b16 %v306
    %v1493 = vunpack.c.h.b16 %v306
    %v1494 = vunpack.c.l.b16 %v307
    %v1495 = vunpack.c.h.b16 %v307
    %v1496 = vunpack.c.l.b16 %v308
    %v1497 = vunpack.c.h.b16 %v308
    %v1498 = vunpack.c.l.b16 %v309
    %v1499 = vunpack.c.h.b16 %v309
    %v1500 = vunpack.c.l.b16 %v310
    %v1501 = vunpack.c.h.b16 %v310
    %v1502 = vunpack.c.l.b16 %v311
    %v1503 = vunpack.c.h.b16 %v311
    %v1504 = vunpack.c.l.b16 %v312
    %v1505 = vunpack.c.h.b16 %v312
    %v1506 = vunpack.c.l.b16 %v313
    %v1507 = vunpack.c.h.b16 %v313
    %v1508 = vunpack.c.l.b16 %v314
    %v1509 = vunpack.c.h.b16 %v314
    %v1510 = vunpack.c.l.b16 %v315
    %v1511 = vunpack.c.h.b16 %v315
    %v1512 = vunpack.c.l.b16 %v316
    %v1513 = vunpack.c.h.b16 %v316
    %v1514 = vunpack.c.l.b16 %v317
    %v1515 = vunpack.c.h.b16 %v317
    %v1516 = vunpack.c.l.b16 %v318
    %v1517 = vunpack.c.h.b16 %v318
    %v1518 = vunpack.c.l.b16 %v319
    %v1519 = vunpack.c.h.b16 %v319
    %v1520 = vunpack.c.l.b16 %v320
    %v1521 = vunpack.c.h.b16 %v320
    %v1522 = vunpack.c.l.b16 %v321
    %v1523 = vunpack.c.h.b16 %v321
    %v1524 = vunpack.c.l.b16 %v322
    %v1525 = vunpack.c.h.b16 %v322
    %v1526 = vunpack.c.l.b16 %v323
    %v1527 = vunpack.c.h.b16 %v323
    %v1528 = vunpack.c.l.b16 %v324
    %v1529 = vunpack.c.h.b16 %v324
    %v1530 = vunpack.c.l.b16 %v325
    %v1531 = vunpack.c.h.b16 %v325
    %v1532 = vunpack.c.l.b16 %v326
    %v1533 = vunpack.c.h.b16 %v326
    %v1534 = vunpack.c.l.b16 %v327
    %v1535 = vunpack.c.h.b16 %v327
    %v1536 = vunpack.c.l.b16 %v328
    %v1537 = vunpack.c.h.b16 %v328
    %v1538 = vunpack.c.l.b16 %v329
    %v1539 = vunpack.c.h.b16 %v329
    %v1540 = vunpack.c.l.b16 %v330
    %v1541 = vunpack.c.h.b16 %v330
    %v1542 = vunpack.c.l.b16 %v331
    %v1543 = vunpack.c.h.b16 %v331
    %v1544 = vunpack.c.l.b16 %v332
    %v1545 = vunpack.c.h.b16 %v332
    %v1546 = vunpack.c.l.b16 %v333
    %v1547 = vunpack.c.h.b16 %v333
    %v1548 = vunpack.c.l.b16 %v334
    %v1549 = vunpack.c.h.b16 %v334
    %v1550 = vunpack.c.l.b16 %v335
    %v1551 = vunpack.c.h.b16 %v335
    %v1552 = vunpack.c.l.b16 %v336
    %v1553 = vunpack.c.h.b16 %v336
    %v1554 = vunpack.c.l.b16 %v337
    %v1555 = vunpack.c.h.b16 %v337
    %v1556 = vunpack.c.l.b16 %v338
    %v1557 = vunpack.c.h.b16 %v338
    %v1558 = vunpack.c.l.b16 %v339
    %v1559 = vunpack.c.h.b16 %v339
    %v1560 = vunpack.c.l.b16 %v340
    %v1561 = vunpack.c.h.b16 %v340
    %v1562 = vunpack.c.l.b16 %v341
    %v1563 = vunpack.c.h.b16 %v341
    %v1564 = vunpack.c.l.b16 %v342
    %v1565 = vunpack.c.h.b16 %v342
    %v1566 = vunpack.c.l.b16 %v343
    %v1567 = vunpack.c.h.b16 %v343
    %v1568 = vunpack.c.l.b16 %v344
    %v1569 = vunpack.c.h.b16 %v344
    %v1570 = vunpack.c.l.b16 %v345
    %v1571 = vunpack.c.h.b16 %v345
    %v1572 = vunpack.c.l.b16 %v346
    %v1573 = vunpack.c.h.b16 %v346
    %v1574 = vunpack.c.l.b16 %v347
    %v1575 = vunpack.c.h.b16 %v347
    %v1576 = vunpack.c.l.b16 %v348
    %v1577 = vunpack.c.h.b16 %v348
    %v1578 = vunpack.c.l.b16 %v349
    %v1579 = vunpack.c.h.b16 %v349
    %v1580 = vunpack.c.l.b16 %v350
    %v1581 = vunpack.c.h.b16 %v350
    %v1582 = vunpack.c.l.b16 %v351
    %v1583 = vunpack.c.h.b16 %v351
    %v1584 = vunpack.c.l.b16 %v352
    %v1585 = vunpack.c.h.b16 %v352
    %v1586 = vunpack.c.l.b16 %v353
    %v1587 = vunpack.c.h.b16 %v353
    %v1588 = vunpack.c.l.b16 %v354
    %v1589 = vunpack.c.h.b16 %v354
    %v1590 = vunpack.c.l.b16 %v355
    %v1591 = vunpack.c.h.b16 %v355
    %v1592 = vunpack.c.l.b16 %v356
    %v1593 = vunpack.c.h.b16 %v356
    %v1594 = vunpack.c.l.b16 %v357
    %v1595 = vunpack.c.h.b16 %v357
    %v1596 = vunpack.c.l.b16 %v358
    %v1597 = vunpack.c.h.b16 %v358
    %v1598 = vunpack.c.l.b16 %v359
    %v1599 = vunpack.c.h.b16 %v359
    %v1600 = vunpack.c.l.b16 %v360
    %v1601 = vunpack.c.h.b16 %v360
    %v1602 = vunpack.c.l.b16 %v361
    %v1603 = vunpack.c.h.b16 %v361
    %v1604 = vunpack.c.l.b16 %v362
    %v1605 = vunpack.c.h.b16 %v362
    %v1606 = vunpack.c.l.b16 %v363
    %v1607 = vunpack.c.h.b16 %v363
    %v1608 = vunpack.c.l.b16 %v364
    %v1609 = vunpack.c.h.b16 %v364
    %v1610 = vunpack.c.l.b16 %v365
    %v1611 = vunpack.c.h.b16 %v365
    %v1612 = vunpack.c.l.b16 %v366
    %v1613 = vunpack.c.h.b16 %v366
    %v1614 = vunpack.c.l.b16 %v367
    %v1615 = vunpack.c.h.b16 %v367
    %v1616 = vunpack.c.l.b16 %v368
    %v1617 = vunpack.c.h.b16 %v368
    %v1618 = vunpack.c.l.b16 %v369
    %v1619 = vunpack.c.h.b16 %v369
    %v1620 = vunpack.c.l.b16 %v370
    %v1621 = vunpack.c.h.b16 %v370
    %v1622 = vunpack.c.l.b16 %v371
    %v1623 = vunpack.c.h.b16 %v371
    %v1624 = vunpack.c.l.b16 %v372
    %v1625 = vunpack.c.h.b16 %v372
    %v1626 = vunpack.c.l.b16 %v373
    %v1627 = vunpack.c.h.b16 %v373
    %v1628 = vunpack.c.l.b16 %v374
    %v1629 = vunpack.c.h.b16 %v374
    %v1630 = vunpack.c.l.b16 %v375
    %v1631 = vunpack.c.h.b16 %v375
    %v1632 = vunpack.c.l.b16 %v376
    %v1633 = vunpack.c.h.b16 %v376
    %v1634 = vunpack.c.l.b16 %v377
    %v1635 = vunpack.c.h.b16 %v377
    %v1636 = vunpack.c.l.b16 %v378
    %v1637 = vunpack.c.h.b16 %v378
    %v1638 = vunpack.c.l.b16 %v379
    %v1639 = vunpack.c.h.b16 %v379
    %v1640 = vunpack.c.l.b16 %v380
    %v1641 = vunpack.c.h.b16 %v380
    %v1642 = vunpack.c.l.b16 %v381
    %v1643 = vunpack.c.h.b16 %v381
    %v1644 = vunpack.c.l.b16 %v382
    %v1645 = vunpack.c.h.b16 %v382
    %v1646 = vunpack.c.l.b16 %v383
    %v1647 = vunpack.c.h.b16 %v383
    %v1648 = vunpack.c.l.b16 %v384
    %v1649 = vunpack.c.h.b16 %v384
    %v1650 = vunpack.c.l.b16 %v385
    %v1651 = vunpack.c.h.b16 %v385
    %v1652 = vunpack.c.l.b16 %v386
    %v1653 = vunpack.c.h.b16 %v386
    %v1654 = vunpack.c.l.b16 %v387
    %v1655 = vunpack.c.h.b16 %v387
    %v1656 = vunpack.c.l.b16 %v388
    %v1657 = vunpack.c.h.b16 %v388
    %v1658 = vunpack.c.l.b16 %v389
    %v1659 = vunpack.c.h.b16 %v389
    %v1660 = vunpack.c.l.b16 %v390
    %v1661 = vunpack.c.h.b16 %v390
    %v1662 = vunpack.c.l.b16 %v391
    %v1663 = vunpack.c.h.b16 %v391
    %v1664 = vunpack.c.l.b16 %v392
    %v1665 = vunpack.c.h.b16 %v392
    %v1666 = vunpack.c.l.b16 %v393
    %v1667 = vunpack.c.h.b16 %v393
    %v1668 = vunpack.c.l.b16 %v394
    %v1669 = vunpack.c.h.b16 %v394
    %v1670 = vunpack.c.l.b16 %v395
    %v1671 = vunpack.c.h.b16 %v395
    %v1672 = vunpack.c.l.b16 %v396
    %v1673 = vunpack.c.h.b16 %v396
    %v1674 = vunpack.c.l.b16 %v397
    %v1675 = vunpack.c.h.b16 %v397
    %v1676 = vunpack.c.l.b16 %v398
    %v1677 = vunpack.c.h.b16 %v398
    %v1678 = vunpack.c.l.b16 %v399
    %v1679 = vunpack.c.h.b16 %v399
    %v1680 = vunpack.c.l.b16 %v400
    %v1681 = vunpack.c.h.b16 %v400
    %v1682 = vunpack.c.l.b16 %v401
    %v1683 = vunpack.c.h.b16 %v401
    %v1684 = vunpack.c.l.b16 %v402
    %v1685 = vunpack.c.h.b16 %v402
    %v1686 = vunpack.c.l.b16 %v403
    %v1687 = vunpack.c.h.b16 %v403
    %v1688 = vunpack.c.l.b16 %v404
    %v1689 = vunpack.c.h.b16 %v404
    %v1690 = vunpack.c.l.b16 %v405
    %v1691 = vunpack.c.h.b16 %v405
    %v1692 = vunpack.c.l.b16 %v406
    %v1693 = vunpack.c.h.b16 %v406
    %v1694 = vunpack.c.l.b16 %v407
    %v1695 = vunpack.c.h.b16 %v407
    %v1696 = vunpack.c.l.b16 %v408
    %v1697 = vunpack.c.h.b16 %v408
    %v1698 = vunpack.c.l.b16 %v409
    %v1699 = vunpack.c.h.b16 %v409
    %v1700 = vunpack.c.l.b16 %v410
    %v1701 = vunpack.c.h.b16 %v410
    %v1702 = vunpack.c.l.b16 %v411
    %v1703 = vunpack.c.h.b16 %v411
    %v1704 = vunpack.c.l.b16 %v412
    %v1705 = vunpack.c.h.b16 %v412
    %v1706 = vunpack.c.l.b16 %v413
    %v1707 = vunpack.c.h.b16 %v413
    %v1708 = vunpack.c.l.b16 %v414
    %v1709 = vunpack.c.h.b16 %v414
    %v1710 = vunpack.c.l.b16 %v415
    %v1711 = vunpack.c.h.b16 %v415
    %v1712 = vunpack.c.l.b16 %v416
    %v1713 = vunpack.c.h.b16 %v416
    %v1714 = vunpack.c.l.b16 %v417
    %v1715 = vunpack.c.h.b16 %v417
    %v1716 = vunpack.c.l.b16 %v418
    %v1717 = vunpack.c.h.b16 %v418
    %v1718 = vunpack.c.l.b16 %v419
    %v1719 = vunpack.c.h.b16 %v419
    %v1720 = vpack.c.b16 %v940, %v936
    %v1721 = vpack.c.b16 %v941, %v937
    %v1722 = vpack.c.b16 %v942, %v938
    %v1723 = vpack.c.b16 %v943, %v939
    %v1724 = vpack.c.b16 %v948, %v944
    %v1725 = vpack.c.b16 %v949, %v945
    %v1726 = vpack.c.b16 %v950, %v946
    %v1727 = vpack.c.b16 %v951, %v947
    %v1728 = vpack.c.b16 %v956, %v952
    %v1729 = vpack.c.b16 %v957, %v953
    %v1730 = vpack.c.b16 %v958, %v954
    %v1731 = vpack.c.b16 %v959, %v955
    %v1732 = vpack.c.b16 %v964, %v960
    %v1733 = vpack.c.b16 %v965, %v961
    %v1734 = vpack.c.b16 %v966, %v962
    %v1735 = vpack.c.b16 %v967, %v963
    %v1736 = vpack.c.b16 %v972, %v968
    %v1737 = vpack.c.b16 %v973, %v969
    %v1738 = vpack.c.b16 %v974, %v970
    %v1739 = vpack.c.b16 %v975, %v971
    %v1740 = vpack.c.b16 %v980, %v976
    %v1741 = vpack.c.b16 %v981, %v977
    %v1742 = vpack.c.b16 %v982, %v978
    %v1743 = vpack.c.b16 %v983, %v979
    %v1744 = vpack.c.b16 %v988, %v984
    %v1745 = vpack.c.b16 %v989, %v985
    %v1746 = vpack.c.b16 %v990, %v986
    %v1747 = vpack.c.b16 %v991, %v987
    %v1748 = vpack.c.b16 %v996, %v992
    %v1749 = vpack.c.b16 %v997, %v993
    %v1750 = vpack.c.b16 %v998, %v994
    %v1751 = vpack.c.b16 %v999, %v995
    %v1752 = vpack.c.b16 %v1004, %v1000
    %v1753 = vpack.c.b16 %v1005, %v1001
    %v1754 = vpack.c.b16 %v1006, %v1002
    %v1755 = vpack.c.b16 %v1007, %v1003
    %v1756 = vpack.c.b16 %v1012, %v1008
    %v1757 = vpack.c.b16 %v1013, %v1009
    %v1758 = vpack.c.b16 %v1014, %v1010
    %v1759 = vpack.c.b16 %v1015, %v1011
    %v1760 = vpack.c.b16 %v1020, %v1016
    %v1761 = vpack.c.b16 %v1021, %v1017
    %v1762 = vpack.c.b16 %v1022, %v1018
    %v1763 = vpack.c.b16 %v1023, %v1019
    %v1764 = vpack.c.b16 %v1028, %v1024
    %v1765 = vpack.c.b16 %v1029, %v1025
    %v1766 = vpack.c.b16 %v1030, %v1026
    %v1767 = vpack.c.b16 %v1031, %v1027
    %v1768 = vpack.c.b16 %v1036, %v1032
    %v1769 = vpack.c.b16 %v1037, %v1033
    %v1770 = vpack.c.b16 %v1038, %v1034
    %v1771 = vpack.c.b16 %v1039, %v1035
    %v1772 = vpack.c.b16 %v1044, %v1040
    %v1773 = vpack.c.b16 %v1045, %v1041
    %v1774 = vpack.c.b16 %v1046, %v1042
    %v1775 = vpack.c.b16 %v1047, %v1043
    %v1776 = vpack.c.b16 %v1052, %v1048
    %v1777 = vpack.c.b16 %v1053, %v1049
    %v1778 = vpack.c.b16 %v1054, %v1050
    %v1779 = vpack.c.b16 %v1055, %v1051
    %v1780 = vpack.c.b16 %v1060, %v1056
    %v1781 = vpack.c.b16 %v1061, %v1057
    %v1782 = vpack.c.b16 %v1062, %v1058
    %v1783 = vpack.c.b16 %v1063, %v1059
    %v1784 = vpack.c.b16 %v1068, %v1064
    %v1785 = vpack.c.b16 %v1069, %v1065
    %v1786 = vpack.c.b16 %v1070, %v1066
    %v1787 = vpack.c.b16 %v1071, %v1067
    %v1788 = vpack.c.b16 %v1076, %v1072
    %v1789 = vpack.c.b16 %v1077, %v1073
    %v1790 = vpack.c.b16 %v1078, %v1074
    %v1791 = vpack.c.b16 %v1079, %v1075
    %v1792 = vpack.c.b16 %v1084, %v1080
    %v1793 = vpack.c.b16 %v1085, %v1081
    %v1794 = vpack.c.b16 %v1086, %v1082
    %v1795 = vpack.c.b16 %v1087, %v1083
    %v1796 = vpack.c.b16 %v1092, %v1088
    %v1797 = vpack.c.b16 %v1093, %v1089
    %v1798 = vpack.c.b16 %v1094, %v1090
    %v1799 = vpack.c.b16 %v1095, %v1091
    %v1800 = vpack.c.b16 %v1100, %v1096
    %v1801 = vpack.c.b16 %v1101, %v1097
    %v1802 = vpack.c.b16 %v1102, %v1098
    %v1803 = vpack.c.b16 %v1103, %v1099
    %v1804 = vpack.c.b16 %v1108, %v1104
    %v1805 = vpack.c.b16 %v1109, %v1105
    %v1806 = vpack.c.b16 %v1110, %v1106
    %v1807 = vpack.c.b16 %v1111, %v1107
    %v1808 = vpack.c.b16 %v1116, %v1112
    %v1809 = vpack.c.b16 %v1117, %v1113
    %v1810 = vpack.c.b16 %v1118, %v1114
    %v1811 = vpack.c.b16 %v1119, %v1115
    %v1812 = vpack.c.b16 %v1124, %v1120
    %v1813 = vpack.c.b16 %v1125, %v1121
    %v1814 = vpack.c.b16 %v1126, %v1122
    %v1815 = vpack.c.b16 %v1127, %v1123
    %v1816 = vpack.c.b16 %v1132, %v1128
    %v1817 = vpack.c.b16 %v1133, %v1129
    %v1818 = vpack.c.b16 %v1134, %v1130
    %v1819 = vpack.c.b16 %v1135, %v1131
    %v1820 = vpack.c.b16 %v1140, %v1136
    %v1821 = vpack.c.b16 %v1141, %v1137
    %v1822 = vpack.c.b16 %v1142, %v1138
    %v1823 = vpack.c.b16 %v1143, %v1139
    %v1824 = vpack.c.b16 %v1148, %v1144
    %v1825 = vpack.c.b16 %v1149, %v1145
    %v1826 = vpack.c.b16 %v1150, %v1146
    %v1827 = vpack.c.b16 %v1151, %v1147
    %v1828 = vpack.c.b16 %v1156, %v1152
    %v1829 = vpack.c.b16 %v1157, %v1153
    %v1830 = vpack.c.b16 %v1158, %v1154
    %v1831 = vpack.c.b16 %v1159, %v1155
    %v1832 = vpack.c.b16 %v1164, %v1160
    %v1833 = vpack.c.b16 %v1165, %v1161
    %v1834 = vpack.c.b16 %v1166, %v1162
    %v1835 = vpack.c.b16 %v1167, %v1163
    %v1836 = vpack.c.b16 %v1172, %v1168
    %v1837 = vpack.c.b16 %v1173, %v1169
    %v1838 = vpack.c.b16 %v1174, %v1170
    %v1839 = vpack.c.b16 %v1175, %v1171
    %v1840 = vpack.c.b16 %v1180, %v1176
    %v1841 = vpack.c.b16 %v1181, %v1177
    %v1842 = vpack.c.b16 %v1182, %v1178
    %v1843 = vpack.c.b16 %v1183, %v1179
    %v1844 = vpack.c.b16 %v1188, %v1184
    %v1845 = vpack.c.b16 %v1189, %v1185
    %v1846 = vpack.c.b16 %v1190, %v1186
    %v1847 = vpack.c.b16 %v1191, %v1187
    %v1848 = vpack.c.b16 %v1196, %v1192
    %v1849 = vpack.c.b16 %v1197, %v1193
    %v1850 = vpack.c.b16 %v1198, %v1194
    %v1851 = vpack.c.b16 %v1199, %v1195
    %v1852 = vpack.c.b16 %v1204, %v1200
    %v1853 = vpack.c.b16 %v1205, %v1201
    %v1854 = vpack.c.b16 %v1206, %v1202
    %v1855 = vpack.c.b16 %v1207, %v1203
    %v1856 = vpack.c.b16 %v1212, %v1208
    %v1857 = vpack.c.b16 %v1213, %v1209
    %v1858 = vpack.c.b16 %v1214, %v1210
    %v1859 = vpack.c.b16 %v1215, %v1211
    %v1860 = vpack.c.b16 %v1220, %v1216
    %v1861 = vpack.c.b16 %v1221, %v1217
    %v1862 = vpack.c.b16 %v1222, %v1218
    %v1863 = vpack.c.b16 %v1223, %v1219
    %v1864 = vpack.c.b16 %v1228, %v1224
    %v1865 = vpack.c.b16 %v1229, %v1225
    %v1866 = vpack.c.b16 %v1230, %v1226
    %v1867 = vpack.c.b16 %v1231, %v1227
    %v1868 = vpack.c.b16 %v1236, %v1232
    %v1869 = vpack.c.b16 %v1237, %v1233
    %v1870 = vpack.c.b16 %v1238, %v1234
    %v1871 = vpack.c.b16 %v1239, %v1235
    %v1872 = vpack.c.b16 %v1244, %v1240
    %v1873 = vpack.c.b16 %v1245, %v1241
    %v1874 = vpack.c.b16 %v1246, %v1242
    %v1875 = vpack.c.b16 %v1247, %v1243
    %v1876 = vpack.c.b16 %v1252, %v1248
    %v1877 = vpack.c.b16 %v1253, %v1249
    %v1878 = vpack.c.b16 %v1254, %v1250
    %v1879 = vpack.c.b16 %v1255, %v1251
    %v1880 = vpack.c.b16 %v1260, %v1256
    %v1881 = vpack.c.b16 %v1261, %v1257
    %v1882 = vpack.c.b16 %v1262, %v1258
    %v1883 = vpack.c.b16 %v1263, %v1259
    %v1884 = vpack.c.b16 %v1268, %v1264
    %v1885 = vpack.c.b16 %v1269, %v1265
    %v1886 = vpack.c.b16 %v1270, %v1266
    %v1887 = vpack.c.b16 %v1271, %v1267
    %v1888 = vpack.c.b16 %v1276, %v1272
    %v1889 = vpack.c.b16 %v1277, %v1273
    %v1890 = vpack.c.b16 %v1278, %v1274
    %v1891 = vpack.c.b16 %v1279, %v1275
    %v1892 = vpack.c.b16 %v1284, %v1280
    %v1893 = vpack.c.b16 %v1285, %v1281
    %v1894 = vpack.c.b16 %v1286, %v1282
    %v1895 = vpack.c.b16 %v1287, %v1283
    %v1896 = vpack.c.b16 %v1292, %v1288
    %v1897 = vpack.c.b16 %v1293, %v1289
    %v1898 = vpack.c.b16 %v1294, %v1290
    %v1899 = vpack.c.b16 %v1295, %v1291
    %v1900 = vpack.c.b16 %v1300, %v1296
    %v1901 = vpack.c.b16 %v1301, %v1297
    %v1902 = vpack.c.b16 %v1302, %v1298
    %v1903 = vpack.c.b16 %v1303, %v1299
    %v1904 = vpack.c.b16 %v1308, %v1304
    %v1905 = vpack.c.b16 %v1309, %v1305
    %v1906 = vpack.c.b16 %v1310, %v1306
    %v1907 = vpack.c.b16 %v1311, %v1307
    %v1908 = vpack.c.b16 %v1316, %v1312
    %v1909 = vpack.c.b16 %v1317, %v1313
    %v1910 = vpack.c.b16 %v1318, %v1314
    %v1911 = vpack.c.b16 %v1319, %v1315
    %v1912 = vpack.c.b16 %v1324, %v1320
    %v1913 = vpack.c.b16 %v1325, %v1321
    %v1914 = vpack.c.b16 %v1326, %v1322
    %v1915 = vpack.c.b16 %v1327, %v1323
    %v1916 = vpack.c.b16 %v1332, %v1328
    %v1917 = vpack.c.b16 %v1333, %v1329
    %v1918 = vpack.c.b16 %v1334, %v1330
    %v1919 = vpack.c.b16 %v1335, %v1331
    %v1920 = vpack.c.b16 %v1340, %v1336
    %v1921 = vpack.c.b16 %v1341, %v1337
    %v1922 = vpack.c.b16 %v1342, %v1338
    %v1923 = vpack.c.b16 %v1343, %v1339
    %v1924 = vpack.c.b16 %v1348, %v1344
    %v1925 = vpack.c.b16 %v1349, %v1345
    %v1926 = vpack.c.b16 %v1350, %v1346
    %v1927 = vpack.c.b16 %v1351, %v1347
    %v1928 = vpack.c.b16 %v1356, %v1352
    %v1929 = vpack.c.b16 %v1357, %v1353
    %v1930 = vpack.c.b16 %v1358, %v1354
    %v1931 = vpack.c.b16 %v1359, %v1355
    %v1932 = vpack.c.b16 %v1364, %v1360
    %v1933 = vpack.c.b16 %v1365, %v1361
    %v1934 = vpack.c.b16 %v1366, %v1362
    %v1935 = vpack.c.b16 %v1367, %v1363
    %v1936 = vpack.c.b16 %v1372, %v1368
    %v1937 = vpack.c.b16 %v1373, %v1369
    %v1938 = vpack.c.b16 %v1374, %v1370
    %v1939 = vpack.c.b16 %v1375, %v1371
    %v1940 = vpack.c.b16 %v1380, %v1376
    %v1941 = vpack.c.b16 %v1381, %v1377
    %v1942 = vpack.c.b16 %v1382, %v1378
    %v1943 = vpack.c.b16 %v1383, %v1379
    %v1944 = vpack.c.b16 %v1388, %v1384
    %v1945 = vpack.c.b16 %v1389, %v1385
    %v1946 = vpack.c.b16 %v1390, %v1386
    %v1947 = vpack.c.b16 %v1391, %v1387
    %v1948 = vpack.c.b16 %v1396, %v1392
    %v1949 = vpack.c.b16 %v1397, %v1393
    %v1950 = vpack.c.b16 %v1398, %v1394
    %v1951 = vpack.c.b16 %v1399, %v1395
    %v1952 = vpack.c.b16 %v1404, %v1400
    %v1953 = vpack.c.b16 %v1405, %v1401
    %v1954 = vpack.c.b16 %v1406, %v1402
    %v1955 = vpack.c.b16 %v1407, %v1403
    %v1956 = vpack.c.b16 %v1412, %v1408
    %v1957 = vpack.c.b16 %v1413, %v1409
    %v1958 = vpack.c.b16 %v1414, %v1410
    %v1959 = vpack.c.b16 %v1415, %v1411
    %v1960 = vpack.c.b16 %v1420, %v1416
    %v1961 = vpack.c.b16 %v1421, %v1417
    %v1962 = vpack.c.b16 %v1422, %v1418
    %v1963 = vpack.c.b16 %v1423, %v1419
    %v1964 = vpack.c.b16 %v1428, %v1424
    %v1965 = vpack.c.b16 %v1429, %v1425
    %v1966 = vpack.c.b16 %v1430, %v1426
    %v1967 = vpack.c.b16 %v1431, %v1427
    %v1968 = vpack.c.b16 %v1436, %v1432
    %v1969 = vpack.c.b16 %v1437, %v1433
    %v1970 = vpack.c.b16 %v1438, %v1434
    %v1971 = vpack.c.b16 %v1439, %v1435
    %v1972 = vpack.c.b16 %v1444, %v1440
    %v1973 = vpack.c.b16 %v1445, %v1441
    %v1974 = vpack.c.b16 %v1446, %v1442
    %v1975 = vpack.c.b16 %v1447, %v1443
    %v1976 = vpack.c.b16 %v1452, %v1448
    %v1977 = vpack.c.b16 %v1453, %v1449
    %v1978 = vpack.c.b16 %v1454, %v1450
    %v1979 = vpack.c.b16 %v1455, %v1451
    %v1980 = vpack.c.b16 %v1460, %v1456
    %v1981 = vpack.c.b16 %v1461, %v1457
    %v1982 = vpack.c.b16 %v1462, %v1458
    %v1983 = vpack.c.b16 %v1463, %v1459
    %v1984 = vpack.c.b16 %v1468, %v1464
    %v1985 = vpack.c.b16 %v1469, %v1465
    %v1986 = vpack.c.b16 %v1470, %v1466
    %v1987 = vpack.c.b16 %v1471, %v1467
    %v1988 = vpack.c.b16 %v1476, %v1472
    %v1989 = vpack.c.b16 %v1477, %v1473
    %v1990 = vpack.c.b16 %v1478, %v1474
    %v1991 = vpack.c.b16 %v1479, %v1475
    %v1992 = vpack.c.b16 %v1484, %v1480
    %v1993 = vpack.c.b16 %v1485, %v1481
    %v1994 = vpack.c.b16 %v1486, %v1482
    %v1995 = vpack.c.b16 %v1487, %v1483
    %v1996 = vpack.c.b16 %v1492, %v1488
    %v1997 = vpack.c.b16 %v1493, %v1489
    %v1998 = vpack.c.b16 %v1494, %v1490
    %v1999 = vpack.c.b16 %v1495, %v1491
    %v2000 = vpack.c.b16 %v1500, %v1496
    %v2001 = vpack.c.b16 %v1501, %v1497
    %v2002 = vpack.c.b16 %v1502, %v1498
    %v2003 = vpack.c.b16 %v1503, %v1499
    %v2004 = vpack.c.b16 %v1508, %v1504
    %v2005 = vpack.c.b16 %v1509, %v1505
    %v2006 = vpack.c.b16 %v1510, %v1506
    %v2007 = vpack.c.b16 %v1511, %v1507
    %v2008 = vpack.c.b16 %v1516, %v1512
    %v2009 = vpack.c.b16 %v1517, %v1513
    %v2010 = vpack.c.b16 %v1518, %v1514
    %v2011 = vpack.c.b16 %v1519, %v1515
    %v2012 = vpack.c.b16 %v1524, %v1520
    %v2013 = vpack.c.b16 %v1525, %v1521
    %v2014 = vpack.c.b16 %v1526, %v1522
    %v2015 = vpack.c.b16 %v1527, %v1523
    %v2016 = vpack.c.b16 %v1532, %v1528
    %v2017 = vpack.c.b16 %v1533, %v1529
    %v2018 = vpack.c.b16 %v1534, %v1530
    %v2019 = vpack.c.b16 %v1535, %v1531
    %v2020 = vpack.c.b16 %v1540, %v1536
    %v2021 = vpack.c.b16 %v1541, %v1537
    %v2022 = vpack.c.b16 %v1542, %v1538
    %v2023 = vpack.c.b16 %v1543, %v1539
    %v2024 = vpack.c.b16 %v1548, %v1544
    %v2025 = vpack.c.b16 %v1549, %v1545
    %v2026 = vpack.c.b16 %v1550, %v1546
    %v2027 = vpack.c.b16 %v1551, %v1547
    %v2028 = vpack.c.b16 %v1556, %v1552
    %v2029 = vpack.c.b16 %v1557, %v1553
    %v2030 = vpack.c.b16 %v1558, %v1554
    %v2031 = vpack.c.b16 %v1559, %v1555
    %v2032 = vpack.c.b16 %v1564, %v1560
    %v2033 = vpack.c.b16 %v1565, %v1561
    %v2034 = vpack.c.b16 %v1566, %v1562
    %v2035 = vpack.c.b16 %v1567, %v1563
    %v2036 = vpack.c.b16 %v1572, %v1568
    %v2037 = vpack.c.b16 %v1573, %v1569
    %v2038 = vpack.c.b16 %v1574, %v1570
    %v2039 = vpack.c.b16 %v1575, %v1571
    %v2040 = vpack.c.b16 %v1580, %v1576
    %v2041 = vpack.c.b16 %v1581, %v1577
    %v2042 = vpack.c.b16 %v1582, %v1578
    %v2043 = vpack.c.b16 %v1583, %v1579
    %v2044 = vpack.c.b16 %v1588, %v1584
    %v2045 = vpack.c.b16 %v1589, %v1585
    %v2046 = vpack.c.b16 %v1590, %v1586
    %v2047 = vpack.c.b16 %v1591, %v1587
    %v2048 = vpack.c.b16 %v1596, %v1592
    %v2049 = vpack.c.b16 %v1597, %v1593
    %v2050 = vpack.c.b16 %v1598, %v1594
    %v2051 = vpack.c.b16 %v1599, %v1595
    %v2052 = vpack.c.b16 %v1604, %v1600
    %v2053 = vpack.c.b16 %v1605, %v1601
    %v2054 = vpack.c.b16 %v1606, %v1602
    %v2055 = vpack.c.b16 %v1607, %v1603
    %v2056 = vpack.c.b16 %v1612, %v1608
    %v2057 = vpack.c.b16 %v1613, %v1609
    %v2058 = vpack.c.b16 %v1614, %v1610
    %v2059 = vpack.c.b16 %v1615, %v1611
    %v2060 = vpack.c.b16 %v1620, %v1616
    %v2061 = vpack.c.b16 %v1621, %v1617
    %v2062 = vpack.c.b16 %v1622, %v1618
    %v2063 = vpack.c.b16 %v1623, %v1619
    %v2064 = vpack.c.b16 %v1628, %v1624
    %v2065 = vpack.c.b16 %v1629, %v1625
    %v2066 = vpack.c.b16 %v1630, %v1626
    %v2067 = vpack.c.b16 %v1631, %v1627
    %v2068 = vpack.c.b16 %v1636, %v1632
    %v2069 = vpack.c.b16 %v1637, %v1633
    %v2070 = vpack.c.b16 %v1638, %v1634
    %v2071 = vpack.c.b16 %v1639, %v1635
    %v2072 = vpack.c.b16 %v1644, %v1640
    %v2073 = vpack.c.b16 %v1645, %v1641
    %v2074 = vpack.c.b16 %v1646, %v1642
    %v2075 = vpack.c.b16 %v1647, %v1643
    %v2076 = vpack.c.b16 %v1652, %v1648
    %v2077 = vpack.c.b16 %v1653, %v1649
    %v2078 = vpack.c.b16 %v1654, %v1650
    %v2079 = vpack.c.b16 %v1655, %v1651
    %v2080 = vpack.c.b16 %v1660, %v1656
    %v2081 = vpack.c.b16 %v1661, %v1657
    %v2082 = vpack.c.b16 %v1662, %v1658
    %v2083 = vpack.c.b16 %v1663, %v1659
    %v2084 = vpack.c.b16 %v1668, %v1664
    %v2085 = vpack.c.b16 %v1669, %v1665
    %v2086 = vpack.c.b16 %v1670, %v1666
    %v2087 = vpack.c.b16 %v1671, %v1667
    %v2088 = vpack.c.b16 %v1676, %v1672
    %v2089 = vpack.c.b16 %v1677, %v1673
    %v2090 = vpack.c.b16 %v1678, %v1674
    %v2091 = vpack.c.b16 %v1679, %v1675
    %v2092 = vpack.c.b16 %v1684, %v1680
    %v2093 = vpack.c.b16 %v1685, %v1681
    %v2094 = vpack.c.b16 %v1686, %v1682
    %v2095 = vpack.c.b16 %v1687, %v1683
    %v2096 = vpack.c.b16 %v1692, %v1688
    %v2097 = vpack.c.b16 %v1693, %v1689
    %v2098 = vpack.c.b16 %v1694, %v1690
    %v2099 = vpack.c.b16 %v1695, %v1691
    %v2100 = vpack.c.b16 %v1700, %v1696
    %v2101 = vpack.c.b16 %v1701, %v1697
    %v2102 = vpack.c.b16 %v1702, %v1698
    %v2103 = vpack.c.b16 %v1703, %v1699
    %v2104 = vpack.c.b16 %v1708, %v1704
    %v2105 = vpack.c.b16 %v1709, %v1705
    %v2106 = vpack.c.b16 %v1710, %v1706
    %v2107 = vpack.c.b16 %v1711, %v1707
    %v2108 = vpack.c.b16 %v1716, %v1712
    %v2109 = vpack.c.b16 %v1717, %v1713
    %v2110 = vpack.c.b16 %v1718, %v1714
    %v2111 = vpack.c.b16 %v1719, %v1715
    %vm2504 = vcmask 261120
    %v2506 = vsel %vm2504, %v522, 0
    %2508 = vmatprep.subr.bf16.mxu0 %v1749
    %2509 = vmatpush1.bf16.msra.mxu0 %v1748
    %2510 = vmatprep.subr.bf16.mxu0 %v1745
    %2511 = vmatpush1.bf16.msra.mxu0 %v1744
    %2512 = vmatprep.subr.bf16.mxu0 %v1741
    %2513 = vmatpush1.bf16.msra.mxu0 %v1740
    %2514 = vmatprep.subr.bf16.mxu0 %v1737
    %2515 = vmatpush1.bf16.msra.mxu0 %v1736
    %2516 = vmatprep.subr.bf16.mxu0 %v1733
    %2517 = vmatpush1.bf16.msra.mxu0 %v1732
    %2518 = vmatprep.subr.bf16.mxu0 %v1729
    %2519 = vmatpush1.bf16.msra.mxu0 %v1728
    %2520 = vmatprep.subr.bf16.mxu0 %v1725
    %2521 = vmatpush1.bf16.msra.mxu0 %v1724
    %2522 = vmatprep.subr.bf16.mxu0 %v1721
    %2523 = vmatpush1.bf16.msra.mxu0 %v1720
    %2524 = vmatprep.subr.bf16.mxu0 %v1781
    %2525 = vmatpush2.bf16.msra.mxu0 %v1780
    %2526 = vmatprep.subr.bf16.mxu0 %v1777
    %2527 = vmatpush2.bf16.msra.mxu0 %v1776
    %2528 = vmatprep.subr.bf16.mxu0 %v1773
    %2529 = vmatpush2.bf16.msra.mxu0 %v1772
    %2530 = vmatprep.subr.bf16.mxu0 %v1769
    %2531 = vmatpush2.bf16.msra.mxu0 %v1768
    %2532 = vmatprep.subr.bf16.mxu0 %v1765
    %2533 = vmatpush2.bf16.msra.mxu0 %v1764
    %2534 = vmatprep.subr.bf16.mxu0 %v1761
    %2535 = vmatpush2.bf16.msra.mxu0 %v1760
    %2536 = vmatprep.subr.bf16.mxu0 %v1757
    %2537 = vmatpush2.bf16.msra.mxu0 %v1756
    %2538 = vmatprep.subr.bf16.mxu0 %v1753
    %2539 = vmatpush2.bf16.msra.mxu0 %v1752
    %2540 = vmatprep.mubr.bf16.mxu0 %v481
    %2541 = vmatmul.mubr.bf16.gmra.mxu0 %v467
    %v2542 = vpop.f32.mrf.mxu0
    %v2543 = vadd.f32 %v425, %v2542
    %v2544 = vpop.f32.mrf.mxu0
    %v2545 = vadd.f32 %v429, %v2544
    %v2546 = vpop.f32.mrf.mxu0
    %v2547 = vpop.f32.mrf.mxu0
    %2548 = vdwg.mxu0
    %2549 = vmatprep.subr.bf16.mxu0 %v1813
    %2550 = vmatpush1.bf16.msra.mxu0 %v1812
    %2551 = vmatprep.subr.bf16.mxu0 %v1809
    %2552 = vmatpush1.bf16.msra.mxu0 %v1808
    %2553 = vmatprep.subr.bf16.mxu0 %v1805
    %2554 = vmatpush1.bf16.msra.mxu0 %v1804
    %2555 = vmatprep.subr.bf16.mxu0 %v1801
    %2556 = vmatpush1.bf16.msra.mxu0 %v1800
    %2557 = vmatprep.subr.bf16.mxu0 %v1797
    %2558 = vmatpush1.bf16.msra.mxu0 %v1796
    %2559 = vmatprep.subr.bf16.mxu0 %v1793
    %2560 = vmatpush1.bf16.msra.mxu0 %v1792
    %2561 = vmatprep.subr.bf16.mxu0 %v1789
    %2562 = vmatpush1.bf16.msra.mxu0 %v1788
    %2563 = vmatprep.subr.bf16.mxu0 %v1785
    %2564 = vmatpush1.bf16.msra.mxu0 %v1784
    %2565 = vmatprep.subr.bf16.mxu0 %v1845
    %2566 = vmatpush2.bf16.msra.mxu0 %v1844
    %2567 = vmatprep.subr.bf16.mxu0 %v1841
    %2568 = vmatpush2.bf16.msra.mxu0 %v1840
    %2569 = vmatprep.subr.bf16.mxu0 %v1837
    %2570 = vmatpush2.bf16.msra.mxu0 %v1836
    %2571 = vmatprep.subr.bf16.mxu0 %v1833
    %2572 = vmatpush2.bf16.msra.mxu0 %v1832
    %2573 = vmatprep.subr.bf16.mxu0 %v1829
    %2574 = vmatpush2.bf16.msra.mxu0 %v1828
    %2575 = vmatprep.subr.bf16.mxu0 %v1825
    %2576 = vmatpush2.bf16.msra.mxu0 %v1824
    %2577 = vmatprep.subr.bf16.mxu0 %v1821
    %2578 = vmatpush2.bf16.msra.mxu0 %v1820
    %2579 = vmatprep.subr.bf16.mxu0 %v1817
    %2580 = vmatpush2.bf16.msra.mxu0 %v1816
    %2581 = vmatprep.mubr.bf16.mxu0 %v491
    %2582 = vmatmul.mubr.bf16.gmra.mxu0 %v489
    %v2583 = vpop.f32.mrf.mxu0
    %v2584 = vadd.f32 %v2543, %v2583
    %v2585 = vpop.f32.mrf.mxu0
    %v2586 = vadd.f32 %v2545, %v2585
    %v2587 = vpop.f32.mrf.mxu0
    %v2588 = vpop.f32.mrf.mxu0
    %2589 = vdwg.mxu0
    %2590 = vmatprep.subr.bf16.mxu0 %v1877
    %2591 = vmatpush1.bf16.msra.mxu0 %v1876
    %2592 = vmatprep.subr.bf16.mxu0 %v1873
    %2593 = vmatpush1.bf16.msra.mxu0 %v1872
    %2594 = vmatprep.subr.bf16.mxu0 %v1869
    %2595 = vmatpush1.bf16.msra.mxu0 %v1868
    %2596 = vmatprep.subr.bf16.mxu0 %v1865
    %2597 = vmatpush1.bf16.msra.mxu0 %v1864
    %2598 = vmatprep.subr.bf16.mxu0 %v1861
    %2599 = vmatpush1.bf16.msra.mxu0 %v1860
    %2600 = vmatprep.subr.bf16.mxu0 %v1857
    %2601 = vmatpush1.bf16.msra.mxu0 %v1856
    %2602 = vmatprep.subr.bf16.mxu0 %v1853
    %2603 = vmatpush1.bf16.msra.mxu0 %v1852
    %2604 = vmatprep.subr.bf16.mxu0 %v1849
    %2605 = vmatpush1.bf16.msra.mxu0 %v1848
    %2606 = vmatprep.subr.bf16.mxu0 %v1909
    %2607 = vmatpush2.bf16.msra.mxu0 %v1908
    %2608 = vmatprep.subr.bf16.mxu0 %v1905
    %2609 = vmatpush2.bf16.msra.mxu0 %v1904
    %2610 = vmatprep.subr.bf16.mxu0 %v1901
    %2611 = vmatpush2.bf16.msra.mxu0 %v1900
    %2612 = vmatprep.subr.bf16.mxu0 %v1897
    %2613 = vmatpush2.bf16.msra.mxu0 %v1896
    %2614 = vmatprep.subr.bf16.mxu0 %v1893
    %2615 = vmatpush2.bf16.msra.mxu0 %v1892
    %2616 = vmatprep.subr.bf16.mxu0 %v1889
    %2617 = vmatpush2.bf16.msra.mxu0 %v1888
    %2618 = vmatprep.subr.bf16.mxu0 %v1885
    %2619 = vmatpush2.bf16.msra.mxu0 %v1884
    %2620 = vmatprep.subr.bf16.mxu0 %v1881
    %2621 = vmatpush2.bf16.msra.mxu0 %v1880
    %2622 = vmatprep.mubr.bf16.mxu0 %v488
    %2623 = vmatmul.mubr.bf16.gmra.mxu0 %v474
    %v2624 = vpop.f32.mrf.mxu0
    %v2625 = vadd.f32 %v2584, %v2624
    %v2626 = vpop.f32.mrf.mxu0
    %v2627 = vadd.f32 %v2586, %v2626
    %v2628 = vpop.f32.mrf.mxu0
    %v2629 = vpop.f32.mrf.mxu0
    %2630 = vdwg.mxu0
    %2631 = vmatprep.subr.bf16.mxu0 %v1941
    %2632 = vmatpush1.bf16.msra.mxu0 %v1940
    %2633 = vmatprep.subr.bf16.mxu0 %v1937
    %2634 = vmatpush1.bf16.msra.mxu0 %v1936
    %2635 = vmatprep.subr.bf16.mxu0 %v1933
    %2636 = vmatpush1.bf16.msra.mxu0 %v1932
    %2637 = vmatprep.subr.bf16.mxu0 %v1929
    %2638 = vmatpush1.bf16.msra.mxu0 %v1928
    %2639 = vmatprep.subr.bf16.mxu0 %v1925
    %2640 = vmatpush1.bf16.msra.mxu0 %v1924
    %2641 = vmatprep.subr.bf16.mxu0 %v1921
    %2642 = vmatpush1.bf16.msra.mxu0 %v1920
    %2643 = vmatprep.subr.bf16.mxu0 %v1917
    %2644 = vmatpush1.bf16.msra.mxu0 %v1916
    %2645 = vmatprep.subr.bf16.mxu0 %v1913
    %2646 = vmatpush1.bf16.msra.mxu0 %v1912
    %2647 = vmatprep.subr.bf16.mxu0 %v1973
    %2648 = vmatpush2.bf16.msra.mxu0 %v1972
    %2649 = vmatprep.subr.bf16.mxu0 %v1969
    %2650 = vmatpush2.bf16.msra.mxu0 %v1968
    %2651 = vmatprep.subr.bf16.mxu0 %v1965
    %2652 = vmatpush2.bf16.msra.mxu0 %v1964
    %2653 = vmatprep.subr.bf16.mxu0 %v1961
    %2654 = vmatpush2.bf16.msra.mxu0 %v1960
    %2655 = vmatprep.subr.bf16.mxu0 %v1957
    %2656 = vmatpush2.bf16.msra.mxu0 %v1956
    %2657 = vmatprep.subr.bf16.mxu0 %v1953
    %2658 = vmatpush2.bf16.msra.mxu0 %v1952
    %2659 = vmatprep.subr.bf16.mxu0 %v1949
    %2660 = vmatpush2.bf16.msra.mxu0 %v1948
    %2661 = vmatprep.subr.bf16.mxu0 %v1945
    %2662 = vmatpush2.bf16.msra.mxu0 %v1944
    %2663 = vmatprep.mubr.bf16.mxu0 %v492
    %2664 = vmatmul.mubr.bf16.gmra.mxu0 %v490
    %v2665 = vpop.f32.mrf.mxu0
    %v2666 = vadd.f32 %v2625, %v2665
    %v2667 = vpop.f32.mrf.mxu0
    %v2668 = vadd.f32 %v2627, %v2667
    %v2669 = vpop.f32.mrf.mxu0
    %v2670 = vpop.f32.mrf.mxu0
    %2671 = vdwg.mxu0
    %2672 = vmatprep.subr.bf16.mxu0 %v2005
    %2673 = vmatpush1.bf16.msra.mxu0 %v2004
    %2674 = vmatprep.subr.bf16.mxu0 %v2001
    %2675 = vmatpush1.bf16.msra.mxu0 %v2000
    %2676 = vmatprep.subr.bf16.mxu0 %v1997
    %2677 = vmatpush1.bf16.msra.mxu0 %v1996
    %2678 = vmatprep.subr.bf16.mxu0 %v1993
    %2679 = vmatpush1.bf16.msra.mxu0 %v1992
    %2680 = vmatprep.subr.bf16.mxu0 %v1989
    %2681 = vmatpush1.bf16.msra.mxu0 %v1988
    %2682 = vmatprep.subr.bf16.mxu0 %v1985
    %2683 = vmatpush1.bf16.msra.mxu0 %v1984
    %2684 = vmatprep.subr.bf16.mxu0 %v1981
    %2685 = vmatpush1.bf16.msra.mxu0 %v1980
    %2686 = vmatprep.subr.bf16.mxu0 %v1977
    %2687 = vmatpush1.bf16.msra.mxu0 %v1976
    %2688 = vmatprep.subr.bf16.mxu0 %v2037
    %2689 = vmatpush2.bf16.msra.mxu0 %v2036
    %2690 = vmatprep.subr.bf16.mxu0 %v2033
    %2691 = vmatpush2.bf16.msra.mxu0 %v2032
    %2692 = vmatprep.subr.bf16.mxu0 %v2029
    %2693 = vmatpush2.bf16.msra.mxu0 %v2028
    %2694 = vmatprep.subr.bf16.mxu0 %v2025
    %2695 = vmatpush2.bf16.msra.mxu0 %v2024
    %2696 = vmatprep.subr.bf16.mxu0 %v2021
    %2697 = vmatpush2.bf16.msra.mxu0 %v2020
    %2698 = vmatprep.subr.bf16.mxu0 %v2017
    %2699 = vmatpush2.bf16.msra.mxu0 %v2016
    %2700 = vmatprep.subr.bf16.mxu0 %v2013
    %2701 = vmatpush2.bf16.msra.mxu0 %v2012
    %2702 = vmatprep.subr.bf16.mxu0 %v2009
    %2703 = vmatpush2.bf16.msra.mxu0 %v2008
    %2704 = vmatprep.mubr.bf16.mxu0 %v529
    %2705 = vmatmul.mubr.bf16.gmra.mxu0 %v515
    %v2706 = vpop.f32.mrf.mxu0
    %v2707 = vadd.f32 %v2666, %v2706
    %v2708 = vpop.f32.mrf.mxu0
    %v2709 = vadd.f32 %v2668, %v2708
    %v2710 = vpop.f32.mrf.mxu0
    %v2711 = vpop.f32.mrf.mxu0
    %2712 = vdwg.mxu0
    %2713 = vmatprep.subr.bf16.mxu0 %v2069
    %2714 = vmatpush1.bf16.msra.mxu0 %v2068
    %2715 = vmatprep.subr.bf16.mxu0 %v2065
    %2716 = vmatpush1.bf16.msra.mxu0 %v2064
    %2717 = vmatprep.subr.bf16.mxu0 %v2061
    %2718 = vmatpush1.bf16.msra.mxu0 %v2060
    %2719 = vmatprep.subr.bf16.mxu0 %v2057
    %2720 = vmatpush1.bf16.msra.mxu0 %v2056
    %2721 = vmatprep.subr.bf16.mxu0 %v2053
    %2722 = vmatpush1.bf16.msra.mxu0 %v2052
    %2723 = vmatprep.subr.bf16.mxu0 %v2049
    %2724 = vmatpush1.bf16.msra.mxu0 %v2048
    %2725 = vmatprep.subr.bf16.mxu0 %v2045
    %2726 = vmatpush1.bf16.msra.mxu0 %v2044
    %2727 = vmatprep.subr.bf16.mxu0 %v2041
    %2728 = vmatpush1.bf16.msra.mxu0 %v2040
    %2729 = vmatprep.subr.bf16.mxu0 %v2101
    %2730 = vmatpush2.bf16.msra.mxu0 %v2100
    %2731 = vmatprep.subr.bf16.mxu0 %v2097
    %2732 = vmatpush2.bf16.msra.mxu0 %v2096
    %2733 = vmatprep.subr.bf16.mxu0 %v2093
    %2734 = vmatpush2.bf16.msra.mxu0 %v2092
    %2735 = vmatprep.subr.bf16.mxu0 %v2089
    %2736 = vmatpush2.bf16.msra.mxu0 %v2088
    %2737 = vmatprep.subr.bf16.mxu0 %v2085
    %2738 = vmatpush2.bf16.msra.mxu0 %v2084
    %2739 = vmatprep.subr.bf16.mxu0 %v2081
    %2740 = vmatpush2.bf16.msra.mxu0 %v2080
    %2741 = vmatprep.subr.bf16.mxu0 %v2077
    %2742 = vmatpush2.bf16.msra.mxu0 %v2076
    %2743 = vmatprep.subr.bf16.mxu0 %v2073
    %2744 = vmatpush2.bf16.msra.mxu0 %v2072
    %2745 = vmatprep.mubr.bf16.mxu0 %v531
    %2746 = vmatmul.mubr.bf16.gmra.mxu0 %v530
    %v2747 = vpop.f32.mrf.mxu0
    %v2748 = vadd.f32 %v2707, %v2747
    %v2749 = vpop.f32.mrf.mxu0
    %v2750 = vadd.f32 %v2709, %v2749
    %v2751 = vpop.f32.mrf.mxu0
    %v2752 = vpop.f32.mrf.mxu0
    %2753 = vdwg.mxu0
    %2754 = vmatprep.subr.bf16.mxu0 0
    %2755 = vmatpush1.bf16.msra.mxu0 0
    %2756 = vmatprep.subr.bf16.mxu0 0
    %2757 = vmatpush1.bf16.msra.mxu0 0
    %2758 = vmatprep.subr.bf16.mxu0 0
    %2759 = vmatpush1.bf16.msra.mxu0 0
    %2760 = vmatprep.subr.bf16.mxu0 0
    %2761 = vmatpush1.bf16.msra.mxu0 0
    %2762 = vmatprep.subr.bf16.mxu0 0
    %2763 = vmatpush1.bf16.msra.mxu0 0
    %2764 = vmatprep.subr.bf16.mxu0 0
    %2765 = vmatpush1.bf16.msra.mxu0 0
    %2766 = vmatprep.subr.bf16.mxu0 %v2109
    %2767 = vmatpush1.bf16.msra.mxu0 %v2108
    %2768 = vmatprep.subr.bf16.mxu0 %v2105
    %2769 = vmatpush1.bf16.msra.mxu0 %v2104
    %2770 = vmatprep.subr.bf16.mxu0 0
    %2771 = vmatpush2.bf16.msra.mxu0 0
    %2772 = vmatprep.subr.bf16.mxu0 0
    %2773 = vmatpush2.bf16.msra.mxu0 0
    %2774 = vmatprep.subr.bf16.mxu0 0
    %2775 = vmatpush2.bf16.msra.mxu0 0
    %2776 = vmatprep.subr.bf16.mxu0 0
    %2777 = vmatpush2.bf16.msra.mxu0 0
    %2778 = vmatprep.subr.bf16.mxu0 0
    %2779 = vmatpush2.bf16.msra.mxu0 0
    %2780 = vmatprep.subr.bf16.mxu0 0
    %2781 = vmatpush2.bf16.msra.mxu0 0
    %2782 = vmatprep.subr.bf16.mxu0 0
    %2783 = vmatpush2.bf16.msra.mxu0 0
    %2784 = vmatprep.subr.bf16.mxu0 0
    %2785 = vmatpush2.bf16.msra.mxu0 0
    %2786 = vmatprep.mubr.bf16.mxu0 0
    %2787 = vmatmul.mubr.bf16.gmra.mxu0 %v2506
    %v2788 = vpop.f32.mrf.mxu0
    %v2789 = vadd.f32 %v2748, %v2788
    %v2790 = vpop.f32.mrf.mxu0
    %v2791 = vadd.f32 %v2750, %v2790
    %v2792 = vpop.f32.mrf.mxu0
    %v2793 = vpop.f32.mrf.mxu0
    %2794 = vdwg.mxu0
    %2795 = vmatprep.subr.bf16.mxu0 %v1751
    %2796 = vmatpush1.bf16.msra.mxu0 %v1750
    %2797 = vmatprep.subr.bf16.mxu0 %v1747
    %2798 = vmatpush1.bf16.msra.mxu0 %v1746
    %2799 = vmatprep.subr.bf16.mxu0 %v1743
    %2800 = vmatpush1.bf16.msra.mxu0 %v1742
    %2801 = vmatprep.subr.bf16.mxu0 %v1739
    %2802 = vmatpush1.bf16.msra.mxu0 %v1738
    %2803 = vmatprep.subr.bf16.mxu0 %v1735
    %2804 = vmatpush1.bf16.msra.mxu0 %v1734
    %2805 = vmatprep.subr.bf16.mxu0 %v1731
    %2806 = vmatpush1.bf16.msra.mxu0 %v1730
    %2807 = vmatprep.subr.bf16.mxu0 %v1727
    %2808 = vmatpush1.bf16.msra.mxu0 %v1726
    %2809 = vmatprep.subr.bf16.mxu0 %v1723
    %2810 = vmatpush1.bf16.msra.mxu0 %v1722
    %2811 = vmatprep.subr.bf16.mxu0 %v1783
    %2812 = vmatpush2.bf16.msra.mxu0 %v1782
    %2813 = vmatprep.subr.bf16.mxu0 %v1779
    %2814 = vmatpush2.bf16.msra.mxu0 %v1778
    %2815 = vmatprep.subr.bf16.mxu0 %v1775
    %2816 = vmatpush2.bf16.msra.mxu0 %v1774
    %2817 = vmatprep.subr.bf16.mxu0 %v1771
    %2818 = vmatpush2.bf16.msra.mxu0 %v1770
    %2819 = vmatprep.subr.bf16.mxu0 %v1767
    %2820 = vmatpush2.bf16.msra.mxu0 %v1766
    %2821 = vmatprep.subr.bf16.mxu0 %v1763
    %2822 = vmatpush2.bf16.msra.mxu0 %v1762
    %2823 = vmatprep.subr.bf16.mxu0 %v1759
    %2824 = vmatpush2.bf16.msra.mxu0 %v1758
    %2825 = vmatprep.subr.bf16.mxu0 %v1755
    %2826 = vmatpush2.bf16.msra.mxu0 %v1754
    %2827 = vmatprep.mubr.bf16.mxu0 %v481
    %2828 = vmatmul.mubr.bf16.gmra.mxu0 %v467
    %v2829 = vpop.f32.mrf.mxu0
    %v2830 = vadd.f32 %v433, %v2829
    %v2831 = vpop.f32.mrf.mxu0
    %v2832 = vadd.f32 %v437, %v2831
    %v2833 = vpop.f32.mrf.mxu0
    %v2834 = vpop.f32.mrf.mxu0
    %2835 = vdwg.mxu0
    %2836 = vmatprep.subr.bf16.mxu0 %v1815
    %2837 = vmatpush1.bf16.msra.mxu0 %v1814
    %2838 = vmatprep.subr.bf16.mxu0 %v1811
    %2839 = vmatpush1.bf16.msra.mxu0 %v1810
    %2840 = vmatprep.subr.bf16.mxu0 %v1807
    %2841 = vmatpush1.bf16.msra.mxu0 %v1806
    %2842 = vmatprep.subr.bf16.mxu0 %v1803
    %2843 = vmatpush1.bf16.msra.mxu0 %v1802
    %2844 = vmatprep.subr.bf16.mxu0 %v1799
    %2845 = vmatpush1.bf16.msra.mxu0 %v1798
    %2846 = vmatprep.subr.bf16.mxu0 %v1795
    %2847 = vmatpush1.bf16.msra.mxu0 %v1794
    %2848 = vmatprep.subr.bf16.mxu0 %v1791
    %2849 = vmatpush1.bf16.msra.mxu0 %v1790
    %2850 = vmatprep.subr.bf16.mxu0 %v1787
    %2851 = vmatpush1.bf16.msra.mxu0 %v1786
    %2852 = vmatprep.subr.bf16.mxu0 %v1847
    %2853 = vmatpush2.bf16.msra.mxu0 %v1846
    %2854 = vmatprep.subr.bf16.mxu0 %v1843
    %2855 = vmatpush2.bf16.msra.mxu0 %v1842
    %2856 = vmatprep.subr.bf16.mxu0 %v1839
    %2857 = vmatpush2.bf16.msra.mxu0 %v1838
    %2858 = vmatprep.subr.bf16.mxu0 %v1835
    %2859 = vmatpush2.bf16.msra.mxu0 %v1834
    %2860 = vmatprep.subr.bf16.mxu0 %v1831
    %2861 = vmatpush2.bf16.msra.mxu0 %v1830
    %2862 = vmatprep.subr.bf16.mxu0 %v1827
    %2863 = vmatpush2.bf16.msra.mxu0 %v1826
    %2864 = vmatprep.subr.bf16.mxu0 %v1823
    %2865 = vmatpush2.bf16.msra.mxu0 %v1822
    %2866 = vmatprep.subr.bf16.mxu0 %v1819
    %2867 = vmatpush2.bf16.msra.mxu0 %v1818
    %2868 = vmatprep.mubr.bf16.mxu0 %v491
    %2869 = vmatmul.mubr.bf16.gmra.mxu0 %v489
    %v2870 = vpop.f32.mrf.mxu0
    %v2871 = vadd.f32 %v2830, %v2870
    %v2872 = vpop.f32.mrf.mxu0
    %v2873 = vadd.f32 %v2832, %v2872
    %v2874 = vpop.f32.mrf.mxu0
    %v2875 = vpop.f32.mrf.mxu0
    %2876 = vdwg.mxu0
    %2877 = vmatprep.subr.bf16.mxu0 %v1879
    %2878 = vmatpush1.bf16.msra.mxu0 %v1878
    %2879 = vmatprep.subr.bf16.mxu0 %v1875
    %2880 = vmatpush1.bf16.msra.mxu0 %v1874
    %2881 = vmatprep.subr.bf16.mxu0 %v1871
    %2882 = vmatpush1.bf16.msra.mxu0 %v1870
    %2883 = vmatprep.subr.bf16.mxu0 %v1867
    %2884 = vmatpush1.bf16.msra.mxu0 %v1866
    %2885 = vmatprep.subr.bf16.mxu0 %v1863
    %2886 = vmatpush1.bf16.msra.mxu0 %v1862
    %2887 = vmatprep.subr.bf16.mxu0 %v1859
    %2888 = vmatpush1.bf16.msra.mxu0 %v1858
    %2889 = vmatprep.subr.bf16.mxu0 %v1855
    %2890 = vmatpush1.bf16.msra.mxu0 %v1854
    %2891 = vmatprep.subr.bf16.mxu0 %v1851
    %2892 = vmatpush1.bf16.msra.mxu0 %v1850
    %2893 = vmatprep.subr.bf16.mxu0 %v1911
    %2894 = vmatpush2.bf16.msra.mxu0 %v1910
    %2895 = vmatprep.subr.bf16.mxu0 %v1907
    %2896 = vmatpush2.bf16.msra.mxu0 %v1906
    %2897 = vmatprep.subr.bf16.mxu0 %v1903
    %2898 = vmatpush2.bf16.msra.mxu0 %v1902
    %2899 = vmatprep.subr.bf16.mxu0 %v1899
    %2900 = vmatpush2.bf16.msra.mxu0 %v1898
    %2901 = vmatprep.subr.bf16.mxu0 %v1895
    %2902 = vmatpush2.bf16.msra.mxu0 %v1894
    %2903 = vmatprep.subr.bf16.mxu0 %v1891
    %2904 = vmatpush2.bf16.msra.mxu0 %v1890
    %2905 = vmatprep.subr.bf16.mxu0 %v1887
    %2906 = vmatpush2.bf16.msra.mxu0 %v1886
    %2907 = vmatprep.subr.bf16.mxu0 %v1883
    %2908 = vmatpush2.bf16.msra.mxu0 %v1882
    %2909 = vmatprep.mubr.bf16.mxu0 %v488
    %2910 = vmatmul.mubr.bf16.gmra.mxu0 %v474
    %v2911 = vpop.f32.mrf.mxu0
    %v2912 = vadd.f32 %v2871, %v2911
    %v2913 = vpop.f32.mrf.mxu0
    %v2914 = vadd.f32 %v2873, %v2913
    %v2915 = vpop.f32.mrf.mxu0
    %v2916 = vpop.f32.mrf.mxu0
    %2917 = vdwg.mxu0
    %2918 = vmatprep.subr.bf16.mxu0 %v1943
    %2919 = vmatpush1.bf16.msra.mxu0 %v1942
    %2920 = vmatprep.subr.bf16.mxu0 %v1939
    %2921 = vmatpush1.bf16.msra.mxu0 %v1938
    %2922 = vmatprep.subr.bf16.mxu0 %v1935
    %2923 = vmatpush1.bf16.msra.mxu0 %v1934
    %2924 = vmatprep.subr.bf16.mxu0 %v1931
    %2925 = vmatpush1.bf16.msra.mxu0 %v1930
    %2926 = vmatprep.subr.bf16.mxu0 %v1927
    %2927 = vmatpush1.bf16.msra.mxu0 %v1926
    %2928 = vmatprep.subr.bf16.mxu0 %v1923
    %2929 = vmatpush1.bf16.msra.mxu0 %v1922
    %2930 = vmatprep.subr.bf16.mxu0 %v1919
    %2931 = vmatpush1.bf16.msra.mxu0 %v1918
    %2932 = vmatprep.subr.bf16.mxu0 %v1915
    %2933 = vmatpush1.bf16.msra.mxu0 %v1914
    %2934 = vmatprep.subr.bf16.mxu0 %v1975
    %2935 = vmatpush2.bf16.msra.mxu0 %v1974
    %2936 = vmatprep.subr.bf16.mxu0 %v1971
    %2937 = vmatpush2.bf16.msra.mxu0 %v1970
    %2938 = vmatprep.subr.bf16.mxu0 %v1967
    %2939 = vmatpush2.bf16.msra.mxu0 %v1966
    %2940 = vmatprep.subr.bf16.mxu0 %v1963
    %2941 = vmatpush2.bf16.msra.mxu0 %v1962
    %2942 = vmatprep.subr.bf16.mxu0 %v1959
    %2943 = vmatpush2.bf16.msra.mxu0 %v1958
    %2944 = vmatprep.subr.bf16.mxu0 %v1955
    %2945 = vmatpush2.bf16.msra.mxu0 %v1954
    %2946 = vmatprep.subr.bf16.mxu0 %v1951
    %2947 = vmatpush2.bf16.msra.mxu0 %v1950
    %2948 = vmatprep.subr.bf16.mxu0 %v1947
    %2949 = vmatpush2.bf16.msra.mxu0 %v1946
    %2950 = vmatprep.mubr.bf16.mxu0 %v492
    %2951 = vmatmul.mubr.bf16.gmra.mxu0 %v490
    %v2952 = vpop.f32.mrf.mxu0
    %v2953 = vadd.f32 %v2912, %v2952
    %v2954 = vpop.f32.mrf.mxu0
    %v2955 = vadd.f32 %v2914, %v2954
    %v2956 = vpop.f32.mrf.mxu0
    %v2957 = vpop.f32.mrf.mxu0
    %2958 = vdwg.mxu0
    %2959 = vmatprep.subr.bf16.mxu0 %v2007
    %2960 = vmatpush1.bf16.msra.mxu0 %v2006
    %2961 = vmatprep.subr.bf16.mxu0 %v2003
    %2962 = vmatpush1.bf16.msra.mxu0 %v2002
    %2963 = vmatprep.subr.bf16.mxu0 %v1999
    %2964 = vmatpush1.bf16.msra.mxu0 %v1998
    %2965 = vmatprep.subr.bf16.mxu0 %v1995
    %2966 = vmatpush1.bf16.msra.mxu0 %v1994
    %2967 = vmatprep.subr.bf16.mxu0 %v1991
    %2968 = vmatpush1.bf16.msra.mxu0 %v1990
    %2969 = vmatprep.subr.bf16.mxu0 %v1987
    %2970 = vmatpush1.bf16.msra.mxu0 %v1986
    %2971 = vmatprep.subr.bf16.mxu0 %v1983
    %2972 = vmatpush1.bf16.msra.mxu0 %v1982
    %2973 = vmatprep.subr.bf16.mxu0 %v1979
    %2974 = vmatpush1.bf16.msra.mxu0 %v1978
    %2975 = vmatprep.subr.bf16.mxu0 %v2039
    %2976 = vmatpush2.bf16.msra.mxu0 %v2038
    %2977 = vmatprep.subr.bf16.mxu0 %v2035
    %2978 = vmatpush2.bf16.msra.mxu0 %v2034
    %2979 = vmatprep.subr.bf16.mxu0 %v2031
    %2980 = vmatpush2.bf16.msra.mxu0 %v2030
    %2981 = vmatprep.subr.bf16.mxu0 %v2027
    %2982 = vmatpush2.bf16.msra.mxu0 %v2026
    %2983 = vmatprep.subr.bf16.mxu0 %v2023
    %2984 = vmatpush2.bf16.msra.mxu0 %v2022
    %2985 = vmatprep.subr.bf16.mxu0 %v2019
    %2986 = vmatpush2.bf16.msra.mxu0 %v2018
    %2987 = vmatprep.subr.bf16.mxu0 %v2015
    %2988 = vmatpush2.bf16.msra.mxu0 %v2014
    %2989 = vmatprep.subr.bf16.mxu0 %v2011
    %2990 = vmatpush2.bf16.msra.mxu0 %v2010
    %2991 = vmatprep.mubr.bf16.mxu0 %v529
    %2992 = vmatmul.mubr.bf16.gmra.mxu0 %v515
    %v2993 = vpop.f32.mrf.mxu0
    %v2994 = vadd.f32 %v2953, %v2993
    %v2995 = vpop.f32.mrf.mxu0
    %v2996 = vadd.f32 %v2955, %v2995
    %v2997 = vpop.f32.mrf.mxu0
    %v2998 = vpop.f32.mrf.mxu0
    %2999 = vdwg.mxu0
    %3000 = vmatprep.subr.bf16.mxu0 %v2071
    %3001 = vmatpush1.bf16.msra.mxu0 %v2070
    %3002 = vmatprep.subr.bf16.mxu0 %v2067
    %3003 = vmatpush1.bf16.msra.mxu0 %v2066
    %3004 = vmatprep.subr.bf16.mxu0 %v2063
    %3005 = vmatpush1.bf16.msra.mxu0 %v2062
    %3006 = vmatprep.subr.bf16.mxu0 %v2059
    %3007 = vmatpush1.bf16.msra.mxu0 %v2058
    %3008 = vmatprep.subr.bf16.mxu0 %v2055
    %3009 = vmatpush1.bf16.msra.mxu0 %v2054
    %3010 = vmatprep.subr.bf16.mxu0 %v2051
    %3011 = vmatpush1.bf16.msra.mxu0 %v2050
    %3012 = vmatprep.subr.bf16.mxu0 %v2047
    %3013 = vmatpush1.bf16.msra.mxu0 %v2046
    %3014 = vmatprep.subr.bf16.mxu0 %v2043
    %3015 = vmatpush1.bf16.msra.mxu0 %v2042
    %3016 = vmatprep.subr.bf16.mxu0 %v2103
    %3017 = vmatpush2.bf16.msra.mxu0 %v2102
    %3018 = vmatprep.subr.bf16.mxu0 %v2099
    %3019 = vmatpush2.bf16.msra.mxu0 %v2098
    %3020 = vmatprep.subr.bf16.mxu0 %v2095
    %3021 = vmatpush2.bf16.msra.mxu0 %v2094
    %3022 = vmatprep.subr.bf16.mxu0 %v2091
    %3023 = vmatpush2.bf16.msra.mxu0 %v2090
    %3024 = vmatprep.subr.bf16.mxu0 %v2087
    %3025 = vmatpush2.bf16.msra.mxu0 %v2086
    %3026 = vmatprep.subr.bf16.mxu0 %v2083
    %3027 = vmatpush2.bf16.msra.mxu0 %v2082
    %3028 = vmatprep.subr.bf16.mxu0 %v2079
    %3029 = vmatpush2.bf16.msra.mxu0 %v2078
    %3030 = vmatprep.subr.bf16.mxu0 %v2075
    %3031 = vmatpush2.bf16.msra.mxu0 %v2074
    %3032 = vmatprep.mubr.bf16.mxu0 %v531
    %3033 = vmatmul.mubr.bf16.gmra.mxu0 %v530
    %v3034 = vpop.f32.mrf.mxu0
    %v3035 = vadd.f32 %v2994, %v3034
    %v3036 = vpop.f32.mrf.mxu0
    %v3037 = vadd.f32 %v2996, %v3036
    %v3038 = vpop.f32.mrf.mxu0
    %v3039 = vpop.f32.mrf.mxu0
    %3040 = vdwg.mxu0
    %3041 = vmatprep.subr.bf16.mxu0 0
    %3042 = vmatpush1.bf16.msra.mxu0 0
    %3043 = vmatprep.subr.bf16.mxu0 0
    %3044 = vmatpush1.bf16.msra.mxu0 0
    %3045 = vmatprep.subr.bf16.mxu0 0
    %3046 = vmatpush1.bf16.msra.mxu0 0
    %3047 = vmatprep.subr.bf16.mxu0 0
    %3048 = vmatpush1.bf16.msra.mxu0 0
    %3049 = vmatprep.subr.bf16.mxu0 0
    %3050 = vmatpush1.bf16.msra.mxu0 0
    %3051 = vmatprep.subr.bf16.mxu0 0
    %3052 = vmatpush1.bf16.msra.mxu0 0
    %3053 = vmatprep.subr.bf16.mxu0 %v2111
    %3054 = vmatpush1.bf16.msra.mxu0 %v2110
    %3055 = vmatprep.subr.bf16.mxu0 %v2107
    %3056 = vmatpush1.bf16.msra.mxu0 %v2106
    %3057 = vmatprep.subr.bf16.mxu0 0
    %3058 = vmatpush2.bf16.msra.mxu0 0
    %3059 = vmatprep.subr.bf16.mxu0 0
    %3060 = vmatpush2.bf16.msra.mxu0 0
    %3061 = vmatprep.subr.bf16.mxu0 0
    %3062 = vmatpush2.bf16.msra.mxu0 0
    %3063 = vmatprep.subr.bf16.mxu0 0
    %3064 = vmatpush2.bf16.msra.mxu0 0
    %3065 = vmatprep.subr.bf16.mxu0 0
    %3066 = vmatpush2.bf16.msra.mxu0 0
    %3067 = vmatprep.subr.bf16.mxu0 0
    %3068 = vmatpush2.bf16.msra.mxu0 0
    %3069 = vmatprep.subr.bf16.mxu0 0
    %3070 = vmatpush2.bf16.msra.mxu0 0
    %3071 = vmatprep.subr.bf16.mxu0 0
    %3072 = vmatpush2.bf16.msra.mxu0 0
    %3073 = vmatprep.mubr.bf16.mxu0 0
    %3074 = vmatmul.mubr.bf16.gmra.mxu0 %v2506
    %v3075 = vpop.f32.mrf.mxu0
    %v3076 = vadd.f32 %v3035, %v3075
    %v3077 = vpop.f32.mrf.mxu0
    %v3078 = vadd.f32 %v3037, %v3077
    %v3079 = vpop.f32.mrf.mxu0
    %v3080 = vpop.f32.mrf.mxu0
    %3081 = vdwg.mxu0
    %v3082 = vmax.f32 %v2789, 0.0
    %v3083 = vmax.f32 %v2791, 0.0
    %v3084 = vmax.f32 %v3076, 0.0
    %v3085 = vmax.f32 %v3078, 0.0
    %v3086 = vpack.c.bf16 %v3082, %v3082
    %v3087 = vpack.c.bf16 %v3083, %v3083
    %v3088 = vpack.c.bf16 %v3084, %v3084
    %v3089 = vpack.c.bf16 %v3085, %v3085
    %v3094 = vcombine.low %v3086, %v3087
    %v3095 = vcombine.low %v3088, %v3089
    %v3097 = vunpack.c.l.s4 1966171168
    %v3098 = vunpack.c.0.s8 %v3097
    %v3099 = vlaneseq
    %v3100 = vshrl.u32 %v3099, 7
    %v3101 = vsub.s32 %v3098, %v3100
    %v3102 = vrot.slane %v3094, %v3101
    %v3104 = vunpack.c.l.s4 1966171168
    %v3105 = vunpack.c.0.s8 %v3104
    %v3106 = vlaneseq
    %v3107 = vshrl.u32 %v3106, 7
    %v3108 = vsub.s32 %v3105, %v3107
    %v3109 = vrot.slane %v3095, %v3108
    %v3110 = vcombine.low %v3102, %v3109
    %v3112 = vunpack.c.l.s4 1966171168
    %v3113 = vunpack.c.0.s8 %v3112
    %v3114 = vlaneseq
    %v3115 = vshrl.u32 %v3114, 7
    %v3116 = vsub.s32 %v3113, %v3115
    %v3117 = vrot.slane %v3110, %v3116
    %3119 = vst [vmem:[#allocation3] sm:$0xf] %v3117
    %v3120 = vld [vmem:[%s3] sm:$0xf]
    %v3122 = vlaneseq
    %v3123 = vshrl.u32 %v3122, 7
    %v3124 = vsub.s32 0, %v3123
    %v3125 = vrot.slane %v3120, %v3124
    %v3126 = vlaneseq
    %v3127 = vshrl.u32 %v3126, 7
    %v3128 = vsub.s32 1, %v3127
    %v3129 = vrot.slane %v3120, %v3128
    %v3130 = vlaneseq
    %v3131 = vshrl.u32 %v3130, 7
    %v3132 = vsub.s32 2, %v3131
    %v3133 = vrot.slane %v3120, %v3132
    %v3134 = vlaneseq
    %v3135 = vshrl.u32 %v3134, 7
    %v3136 = vsub.s32 3, %v3135
    %v3137 = vrot.slane %v3120, %v3136
    %v3142 = vmul.f32 %v3082, %v3125
    %v3143 = vmul.f32 %v3083, %v3129
    %v3144 = vmul.f32 %v3084, %v3133
    %v3145 = vmul.f32 %v3085, %v3137
    %vm3146 = vcmask 1041408
    %v3147 = vsel %vm3146, %v3142, 0.0
    %v3148 = vsel %vm3146, %v3143, 0.0
    %v3149 = vadd.f32 %v3147, %v3148
    %v3150 = vsel %vm3146, %v3144, 0.0
    %v3151 = vadd.f32 %v3149, %v3150
    %v3152 = vsel %vm3146, %v3145, 0.0
    %v3153 = vadd.f32 %v3151, %v3152
    %3154 = vadd.xlane.f32.xlu0 %v3153
    %v3155 = vpop.xlane.xlu0 %3154
    %v3156 = vld [vmem:[#allocation2] sm:$0x1]
    %v3158 = vlaneseq
    %v3159 = vshrl.u32 %v3158, 7
    %v3160 = vsub.s32 0, %v3159
    %v3161 = vrot.slane %v3156, %v3160
    %v3163 = vadd.f32 %v3155, %v3161
    %vm3164 = vcmask 1024
    %3165 = vst.msk [vmem:[%s6] sm:$0x3] %vm3164, %v3163
    // Predicated region
    $region22: #{cnn_policy_forward.7} parent=1 // pred_check
      _
    $region23: #{cnn_policy_forward.7} parent=1 // pred_check_branch
      %3167 = sbr.rel (0) target = $region25
    $region24: #{cnn_policy_forward.7} parent=1 // pred_region
      %s3169 = ssub.s32 64, 64
      %3170 = vsyncadd [#allocation4], %s3169
      %s3172 = sshll.u32 [#allocation3], 4
      %s3173 = int_to_ptr.vmem [resolvable:$true] %s3172
      %3175 = dma.vmem_to_hbm [thread:$0]  %s3173, 64, %s5, [#allocation4]
    $region25: #{cnn_policy_forward.7} parent=1 // pred_fallthru
      _
    // Predicated region
    $region26: #{cnn_policy_forward.7} parent=1 // pred_check
      _
    $region27: #{cnn_policy_forward.7} parent=1 // pred_check_branch
      %3177 = sbr.rel (0) target = $region29
    $region28: #{cnn_policy_forward.7} parent=1 // pred_region
      _
    $region29: #{cnn_policy_forward.7} parent=1 // pred_fallthru
      _
    // Predicated region
    $region30: #{cnn_policy_forward.7} parent=1 // pred_check
      _
    $region31: #{cnn_policy_forward.7} parent=1 // pred_check_branch
      %3179 = sbr.rel (0) target = $region33
    $region32: #{cnn_policy_forward.7} parent=1 // pred_region
      %3180 = dma.done [#allocation4], 64
    $region33: #{cnn_policy_forward.7} parent=1 // pred_fallthru
      _
    // Predicated region
    $region34: #{cnn_policy_forward.7} parent=1 // pred_check
      _
    $region35: #{cnn_policy_forward.7} parent=1 // pred_check_branch
      %3182 = sbr.rel (0) target = $region37
    $region36: #{cnn_policy_forward.7} parent=1 // pred_region
      _
    $region37: #{cnn_policy_forward.7} parent=1 // pred_fallthru
      _
    %3183 = vsyncpa [#allocation4], 1

</llo_original>
